<compile_context>
chip_gen: v6e
topology: v6e:2x2x1
jax: 0.10.0
libtpu: 0.0.40
codegen_flags: <defaults>
</compile_context>

<pallas_src>
import functools

import numpy as np

import jax
import jax.numpy as jnp
from jax import lax
from jax.experimental import pallas as pl
from jax.experimental.pallas import tpu as pltpu


# --------------------------- fused forward kernel --------------------------- #

def _cnn_fused_kernel(x_ref, w1_ref, b1_ref, w2_ref, b2_ref,
                      wf1_ref, bf1_ref, wf2_ref, bf2_ref, wf3_ref, bf3_ref,
                      feat_ref, out_ref, *, tb):
    """One batch block of `tb` samples, everything VMEM-resident.

    x_ref   : [28, tb, 28] f32   input, rows = image row, mid = sample, lanes = col
    w1_ref  : [140, 480]  bf16   conv1 Toeplitz weight, cols (parity, jw, c)
    b1_ref  : [1, 480]    f32
    w2_ref  : [720, 400]  bf16   conv2 Toeplitz weight, cols (parity, jw, c)
    b2_ref  : [1, 400]    f32
    wf1_ref : [1000, 600] bf16   fc1 weight, rows (pooled_row, pooled_col, c)
    wf2_ref : [600, 50]   bf16
    wf3_ref : [50, 11]    bf16
    feat_ref: [tb, 50]    f32    relu(fc2)
    out_ref : [tb, 11]    f32    fc3
    """
    # ---- conv1: 28x28x1 -> 24x24x20 (+bias, relu), 2x2 maxpool -> 12x12x20 ----
    xf = x_ref[...].reshape(28 * tb, 28)                      # rows (h, b), lanes w
    # fold the 5 row-taps into ONE matmul: LHS rows (i, b), K = 5*28 = 140
    s1 = jnp.concatenate([xf[di * tb:(di + 24) * tb, :] for di in range(5)],
                         axis=-1)                             # [24*tb, 140] f32
    z1 = jnp.dot(s1.astype(jnp.bfloat16), w1_ref[...],
                 preferred_element_type=jnp.float32)          # [24*tb, 480] f32
    z1 = jnp.maximum(z1 + b1_ref[...], 0.0)
    # width pool: columns are (parity, jw, c) -> single max of two lane halves
    zw = jnp.maximum(z1[:, :240], z1[:, 240:])                # [24*tb, 240] (jw, c)
    # height pool: rows are (i, b); max adjacent sublane-aligned tb-row groups
    h1 = jnp.concatenate(
        [jnp.maximum(zw[(2 * r) * tb:(2 * r + 1) * tb, :],
                     zw[(2 * r + 1) * tb:(2 * r + 2) * tb, :])
         for r in range(12)], axis=0)                         # [12*tb, 240] (ih, b)

    # ---- conv2: 12x12x20 -> 10x10x40 (+bias, relu), 2x2 maxpool -> 5x5x40 ----
    # fold the 3 row-taps into ONE matmul: LHS rows (i2, b), K = 3*240 = 720
    x2 = jnp.concatenate([h1[di * tb:(di + 10) * tb, :] for di in range(3)],
                         axis=-1)                             # [10*tb, 720] f32
    z2 = jnp.dot(x2.astype(jnp.bfloat16), w2_ref[...],
                 preferred_element_type=jnp.float32)          # [10*tb, 400] f32
    z2 = jnp.maximum(z2 + b2_ref[...], 0.0)
    zw2 = jnp.maximum(z2[:, :200], z2[:, 200:])               # [10*tb, 200] (jw, c)

    # ---- fc1: conv2 height pool fused into 5 accumulated row-block matmuls ----
    acc = jnp.zeros((tb, 600), jnp.float32)
    for r in range(5):
        pr = jnp.maximum(zw2[(2 * r) * tb:(2 * r + 1) * tb, :],
                         zw2[(2 * r + 1) * tb:(2 * r + 2) * tb, :])   # [tb, 200]
        acc = acc + jnp.dot(pr.astype(jnp.bfloat16),
                            wf1_ref[r * 200:(r + 1) * 200, :],
                            preferred_element_type=jnp.float32)
    h1fc = jnp.maximum(acc + bf1_ref[...], 0.0)               # [tb, 600]

    # ---- fc2 -> relu (first output), fc3 (second output) ----
    h2fc = jnp.dot(h1fc.astype(jnp.bfloat16), wf2_ref[...],
                   preferred_element_type=jnp.float32)
    h2fc = jnp.maximum(h2fc + bf2_ref[...], 0.0)              # [tb, 50]
    feat_ref[...] = h2fc.astype(feat_ref.dtype)
    logits = jnp.dot(h2fc.astype(jnp.bfloat16), wf3_ref[...],
                     preferred_element_type=jnp.float32) + bf3_ref[...]
    out_ref[...] = logits.astype(out_ref.dtype)


# ------------------------------ parameters ---------------------------------- #

def init_params(key):
    """PyTorch-layout parameters with nn.Conv2d / nn.Linear default init."""
    def uniform(k, shape, fan_in):
        bound = 1.0 / jnp.sqrt(jnp.float32(fan_in))
        return jax.random.uniform(k, shape, jnp.float32, -bound, bound)

    ks = jax.random.split(key, 10)
    return {
        "conv1_w": uniform(ks[0], (20, 1, 5, 5), 1 * 5 * 5),
        "conv1_b": uniform(ks[1], (20,), 1 * 5 * 5),
        "conv2_w": uniform(ks[2], (40, 20, 3, 3), 20 * 3 * 3),
        "conv2_b": uniform(ks[3], (40,), 20 * 3 * 3),
        "fc1_w": uniform(ks[4], (600, 1000), 1000),   # PyTorch Linear: [out, in]
        "fc1_b": uniform(ks[5], (600,), 1000),
        "fc2_w": uniform(ks[6], (50, 600), 600),
        "fc2_b": uniform(ks[7], (50,), 600),
        "fc3_w": uniform(ks[8], (11, 50), 50),
        "fc3_b": uniform(ks[9], (11,), 50),
    }


def _conv_toeplitz_weight(w, w_in_size):
    """PyTorch conv weight [Cout,Cin,KH,KW] -> banded matmul weight (bf16).

    Returns [KH * w_in_size * Cin, 2 * (Wo//2) * Cout] where Wo = w_in_size-KW+1.
    LHS row order is (row_tap di, input column, input channel); column order is
    (output-column parity, output column // 2, output channel) so the 2x2 width
    pool becomes a max over the two contiguous lane halves of the matmul result.
    """
    w = np.asarray(jax.device_get(w), np.float32)
    Cout, Cin, KH, KW = w.shape
    Wo = w_in_size - KW + 1
    Wp = Wo // 2
    big = np.zeros((KH, w_in_size, Cin, 2, Wp, Cout), np.float32)
    for di in range(KH):
        for dj in range(KW):
            for j in range(Wo):
                big[di, j + dj, :, j % 2, j // 2, :] = w[:, :, di, dj].T
    return jnp.asarray(big.reshape(KH * w_in_size * Cin, 2 * Wp * Cout),
                       jnp.bfloat16)


def prepare_kernel_params(p):
    """One-time layout transforms + bf16 weight casts (NOT per forward pass)."""
    kp = {}
    # conv1: 28-wide input, Wo=24 -> [140, 480];  conv2: 12-wide input, Wo=10 -> [720, 400]
    kp["conv1_w"] = _conv_toeplitz_weight(p["conv1_w"], 28)
    kp["conv1_b"] = jnp.tile(p["conv1_b"], 24)[None, :].astype(jnp.float32)  # [1, 480]
    kp["conv2_w"] = _conv_toeplitz_weight(p["conv2_w"], 12)
    kp["conv2_b"] = jnp.tile(p["conv2_b"], 10)[None, :].astype(jnp.float32)  # [1, 400]
    # fc1: permute input features from PyTorch's (c,h,w) flatten of [B,40,5,5] to the
    # kernel's (pooled_row, pooled_col, channel) order, store as [in, out] bf16.
    wf1 = p["fc1_w"].reshape(600, 40, 5, 5)                 # (out, c, h, w)
    wf1 = jnp.transpose(wf1, (2, 3, 1, 0)).reshape(1000, 600)
    kp["fc1_w"] = wf1.astype(jnp.bfloat16)                  # [1000, 600]
    kp["fc1_b"] = p["fc1_b"][None, :].astype(jnp.float32)
    kp["fc2_w"] = p["fc2_w"].T.astype(jnp.bfloat16)         # [600, 50]
    kp["fc2_b"] = p["fc2_b"][None, :].astype(jnp.float32)
    kp["fc3_w"] = p["fc3_w"].T.astype(jnp.bfloat16)         # [50, 11]
    kp["fc3_b"] = p["fc3_b"][None, :].astype(jnp.float32)
    return kp


# ------------------------------ forward pass --------------------------------- #

@functools.partial(jax.jit, static_argnames=("block_b",))
def cnn_net_forward(kp, x, block_b=8):
    """x: NCHW [B, 1, 28, 28] f32. Returns (relu(fc2) [B,50], fc3 [B,11])."""
    assert block_b % 8 == 0
    B = x.shape[0]
    tb = block_b
    bp = ((B + tb - 1) // tb) * tb
    xs = x.reshape(B, 28, 28).astype(jnp.float32)
    if bp != B:
        xs = jnp.pad(xs, ((0, bp - B), (0, 0), (0, 0)))
    # layout plumbing in the wrapper (cheap, one transpose): rows = image row,
    # middle = sample, lanes = image column -> in-kernel rows become (row, sample).
    x_t = jnp.transpose(xs, (1, 0, 2))                       # [28, bp, 28]

    weight_args = (kp["conv1_w"], kp["conv1_b"], kp["conv2_w"], kp["conv2_b"],
                   kp["fc1_w"], kp["fc1_b"], kp["fc2_w"], kp["fc2_b"],
                   kp["fc3_w"], kp["fc3_b"])
    in_specs = ([pl.BlockSpec((28, tb, 28), lambda g: (0, g, 0))]
                + [pl.BlockSpec(a.shape, lambda g: (0, 0)) for a in weight_args])

    macs = 24 * 140 * 480 + 10 * 720 * 400 + 1000 * 600 + 600 * 50 + 50 * 11
    w_bytes = sum(a.size * a.dtype.itemsize for a in weight_args)
    cost = pl.CostEstimate(flops=2 * macs * bp, transcendentals=0,
                           bytes_accessed=w_bytes + 4 * bp * (28 * 28 + 50 + 11))

    # Working set (weights ~2 MB bf16 + per-block intermediates ~1.5 MB) is far
    # below even v5e's 16 MiB default scoped VMEM, so no vmem_limit override needed.
    feat, logits = pl.pallas_call(
        functools.partial(_cnn_fused_kernel, tb=tb),
        out_shape=(jax.ShapeDtypeStruct((bp, 50), jnp.float32),
                   jax.ShapeDtypeStruct((bp, 11), jnp.float32)),
        grid=(bp // tb,),
        in_specs=in_specs,
        out_specs=(pl.BlockSpec((tb, 50), lambda g: (g, 0)),
                   pl.BlockSpec((tb, 11), lambda g: (g, 0))),
        compiler_params=pltpu.CompilerParams(dimension_semantics=("parallel",)),
        cost_estimate=cost,
    )(x_t, *weight_args)
    return feat[:B], logits[:B]


# ------------------------------ JAX reference -------------------------------- #

def _reference_forward(p, x):
    """Plain-XLA f32 reference matching the PyTorch module."""
    out = lax.conv_general_dilated(x, p["conv1_w"], (1, 1), "VALID",
                                   dimension_numbers=("NCHW", "OIHW", "NCHW"))
    out = jax.nn.relu(out + p["conv1_b"][None, :, None, None])
    out = lax.reduce_window(out, -jnp.inf, lax.max, (1, 1, 2, 2), (1, 1, 2, 2), "VALID")
    out = lax.conv_general_dilated(out, p["conv2_w"], (1, 1), "VALID",
                                   dimension_numbers=("NCHW", "OIHW", "NCHW"))
    out = jax.nn.relu(out + p["conv2_b"][None, :, None, None])
    out = lax.reduce_window(out, -jnp.inf, lax.max, (1, 1, 2, 2), (1, 1, 2, 2), "VALID")
    v = out.reshape(out.shape[0], -1)                        # (c, h, w) flatten
    h = jax.nn.relu(v @ p["fc1_w"].T + p["fc1_b"])
    feat = jax.nn.relu(h @ p["fc2_w"].T + p["fc2_b"])
    logits = feat @ p["fc3_w"].T + p["fc3_b"]
    return feat, logits


if __name__ == "__main__":
    key = jax.random.PRNGKey(0)
    k_params, k_x = jax.random.split(key)
    params = init_params(k_params)
    kparams = prepare_kernel_params(params)
    x = jax.random.normal(k_x, (2, 1, 28, 28), jnp.float32)

    feat, logits = cnn_net_forward(kparams, x)
    jax.block_until_ready((feat, logits))

    assert feat.shape == (2, 50), feat.shape
    assert logits.shape == (2, 11), logits.shape
    assert bool(jnp.all(feat >= 0.0))  # relu output

    # bf16 weights -> compare against the f32 reference with a loose tolerance.
    ref_feat, ref_logits = _reference_forward(params, x)
    assert bool(jnp.allclose(feat, ref_feat, rtol=5e-2, atol=5e-2)), \
        float(jnp.max(jnp.abs(feat - ref_feat)))
    assert bool(jnp.allclose(logits, ref_logits, rtol=5e-2, atol=5e-2)), \
        float(jnp.max(jnp.abs(logits - ref_logits)))

    print("KERNEL_OK")
</pallas_src>

<mosaic_0001>
module attributes {stable_mosaic.version = 11 : i64} {
  func.func @_cnn_fused_kernel(%arg0: i32, %arg1: memref<28x8x28xf32, #tpu.memory_space<vmem>>, %arg2: memref<140x480xbf16, #tpu.memory_space<vmem>>, %arg3: memref<1x480xf32, #tpu.memory_space<vmem>>, %arg4: memref<720x400xbf16, #tpu.memory_space<vmem>>, %arg5: memref<1x400xf32, #tpu.memory_space<vmem>>, %arg6: memref<1000x600xbf16, #tpu.memory_space<vmem>>, %arg7: memref<1x600xf32, #tpu.memory_space<vmem>>, %arg8: memref<600x50xbf16, #tpu.memory_space<vmem>>, %arg9: memref<1x50xf32, #tpu.memory_space<vmem>>, %arg10: memref<50x11xbf16, #tpu.memory_space<vmem>>, %arg11: memref<1x11xf32, #tpu.memory_space<vmem>>, %arg12: memref<8x50xf32, #tpu.memory_space<vmem>>, %arg13: memref<8x11xf32, #tpu.memory_space<vmem>>) attributes {dimension_semantics = [#tpu.dimension_semantics<parallel>], iteration_bounds = array<i64: 1>, scalar_prefetch = 0 : i64, scratch_operands = 0 : i64, tpu.core_type = #tpu.core_type<tc>, window_params = [{transform_indices = @transform_0, window_bounds = array<i64: 28, 8, 28>}, {pipeline_mode = #tpu.pipeline_mode<synchronous>, transform_indices = @transform_1, window_bounds = array<i64: 140, 480>}, {pipeline_mode = #tpu.pipeline_mode<synchronous>, transform_indices = @transform_2, window_bounds = array<i64: 1, 480>}, {pipeline_mode = #tpu.pipeline_mode<synchronous>, transform_indices = @transform_3, window_bounds = array<i64: 720, 400>}, {pipeline_mode = #tpu.pipeline_mode<synchronous>, transform_indices = @transform_4, window_bounds = array<i64: 1, 400>}, {pipeline_mode = #tpu.pipeline_mode<synchronous>, transform_indices = @transform_5, window_bounds = array<i64: 1000, 600>}, {pipeline_mode = #tpu.pipeline_mode<synchronous>, transform_indices = @transform_6, window_bounds = array<i64: 1, 600>}, {pipeline_mode = #tpu.pipeline_mode<synchronous>, transform_indices = @transform_7, window_bounds = array<i64: 600, 50>}, {pipeline_mode = #tpu.pipeline_mode<synchronous>, transform_indices = @transform_8, window_bounds = array<i64: 1, 50>}, {pipeline_mode = #tpu.pipeline_mode<synchronous>, transform_indices = @transform_9, window_bounds = array<i64: 50, 11>}, {pipeline_mode = #tpu.pipeline_mode<synchronous>, transform_indices = @transform_10, window_bounds = array<i64: 1, 11>}, {transform_indices = @transform_11, window_bounds = array<i64: 8, 50>}, {transform_indices = @transform_12, window_bounds = array<i64: 8, 11>}]} {
    %c0 = arith.constant 0 : index
    %c0_0 = arith.constant 0 : index
    %c0_1 = arith.constant 0 : index
    %0 = vector.load %arg1[%c0, %c0_0, %c0_1] : memref<28x8x28xf32, #tpu.memory_space<vmem>>, vector<28x8x28xf32>
    %1 = vector.shape_cast %0 : vector<28x8x28xf32> to vector<224x28xf32>
    %2 = vector.extract_strided_slice %1 {offsets = [0, 0], sizes = [192, 28], strides = [1, 1]} : vector<224x28xf32> to vector<192x28xf32>
    %3 = vector.extract_strided_slice %1 {offsets = [8, 0], sizes = [192, 28], strides = [1, 1]} : vector<224x28xf32> to vector<192x28xf32>
    %4 = vector.extract_strided_slice %1 {offsets = [16, 0], sizes = [192, 28], strides = [1, 1]} : vector<224x28xf32> to vector<192x28xf32>
    %5 = vector.extract_strided_slice %1 {offsets = [24, 0], sizes = [192, 28], strides = [1, 1]} : vector<224x28xf32> to vector<192x28xf32>
    %6 = vector.extract_strided_slice %1 {offsets = [32, 0], sizes = [192, 28], strides = [1, 1]} : vector<224x28xf32> to vector<192x28xf32>
    %7 = tpu.concatenate %2, %3, %4, %5, %6 in 1 : vector<192x28xf32>, vector<192x28xf32>, vector<192x28xf32>, vector<192x28xf32>, vector<192x28xf32> -> vector<192x140xf32>
    %8 = arith.truncf %7 : vector<192x140xf32> to vector<192x140xbf16>
    %c0_2 = arith.constant 0 : index
    %c0_3 = arith.constant 0 : index
    %9 = vector.load %arg2[%c0_2, %c0_3] : memref<140x480xbf16, #tpu.memory_space<vmem>>, vector<140x480xbf16>
    %cst = arith.constant dense<0.000000e+00> : vector<192x480xf32>
    %10 = tpu.matmul %8, %9, %cst {dimension_numbers = #tpu.dot_dimension_numbers<[1], [0], [0], [1], [0, 0, 1, 1], [], []>} : vector<192x140xbf16>, vector<140x480xbf16>, vector<192x480xf32> -> vector<192x480xf32>
    %c0_4 = arith.constant 0 : index
    %c0_5 = arith.constant 0 : index
    %11 = vector.load %arg3[%c0_4, %c0_5] : memref<1x480xf32, #tpu.memory_space<vmem>>, vector<1x480xf32>
    %12 = vector.broadcast %11 : vector<1x480xf32> to vector<192x480xf32>
    %13 = arith.addf %10, %12 : vector<192x480xf32>
    %cst_6 = arith.constant 0.000000e+00 : f32
    %14 = vector.broadcast %cst_6 : f32 to vector<192x480xf32>
    %15 = arith.maximumf %13, %14 : vector<192x480xf32>
    %16 = vector.extract_strided_slice %15 {offsets = [0, 0], sizes = [192, 240], strides = [1, 1]} : vector<192x480xf32> to vector<192x240xf32>
    %17 = vector.extract_strided_slice %15 {offsets = [0, 240], sizes = [192, 240], strides = [1, 1]} : vector<192x480xf32> to vector<192x240xf32>
    %18 = arith.maximumf %16, %17 : vector<192x240xf32>
    %19 = vector.extract_strided_slice %18 {offsets = [0, 0], sizes = [8, 240], strides = [1, 1]} : vector<192x240xf32> to vector<8x240xf32>
    %20 = vector.extract_strided_slice %18 {offsets = [8, 0], sizes = [8, 240], strides = [1, 1]} : vector<192x240xf32> to vector<8x240xf32>
    %21 = arith.maximumf %19, %20 : vector<8x240xf32>
    %22 = vector.extract_strided_slice %18 {offsets = [16, 0], sizes = [8, 240], strides = [1, 1]} : vector<192x240xf32> to vector<8x240xf32>
    %23 = vector.extract_strided_slice %18 {offsets = [24, 0], sizes = [8, 240], strides = [1, 1]} : vector<192x240xf32> to vector<8x240xf32>
    %24 = arith.maximumf %22, %23 : vector<8x240xf32>
    %25 = vector.extract_strided_slice %18 {offsets = [32, 0], sizes = [8, 240], strides = [1, 1]} : vector<192x240xf32> to vector<8x240xf32>
    %26 = vector.extract_strided_slice %18 {offsets = [40, 0], sizes = [8, 240], strides = [1, 1]} : vector<192x240xf32> to vector<8x240xf32>
    %27 = arith.maximumf %25, %26 : vector<8x240xf32>
    %28 = vector.extract_strided_slice %18 {offsets = [48, 0], sizes = [8, 240], strides = [1, 1]} : vector<192x240xf32> to vector<8x240xf32>
    %29 = vector.extract_strided_slice %18 {offsets = [56, 0], sizes = [8, 240], strides = [1, 1]} : vector<192x240xf32> to vector<8x240xf32>
    %30 = arith.maximumf %28, %29 : vector<8x240xf32>
    %31 = vector.extract_strided_slice %18 {offsets = [64, 0], sizes = [8, 240], strides = [1, 1]} : vector<192x240xf32> to vector<8x240xf32>
    %32 = vector.extract_strided_slice %18 {offsets = [72, 0], sizes = [8, 240], strides = [1, 1]} : vector<192x240xf32> to vector<8x240xf32>
    %33 = arith.maximumf %31, %32 : vector<8x240xf32>
    %34 = vector.extract_strided_slice %18 {offsets = [80, 0], sizes = [8, 240], strides = [1, 1]} : vector<192x240xf32> to vector<8x240xf32>
    %35 = vector.extract_strided_slice %18 {offsets = [88, 0], sizes = [8, 240], strides = [1, 1]} : vector<192x240xf32> to vector<8x240xf32>
    %36 = arith.maximumf %34, %35 : vector<8x240xf32>
    %37 = vector.extract_strided_slice %18 {offsets = [96, 0], sizes = [8, 240], strides = [1, 1]} : vector<192x240xf32> to vector<8x240xf32>
    %38 = vector.extract_strided_slice %18 {offsets = [104, 0], sizes = [8, 240], strides = [1, 1]} : vector<192x240xf32> to vector<8x240xf32>
    %39 = arith.maximumf %37, %38 : vector<8x240xf32>
    %40 = vector.extract_strided_slice %18 {offsets = [112, 0], sizes = [8, 240], strides = [1, 1]} : vector<192x240xf32> to vector<8x240xf32>
    %41 = vector.extract_strided_slice %18 {offsets = [120, 0], sizes = [8, 240], strides = [1, 1]} : vector<192x240xf32> to vector<8x240xf32>
    %42 = arith.maximumf %40, %41 : vector<8x240xf32>
    %43 = vector.extract_strided_slice %18 {offsets = [128, 0], sizes = [8, 240], strides = [1, 1]} : vector<192x240xf32> to vector<8x240xf32>
    %44 = vector.extract_strided_slice %18 {offsets = [136, 0], sizes = [8, 240], strides = [1, 1]} : vector<192x240xf32> to vector<8x240xf32>
    %45 = arith.maximumf %43, %44 : vector<8x240xf32>
    %46 = vector.extract_strided_slice %18 {offsets = [144, 0], sizes = [8, 240], strides = [1, 1]} : vector<192x240xf32> to vector<8x240xf32>
    %47 = vector.extract_strided_slice %18 {offsets = [152, 0], sizes = [8, 240], strides = [1, 1]} : vector<192x240xf32> to vector<8x240xf32>
    %48 = arith.maximumf %46, %47 : vector<8x240xf32>
    %49 = vector.extract_strided_slice %18 {offsets = [160, 0], sizes = [8, 240], strides = [1, 1]} : vector<192x240xf32> to vector<8x240xf32>
    %50 = vector.extract_strided_slice %18 {offsets = [168, 0], sizes = [8, 240], strides = [1, 1]} : vector<192x240xf32> to vector<8x240xf32>
    %51 = arith.maximumf %49, %50 : vector<8x240xf32>
    %52 = vector.extract_strided_slice %18 {offsets = [176, 0], sizes = [8, 240], strides = [1, 1]} : vector<192x240xf32> to vector<8x240xf32>
    %53 = vector.extract_strided_slice %18 {offsets = [184, 0], sizes = [8, 240], strides = [1, 1]} : vector<192x240xf32> to vector<8x240xf32>
    %54 = arith.maximumf %52, %53 : vector<8x240xf32>
    %55 = tpu.concatenate %21, %24, %27, %30, %33, %36, %39, %42, %45, %48, %51, %54 in 0 : vector<8x240xf32>, vector<8x240xf32>, vector<8x240xf32>, vector<8x240xf32>, vector<8x240xf32>, vector<8x240xf32>, vector<8x240xf32>, vector<8x240xf32>, vector<8x240xf32>, vector<8x240xf32>, vector<8x240xf32>, vector<8x240xf32> -> vector<96x240xf32>
    %56 = vector.extract_strided_slice %55 {offsets = [0, 0], sizes = [80, 240], strides = [1, 1]} : vector<96x240xf32> to vector<80x240xf32>
    %57 = vector.extract_strided_slice %55 {offsets = [8, 0], sizes = [80, 240], strides = [1, 1]} : vector<96x240xf32> to vector<80x240xf32>
    %58 = vector.extract_strided_slice %55 {offsets = [16, 0], sizes = [80, 240], strides = [1, 1]} : vector<96x240xf32> to vector<80x240xf32>
    %59 = tpu.concatenate %56, %57, %58 in 1 : vector<80x240xf32>, vector<80x240xf32>, vector<80x240xf32> -> vector<80x720xf32>
    %60 = arith.truncf %59 : vector<80x720xf32> to vector<80x720xbf16>
    %c0_7 = arith.constant 0 : index
    %c0_8 = arith.constant 0 : index
    %61 = vector.load %arg4[%c0_7, %c0_8] : memref<720x400xbf16, #tpu.memory_space<vmem>>, vector<720x400xbf16>
    %cst_9 = arith.constant dense<0.000000e+00> : vector<80x400xf32>
    %62 = tpu.matmul %60, %61, %cst_9 {dimension_numbers = #tpu.dot_dimension_numbers<[1], [0], [0], [1], [0, 0, 1, 1], [], []>} : vector<80x720xbf16>, vector<720x400xbf16>, vector<80x400xf32> -> vector<80x400xf32>
    %c0_10 = arith.constant 0 : index
    %c0_11 = arith.constant 0 : index
    %63 = vector.load %arg5[%c0_10, %c0_11] : memref<1x400xf32, #tpu.memory_space<vmem>>, vector<1x400xf32>
    %64 = vector.broadcast %63 : vector<1x400xf32> to vector<80x400xf32>
    %65 = arith.addf %62, %64 : vector<80x400xf32>
    %cst_12 = arith.constant 0.000000e+00 : f32
    %66 = vector.broadcast %cst_12 : f32 to vector<80x400xf32>
    %67 = arith.maximumf %65, %66 : vector<80x400xf32>
    %68 = vector.extract_strided_slice %67 {offsets = [0, 0], sizes = [80, 200], strides = [1, 1]} : vector<80x400xf32> to vector<80x200xf32>
    %69 = vector.extract_strided_slice %67 {offsets = [0, 200], sizes = [80, 200], strides = [1, 1]} : vector<80x400xf32> to vector<80x200xf32>
    %70 = arith.maximumf %68, %69 : vector<80x200xf32>
    %cst_13 = arith.constant 0.000000e+00 : f32
    %71 = vector.broadcast %cst_13 : f32 to vector<8x600xf32>
    %72 = vector.extract_strided_slice %70 {offsets = [0, 0], sizes = [8, 200], strides = [1, 1]} : vector<80x200xf32> to vector<8x200xf32>
    %73 = vector.extract_strided_slice %70 {offsets = [8, 0], sizes = [8, 200], strides = [1, 1]} : vector<80x200xf32> to vector<8x200xf32>
    %74 = arith.maximumf %72, %73 : vector<8x200xf32>
    %75 = arith.truncf %74 : vector<8x200xf32> to vector<8x200xbf16>
    %c0_14 = arith.constant 0 : index
    %c0_15 = arith.constant 0 : index
    %76 = vector.load %arg6[%c0_14, %c0_15] : memref<1000x600xbf16, #tpu.memory_space<vmem>>, vector<200x600xbf16>
    %cst_16 = arith.constant dense<0.000000e+00> : vector<8x600xf32>
    %77 = tpu.matmul %75, %76, %cst_16 {dimension_numbers = #tpu.dot_dimension_numbers<[1], [0], [0], [1], [0, 0, 1, 1], [], []>} : vector<8x200xbf16>, vector<200x600xbf16>, vector<8x600xf32> -> vector<8x600xf32>
    %78 = arith.addf %71, %77 : vector<8x600xf32>
    %79 = vector.extract_strided_slice %70 {offsets = [16, 0], sizes = [8, 200], strides = [1, 1]} : vector<80x200xf32> to vector<8x200xf32>
    %80 = vector.extract_strided_slice %70 {offsets = [24, 0], sizes = [8, 200], strides = [1, 1]} : vector<80x200xf32> to vector<8x200xf32>
    %81 = arith.maximumf %79, %80 : vector<8x200xf32>
    %82 = arith.truncf %81 : vector<8x200xf32> to vector<8x200xbf16>
    %c200 = arith.constant 200 : index
    %c0_17 = arith.constant 0 : index
    %83 = vector.load %arg6[%c200, %c0_17] : memref<1000x600xbf16, #tpu.memory_space<vmem>>, vector<200x600xbf16>
    %cst_18 = arith.constant dense<0.000000e+00> : vector<8x600xf32>
    %84 = tpu.matmul %82, %83, %cst_18 {dimension_numbers = #tpu.dot_dimension_numbers<[1], [0], [0], [1], [0, 0, 1, 1], [], []>} : vector<8x200xbf16>, vector<200x600xbf16>, vector<8x600xf32> -> vector<8x600xf32>
    %85 = arith.addf %78, %84 : vector<8x600xf32>
    %86 = vector.extract_strided_slice %70 {offsets = [32, 0], sizes = [8, 200], strides = [1, 1]} : vector<80x200xf32> to vector<8x200xf32>
    %87 = vector.extract_strided_slice %70 {offsets = [40, 0], sizes = [8, 200], strides = [1, 1]} : vector<80x200xf32> to vector<8x200xf32>
    %88 = arith.maximumf %86, %87 : vector<8x200xf32>
    %89 = arith.truncf %88 : vector<8x200xf32> to vector<8x200xbf16>
    %c400 = arith.constant 400 : index
    %c0_19 = arith.constant 0 : index
    %90 = vector.load %arg6[%c400, %c0_19] : memref<1000x600xbf16, #tpu.memory_space<vmem>>, vector<200x600xbf16>
    %cst_20 = arith.constant dense<0.000000e+00> : vector<8x600xf32>
    %91 = tpu.matmul %89, %90, %cst_20 {dimension_numbers = #tpu.dot_dimension_numbers<[1], [0], [0], [1], [0, 0, 1, 1], [], []>} : vector<8x200xbf16>, vector<200x600xbf16>, vector<8x600xf32> -> vector<8x600xf32>
    %92 = arith.addf %85, %91 : vector<8x600xf32>
    %93 = vector.extract_strided_slice %70 {offsets = [48, 0], sizes = [8, 200], strides = [1, 1]} : vector<80x200xf32> to vector<8x200xf32>
    %94 = vector.extract_strided_slice %70 {offsets = [56, 0], sizes = [8, 200], strides = [1, 1]} : vector<80x200xf32> to vector<8x200xf32>
    %95 = arith.maximumf %93, %94 : vector<8x200xf32>
    %96 = arith.truncf %95 : vector<8x200xf32> to vector<8x200xbf16>
    %c600 = arith.constant 600 : index
    %c0_21 = arith.constant 0 : index
    %97 = vector.load %arg6[%c600, %c0_21] : memref<1000x600xbf16, #tpu.memory_space<vmem>>, vector<200x600xbf16>
    %cst_22 = arith.constant dense<0.000000e+00> : vector<8x600xf32>
    %98 = tpu.matmul %96, %97, %cst_22 {dimension_numbers = #tpu.dot_dimension_numbers<[1], [0], [0], [1], [0, 0, 1, 1], [], []>} : vector<8x200xbf16>, vector<200x600xbf16>, vector<8x600xf32> -> vector<8x600xf32>
    %99 = arith.addf %92, %98 : vector<8x600xf32>
    %100 = vector.extract_strided_slice %70 {offsets = [64, 0], sizes = [8, 200], strides = [1, 1]} : vector<80x200xf32> to vector<8x200xf32>
    %101 = vector.extract_strided_slice %70 {offsets = [72, 0], sizes = [8, 200], strides = [1, 1]} : vector<80x200xf32> to vector<8x200xf32>
    %102 = arith.maximumf %100, %101 : vector<8x200xf32>
    %103 = arith.truncf %102 : vector<8x200xf32> to vector<8x200xbf16>
    %c800 = arith.constant 800 : index
    %c0_23 = arith.constant 0 : index
    %104 = vector.load %arg6[%c800, %c0_23] : memref<1000x600xbf16, #tpu.memory_space<vmem>>, vector<200x600xbf16>
    %cst_24 = arith.constant dense<0.000000e+00> : vector<8x600xf32>
    %105 = tpu.matmul %103, %104, %cst_24 {dimension_numbers = #tpu.dot_dimension_numbers<[1], [0], [0], [1], [0, 0, 1, 1], [], []>} : vector<8x200xbf16>, vector<200x600xbf16>, vector<8x600xf32> -> vector<8x600xf32>
    %106 = arith.addf %99, %105 : vector<8x600xf32>
    %c0_25 = arith.constant 0 : index
    %c0_26 = arith.constant 0 : index
    %107 = vector.load %arg7[%c0_25, %c0_26] : memref<1x600xf32, #tpu.memory_space<vmem>>, vector<1x600xf32>
    %108 = vector.broadcast %107 : vector<1x600xf32> to vector<8x600xf32>
    %109 = arith.addf %106, %108 : vector<8x600xf32>
    %cst_27 = arith.constant 0.000000e+00 : f32
    %110 = vector.broadcast %cst_27 : f32 to vector<8x600xf32>
    %111 = arith.maximumf %109, %110 : vector<8x600xf32>
    %112 = arith.truncf %111 : vector<8x600xf32> to vector<8x600xbf16>
    %c0_28 = arith.constant 0 : index
    %c0_29 = arith.constant 0 : index
    %113 = vector.load %arg8[%c0_28, %c0_29] : memref<600x50xbf16, #tpu.memory_space<vmem>>, vector<600x50xbf16>
    %cst_30 = arith.constant dense<0.000000e+00> : vector<8x50xf32>
    %114 = tpu.matmul %112, %113, %cst_30 {dimension_numbers = #tpu.dot_dimension_numbers<[1], [0], [0], [1], [0, 0, 1, 1], [], []>} : vector<8x600xbf16>, vector<600x50xbf16>, vector<8x50xf32> -> vector<8x50xf32>
    %c0_31 = arith.constant 0 : index
    %c0_32 = arith.constant 0 : index
    %115 = vector.load %arg9[%c0_31, %c0_32] : memref<1x50xf32, #tpu.memory_space<vmem>>, vector<1x50xf32>
    %116 = vector.broadcast %115 : vector<1x50xf32> to vector<8x50xf32>
    %117 = arith.addf %114, %116 : vector<8x50xf32>
    %cst_33 = arith.constant 0.000000e+00 : f32
    %118 = vector.broadcast %cst_33 : f32 to vector<8x50xf32>
    %119 = arith.maximumf %117, %118 : vector<8x50xf32>
    %c0_34 = arith.constant 0 : index
    %c0_35 = arith.constant 0 : index
    %120 = vector.load %arg12[%c0_34, %c0_35] : memref<8x50xf32, #tpu.memory_space<vmem>>, vector<8x50xf32>
    tpu.vector_store %arg12[%c0_34, %c0_35], %119 {strides = array<i32>} : memref<8x50xf32, #tpu.memory_space<vmem>>, vector<8x50xf32>,
    %121 = arith.truncf %119 : vector<8x50xf32> to vector<8x50xbf16>
    %c0_36 = arith.constant 0 : index
    %c0_37 = arith.constant 0 : index
    %122 = vector.load %arg10[%c0_36, %c0_37] : memref<50x11xbf16, #tpu.memory_space<vmem>>, vector<50x11xbf16>
    %cst_38 = arith.constant dense<0.000000e+00> : vector<8x11xf32>
    %123 = tpu.matmul %121, %122, %cst_38 {dimension_numbers = #tpu.dot_dimension_numbers<[1], [0], [0], [1], [0, 0, 1, 1], [], []>} : vector<8x50xbf16>, vector<50x11xbf16>, vector<8x11xf32> -> vector<8x11xf32>
    %c0_39 = arith.constant 0 : index
    %c0_40 = arith.constant 0 : index
    %124 = vector.load %arg11[%c0_39, %c0_40] : memref<1x11xf32, #tpu.memory_space<vmem>>, vector<1x11xf32>
    %125 = vector.broadcast %124 : vector<1x11xf32> to vector<8x11xf32>
    %126 = arith.addf %123, %125 : vector<8x11xf32>
    %c0_41 = arith.constant 0 : index
    %c0_42 = arith.constant 0 : index
    %127 = vector.load %arg13[%c0_41, %c0_42] : memref<8x11xf32, #tpu.memory_space<vmem>>, vector<8x11xf32>
    tpu.vector_store %arg13[%c0_41, %c0_42], %126 {strides = array<i32>} : memref<8x11xf32, #tpu.memory_space<vmem>>, vector<8x11xf32>,
    return
  }
  func.func @transform_0(%arg0: i32) -> (i32, i32, i32) {
    %c0_i32 = arith.constant 0 : i32
    %c0_i32_0 = arith.constant 0 : i32
    %c0_i32_1 = arith.constant 0 : i32
    return %c0_i32, %arg0, %c0_i32_0 : i32, i32, i32
  }
  func.func @transform_1(%arg0: i32) -> (i32, i32) {
    %c0_i32 = arith.constant 0 : i32
    %c0_i32_0 = arith.constant 0 : i32
    %c0_i32_1 = arith.constant 0 : i32
    return %c0_i32, %c0_i32_0 : i32, i32
  }
  func.func @transform_2(%arg0: i32) -> (i32, i32) {
    %c0_i32 = arith.constant 0 : i32
    %c0_i32_0 = arith.constant 0 : i32
    %c0_i32_1 = arith.constant 0 : i32
    return %c0_i32, %c0_i32_0 : i32, i32
  }
  func.func @transform_3(%arg0: i32) -> (i32, i32) {
    %c0_i32 = arith.constant 0 : i32
    %c0_i32_0 = arith.constant 0 : i32
    %c0_i32_1 = arith.constant 0 : i32
    return %c0_i32, %c0_i32_0 : i32, i32
  }
  func.func @transform_4(%arg0: i32) -> (i32, i32) {
    %c0_i32 = arith.constant 0 : i32
    %c0_i32_0 = arith.constant 0 : i32
    %c0_i32_1 = arith.constant 0 : i32
    return %c0_i32, %c0_i32_0 : i32, i32
  }
  func.func @transform_5(%arg0: i32) -> (i32, i32) {
    %c0_i32 = arith.constant 0 : i32
    %c0_i32_0 = arith.constant 0 : i32
    %c0_i32_1 = arith.constant 0 : i32
    return %c0_i32, %c0_i32_0 : i32, i32
  }
  func.func @transform_6(%arg0: i32) -> (i32, i32) {
    %c0_i32 = arith.constant 0 : i32
    %c0_i32_0 = arith.constant 0 : i32
    %c0_i32_1 = arith.constant 0 : i32
    return %c0_i32, %c0_i32_0 : i32, i32
  }
  func.func @transform_7(%arg0: i32) -> (i32, i32) {
    %c0_i32 = arith.constant 0 : i32
    %c0_i32_0 = arith.constant 0 : i32
    %c0_i32_1 = arith.constant 0 : i32
    return %c0_i32, %c0_i32_0 : i32, i32
  }
  func.func @transform_8(%arg0: i32) -> (i32, i32) {
    %c0_i32 = arith.constant 0 : i32
    %c0_i32_0 = arith.constant 0 : i32
    %c0_i32_1 = arith.constant 0 : i32
    return %c0_i32, %c0_i32_0 : i32, i32
  }
  func.func @transform_9(%arg0: i32) -> (i32, i32) {
    %c0_i32 = arith.constant 0 : i32
    %c0_i32_0 = arith.constant 0 : i32
    %c0_i32_1 = arith.constant 0 : i32
    return %c0_i32, %c0_i32_0 : i32, i32
  }
  func.func @transform_10(%arg0: i32) -> (i32, i32) {
    %c0_i32 = arith.constant 0 : i32
    %c0_i32_0 = arith.constant 0 : i32
    %c0_i32_1 = arith.constant 0 : i32
    return %c0_i32, %c0_i32_0 : i32, i32
  }
  func.func @transform_11(%arg0: i32) -> (i32, i32) {
    %c0_i32 = arith.constant 0 : i32
    %c0_i32_0 = arith.constant 0 : i32
    return %arg0, %c0_i32 : i32, i32
  }
  func.func @transform_12(%arg0: i32) -> (i32, i32) {
    %c0_i32 = arith.constant 0 : i32
    %c0_i32_0 = arith.constant 0 : i32
    return %arg0, %c0_i32 : i32, i32
  }
}

</mosaic_0001>

<llo_original>
// kernel: cnn_net_forward.1
$region0: #{cnn_net_forward.1}
  #allocation0 [shape = 'u32[]', space=smem, size = 0x4, offset = 0x4, fixed_abs, tag = 'smem constant byte address 0x4 - core index']
  #allocation1 [shape = 'u32[144,128]{1,0:T(1,128)}', space=vmem, size = 0x12000, scoped, tag = 'internal scratch']
  %s0 = inlined_call_operand.vmem [shape: f32[28,8,28], index: 0, kind: input, shape index: {}]
  %s1 = inlined_call_operand.vmem [shape: bf16[140,480], index: 1, kind: input, shape index: {}]
  %s2 = inlined_call_operand.vmem [shape: f32[1,480], index: 2, kind: input, shape index: {}]
  %s3 = inlined_call_operand.vmem [shape: bf16[720,400], index: 3, kind: input, shape index: {}]
  %s4 = inlined_call_operand.vmem [shape: f32[1,400], index: 4, kind: input, shape index: {}]
  %s5 = inlined_call_operand.vmem [shape: bf16[1000,600], index: 5, kind: input, shape index: {}]
  %s6 = inlined_call_operand.vmem [shape: f32[1,600], index: 6, kind: input, shape index: {}]
  %s7 = inlined_call_operand.vmem [shape: bf16[600,50], index: 7, kind: input, shape index: {}]
  %s8 = inlined_call_operand.vmem [shape: f32[1,50], index: 8, kind: input, shape index: {}]
  %s9 = inlined_call_operand.vmem [shape: bf16[50,11], index: 9, kind: input, shape index: {}]
  %s10 = inlined_call_operand.vmem [shape: f32[1,11], index: 10, kind: input, shape index: {}]
  %s11 = inlined_call_operand.vmem [shape: f32[8,50], index: 11, kind: output, shape index: {0}]
  %s12 = inlined_call_operand.vmem [shape: f32[8,11], index: 12, kind: output, shape index: {1}]
  %13 = xla_tuple %s11, %s12
  %s14 = sld [smem:[#allocation0]]
  $region62: #{cnn_net_forward.1} parent=0
    _
  %s16 = ssub.s32 1, %s14
  %s17 = scalar_select 0, %s16, %s14
  // Predicated region
  $region2: #{cnn_net_forward.1} parent=0 // pred_check
    _
  $region3: #{cnn_net_forward.1} parent=0 // pred_check_branch
    %19 = sbr.rel (0) target = $region5
  $region4: #{cnn_net_forward.1} parent=0 // pred_region
    _
  $region5: #{cnn_net_forward.1} parent=0 // pred_fallthru
    _
  // Predicated region
  $region6: #{cnn_net_forward.1} parent=0 // pred_check
    _
  $region7: #{cnn_net_forward.1} parent=0 // pred_check_branch
    %21 = sbr.rel (0) target = $region9
  $region8: #{cnn_net_forward.1} parent=0 // pred_region
    _
  $region9: #{cnn_net_forward.1} parent=0 // pred_fallthru
    _
  // Predicated region
  $region10: #{cnn_net_forward.1} parent=0 // pred_check
    _
  $region11: #{cnn_net_forward.1} parent=0 // pred_check_branch
    %23 = sbr.rel (0) target = $region13
  $region12: #{cnn_net_forward.1} parent=0 // pred_region
    _
  $region13: #{cnn_net_forward.1} parent=0 // pred_fallthru
    _
  // Predicated region
  $region14: #{cnn_net_forward.1} parent=0 // pred_check
    _
  $region15: #{cnn_net_forward.1} parent=0 // pred_check_branch
    %25 = sbr.rel (0) target = $region17
  $region16: #{cnn_net_forward.1} parent=0 // pred_region
    _
  $region17: #{cnn_net_forward.1} parent=0 // pred_fallthru
    _
  // Predicated region
  $region18: #{cnn_net_forward.1} parent=0 // pred_check
    _
  $region19: #{cnn_net_forward.1} parent=0 // pred_check_branch
    %27 = sbr.rel (0) target = $region21
  $region20: #{cnn_net_forward.1} parent=0 // pred_region
    _
  $region21: #{cnn_net_forward.1} parent=0 // pred_fallthru
    _
  // Predicated region
  $region22: #{cnn_net_forward.1} parent=0 // pred_check
    _
  $region23: #{cnn_net_forward.1} parent=0 // pred_check_branch
    %29 = sbr.rel (0) target = $region25
  $region24: #{cnn_net_forward.1} parent=0 // pred_region
    _
  $region25: #{cnn_net_forward.1} parent=0 // pred_fallthru
    _
  // Predicated region
  $region26: #{cnn_net_forward.1} parent=0 // pred_check
    _
  $region27: #{cnn_net_forward.1} parent=0 // pred_check_branch
    %31 = sbr.rel (0) target = $region29
  $region28: #{cnn_net_forward.1} parent=0 // pred_region
    _
  $region29: #{cnn_net_forward.1} parent=0 // pred_fallthru
    _
  // Predicated region
  $region30: #{cnn_net_forward.1} parent=0 // pred_check
    _
  $region31: #{cnn_net_forward.1} parent=0 // pred_check_branch
    %33 = sbr.rel (0) target = $region33
  $region32: #{cnn_net_forward.1} parent=0 // pred_region
    _
  $region33: #{cnn_net_forward.1} parent=0 // pred_fallthru
    _
  // Predicated region
  $region34: #{cnn_net_forward.1} parent=0 // pred_check
    _
  $region35: #{cnn_net_forward.1} parent=0 // pred_check_branch
    %35 = sbr.rel (0) target = $region37
  $region36: #{cnn_net_forward.1} parent=0 // pred_region
    _
  $region37: #{cnn_net_forward.1} parent=0 // pred_fallthru
    _
  // Predicated region
  $region38: #{cnn_net_forward.1} parent=0 // pred_check
    _
  $region39: #{cnn_net_forward.1} parent=0 // pred_check_branch
    %37 = sbr.rel (0) target = $region41
  $region40: #{cnn_net_forward.1} parent=0 // pred_region
    _
  $region41: #{cnn_net_forward.1} parent=0 // pred_fallthru
    _
  // Predicated region
  $region42: #{cnn_net_forward.1} parent=0 // pred_check
    _
  $region43: #{cnn_net_forward.1} parent=0 // pred_check_branch
    %39 = sbr.rel (0) target = $region45
  $region44: #{cnn_net_forward.1} parent=0 // pred_region
    _
  $region45: #{cnn_net_forward.1} parent=0 // pred_fallthru
    _
  %v41 = vld [vmem:[%s0] sm:$0xff]
  %v42 = vld [vmem:[%s0 + $0x8] sm:$0xff]
  %v43 = vld [vmem:[%s0 + $0x10] sm:$0xff]
  %v44 = vld [vmem:[%s0 + $0x18] sm:$0xff]
  %v45 = vld [vmem:[%s0 + $0x20] sm:$0xff]
  %v46 = vld [vmem:[%s0 + $0x28] sm:$0xff]
  %v47 = vld [vmem:[%s0 + $0x30] sm:$0xff]
  %v48 = vld [vmem:[%s0 + $0x38] sm:$0xff]
  %v49 = vld [vmem:[%s0 + $0x40] sm:$0xff]
  %v50 = vld [vmem:[%s0 + $0x48] sm:$0xff]
  %v51 = vld [vmem:[%s0 + $0x50] sm:$0xff]
  %v52 = vld [vmem:[%s0 + $0x58] sm:$0xff]
  %v53 = vld [vmem:[%s0 + $0x60] sm:$0xff]
  %v54 = vld [vmem:[%s0 + $0x68] sm:$0xff]
  %v55 = vld [vmem:[%s0 + $0x70] sm:$0xff]
  %v56 = vld [vmem:[%s0 + $0x78] sm:$0xff]
  %v57 = vld [vmem:[%s0 + $0x80] sm:$0xff]
  %v58 = vld [vmem:[%s0 + $0x88] sm:$0xff]
  %v59 = vld [vmem:[%s0 + $0x90] sm:$0xff]
  %v60 = vld [vmem:[%s0 + $0x98] sm:$0xff]
  %v61 = vld [vmem:[%s0 + $0xa0] sm:$0xff]
  %v62 = vld [vmem:[%s0 + $0xa8] sm:$0xff]
  %v63 = vld [vmem:[%s0 + $0xb0] sm:$0xff]
  %v64 = vld [vmem:[%s0 + $0xb8] sm:$0xff]
  %v65 = vld [vmem:[%s0 + $0xc0] sm:$0xff]
  %v66 = vld [vmem:[%s0 + $0xc8] sm:$0xff]
  %v67 = vld [vmem:[%s0 + $0xd0] sm:$0xff]
  %v68 = vld [vmem:[%s0 + $0xd8] sm:$0xff]
  %93 = vrot.lane.b32.xlu0 %v42, 28
  %v94 = vpop.permute.xlu0 %93
  %95 = vrot.lane.b32.xlu0 %v43, 28
  %v96 = vpop.permute.xlu0 %95
  %97 = vrot.lane.b32.xlu0 %v44, 28
  %v98 = vpop.permute.xlu0 %97
  %99 = vrot.lane.b32.xlu0 %v45, 28
  %v100 = vpop.permute.xlu0 %99
  %101 = vrot.lane.b32.xlu0 %v46, 28
  %v102 = vpop.permute.xlu0 %101
  %103 = vrot.lane.b32.xlu0 %v47, 28
  %v104 = vpop.permute.xlu0 %103
  %105 = vrot.lane.b32.xlu0 %v48, 28
  %v106 = vpop.permute.xlu0 %105
  %107 = vrot.lane.b32.xlu0 %v49, 28
  %v108 = vpop.permute.xlu0 %107
  %109 = vrot.lane.b32.xlu0 %v50, 28
  %v110 = vpop.permute.xlu0 %109
  %111 = vrot.lane.b32.xlu0 %v51, 28
  %v112 = vpop.permute.xlu0 %111
  %113 = vrot.lane.b32.xlu0 %v52, 28
  %v114 = vpop.permute.xlu0 %113
  %115 = vrot.lane.b32.xlu0 %v53, 28
  %v116 = vpop.permute.xlu0 %115
  %117 = vrot.lane.b32.xlu0 %v54, 28
  %v118 = vpop.permute.xlu0 %117
  %119 = vrot.lane.b32.xlu0 %v55, 28
  %v120 = vpop.permute.xlu0 %119
  %121 = vrot.lane.b32.xlu0 %v56, 28
  %v122 = vpop.permute.xlu0 %121
  %123 = vrot.lane.b32.xlu0 %v57, 28
  %v124 = vpop.permute.xlu0 %123
  %125 = vrot.lane.b32.xlu0 %v58, 28
  %v126 = vpop.permute.xlu0 %125
  %127 = vrot.lane.b32.xlu0 %v59, 28
  %v128 = vpop.permute.xlu0 %127
  %129 = vrot.lane.b32.xlu0 %v60, 28
  %v130 = vpop.permute.xlu0 %129
  %131 = vrot.lane.b32.xlu0 %v61, 28
  %v132 = vpop.permute.xlu0 %131
  %133 = vrot.lane.b32.xlu0 %v62, 28
  %v134 = vpop.permute.xlu0 %133
  %135 = vrot.lane.b32.xlu0 %v63, 28
  %v136 = vpop.permute.xlu0 %135
  %137 = vrot.lane.b32.xlu0 %v64, 28
  %v138 = vpop.permute.xlu0 %137
  %139 = vrot.lane.b32.xlu0 %v65, 28
  %v140 = vpop.permute.xlu0 %139
  %166 = vrot.lane.b32.xlu0 %v43, 56
  %v167 = vpop.permute.xlu0 %166
  %168 = vrot.lane.b32.xlu0 %v44, 56
  %v169 = vpop.permute.xlu0 %168
  %170 = vrot.lane.b32.xlu0 %v45, 56
  %v171 = vpop.permute.xlu0 %170
  %172 = vrot.lane.b32.xlu0 %v46, 56
  %v173 = vpop.permute.xlu0 %172
  %174 = vrot.lane.b32.xlu0 %v47, 56
  %v175 = vpop.permute.xlu0 %174
  %176 = vrot.lane.b32.xlu0 %v48, 56
  %v177 = vpop.permute.xlu0 %176
  %178 = vrot.lane.b32.xlu0 %v49, 56
  %v179 = vpop.permute.xlu0 %178
  %180 = vrot.lane.b32.xlu0 %v50, 56
  %v181 = vpop.permute.xlu0 %180
  %182 = vrot.lane.b32.xlu0 %v51, 56
  %v183 = vpop.permute.xlu0 %182
  %184 = vrot.lane.b32.xlu0 %v52, 56
  %v185 = vpop.permute.xlu0 %184
  %186 = vrot.lane.b32.xlu0 %v53, 56
  %v187 = vpop.permute.xlu0 %186
  %188 = vrot.lane.b32.xlu0 %v54, 56
  %v189 = vpop.permute.xlu0 %188
  %190 = vrot.lane.b32.xlu0 %v55, 56
  %v191 = vpop.permute.xlu0 %190
  %192 = vrot.lane.b32.xlu0 %v56, 56
  %v193 = vpop.permute.xlu0 %192
  %194 = vrot.lane.b32.xlu0 %v57, 56
  %v195 = vpop.permute.xlu0 %194
  %196 = vrot.lane.b32.xlu0 %v58, 56
  %v197 = vpop.permute.xlu0 %196
  %198 = vrot.lane.b32.xlu0 %v59, 56
  %v199 = vpop.permute.xlu0 %198
  %200 = vrot.lane.b32.xlu0 %v60, 56
  %v201 = vpop.permute.xlu0 %200
  %202 = vrot.lane.b32.xlu0 %v61, 56
  %v203 = vpop.permute.xlu0 %202
  %204 = vrot.lane.b32.xlu0 %v62, 56
  %v205 = vpop.permute.xlu0 %204
  %206 = vrot.lane.b32.xlu0 %v63, 56
  %v207 = vpop.permute.xlu0 %206
  %208 = vrot.lane.b32.xlu0 %v64, 56
  %v209 = vpop.permute.xlu0 %208
  %210 = vrot.lane.b32.xlu0 %v65, 56
  %v211 = vpop.permute.xlu0 %210
  %212 = vrot.lane.b32.xlu0 %v66, 56
  %v213 = vpop.permute.xlu0 %212
  %239 = vrot.lane.b32.xlu0 %v44, 84
  %v240 = vpop.permute.xlu0 %239
  %241 = vrot.lane.b32.xlu0 %v45, 84
  %v242 = vpop.permute.xlu0 %241
  %243 = vrot.lane.b32.xlu0 %v46, 84
  %v244 = vpop.permute.xlu0 %243
  %245 = vrot.lane.b32.xlu0 %v47, 84
  %v246 = vpop.permute.xlu0 %245
  %247 = vrot.lane.b32.xlu0 %v48, 84
  %v248 = vpop.permute.xlu0 %247
  %249 = vrot.lane.b32.xlu0 %v49, 84
  %v250 = vpop.permute.xlu0 %249
  %251 = vrot.lane.b32.xlu0 %v50, 84
  %v252 = vpop.permute.xlu0 %251
  %253 = vrot.lane.b32.xlu0 %v51, 84
  %v254 = vpop.permute.xlu0 %253
  %255 = vrot.lane.b32.xlu0 %v52, 84
  %v256 = vpop.permute.xlu0 %255
  %257 = vrot.lane.b32.xlu0 %v53, 84
  %v258 = vpop.permute.xlu0 %257
  %259 = vrot.lane.b32.xlu0 %v54, 84
  %v260 = vpop.permute.xlu0 %259
  %261 = vrot.lane.b32.xlu0 %v55, 84
  %v262 = vpop.permute.xlu0 %261
  %263 = vrot.lane.b32.xlu0 %v56, 84
  %v264 = vpop.permute.xlu0 %263
  %265 = vrot.lane.b32.xlu0 %v57, 84
  %v266 = vpop.permute.xlu0 %265
  %267 = vrot.lane.b32.xlu0 %v58, 84
  %v268 = vpop.permute.xlu0 %267
  %269 = vrot.lane.b32.xlu0 %v59, 84
  %v270 = vpop.permute.xlu0 %269
  %271 = vrot.lane.b32.xlu0 %v60, 84
  %v272 = vpop.permute.xlu0 %271
  %273 = vrot.lane.b32.xlu0 %v61, 84
  %v274 = vpop.permute.xlu0 %273
  %275 = vrot.lane.b32.xlu0 %v62, 84
  %v276 = vpop.permute.xlu0 %275
  %277 = vrot.lane.b32.xlu0 %v63, 84
  %v278 = vpop.permute.xlu0 %277
  %279 = vrot.lane.b32.xlu0 %v64, 84
  %v280 = vpop.permute.xlu0 %279
  %281 = vrot.lane.b32.xlu0 %v65, 84
  %v282 = vpop.permute.xlu0 %281
  %283 = vrot.lane.b32.xlu0 %v66, 84
  %v284 = vpop.permute.xlu0 %283
  %285 = vrot.lane.b32.xlu0 %v67, 84
  %v286 = vpop.permute.xlu0 %285
  %312 = vrot.lane.b32.xlu0 %v45, 112
  %v313 = vpop.permute.xlu0 %312
  %314 = vrot.lane.b32.xlu0 %v46, 112
  %v315 = vpop.permute.xlu0 %314
  %316 = vrot.lane.b32.xlu0 %v47, 112
  %v317 = vpop.permute.xlu0 %316
  %318 = vrot.lane.b32.xlu0 %v48, 112
  %v319 = vpop.permute.xlu0 %318
  %320 = vrot.lane.b32.xlu0 %v49, 112
  %v321 = vpop.permute.xlu0 %320
  %322 = vrot.lane.b32.xlu0 %v50, 112
  %v323 = vpop.permute.xlu0 %322
  %324 = vrot.lane.b32.xlu0 %v51, 112
  %v325 = vpop.permute.xlu0 %324
  %326 = vrot.lane.b32.xlu0 %v52, 112
  %v327 = vpop.permute.xlu0 %326
  %328 = vrot.lane.b32.xlu0 %v53, 112
  %v329 = vpop.permute.xlu0 %328
  %330 = vrot.lane.b32.xlu0 %v54, 112
  %v331 = vpop.permute.xlu0 %330
  %332 = vrot.lane.b32.xlu0 %v55, 112
  %v333 = vpop.permute.xlu0 %332
  %334 = vrot.lane.b32.xlu0 %v56, 112
  %v335 = vpop.permute.xlu0 %334
  %336 = vrot.lane.b32.xlu0 %v57, 112
  %v337 = vpop.permute.xlu0 %336
  %338 = vrot.lane.b32.xlu0 %v58, 112
  %v339 = vpop.permute.xlu0 %338
  %340 = vrot.lane.b32.xlu0 %v59, 112
  %v341 = vpop.permute.xlu0 %340
  %342 = vrot.lane.b32.xlu0 %v60, 112
  %v343 = vpop.permute.xlu0 %342
  %344 = vrot.lane.b32.xlu0 %v61, 112
  %v345 = vpop.permute.xlu0 %344
  %346 = vrot.lane.b32.xlu0 %v62, 112
  %v347 = vpop.permute.xlu0 %346
  %348 = vrot.lane.b32.xlu0 %v63, 112
  %v349 = vpop.permute.xlu0 %348
  %350 = vrot.lane.b32.xlu0 %v64, 112
  %v351 = vpop.permute.xlu0 %350
  %352 = vrot.lane.b32.xlu0 %v65, 112
  %v353 = vpop.permute.xlu0 %352
  %354 = vrot.lane.b32.xlu0 %v66, 112
  %v355 = vpop.permute.xlu0 %354
  %356 = vrot.lane.b32.xlu0 %v67, 112
  %v357 = vpop.permute.xlu0 %356
  %358 = vrot.lane.b32.xlu0 %v68, 112
  %v359 = vpop.permute.xlu0 %358
  %vm384 = vcmask 228352
  %v385 = vsel %vm384, %v41, %v94
  %v386 = vsel %vm384, %v42, %v96
  %v387 = vsel %vm384, %v43, %v98
  %v388 = vsel %vm384, %v44, %v100
  %v389 = vsel %vm384, %v45, %v102
  %v390 = vsel %vm384, %v46, %v104
  %v391 = vsel %vm384, %v47, %v106
  %v392 = vsel %vm384, %v48, %v108
  %v393 = vsel %vm384, %v49, %v110
  %v394 = vsel %vm384, %v50, %v112
  %v395 = vsel %vm384, %v51, %v114
  %v396 = vsel %vm384, %v52, %v116
  %v397 = vsel %vm384, %v53, %v118
  %v398 = vsel %vm384, %v54, %v120
  %v399 = vsel %vm384, %v55, %v122
  %v400 = vsel %vm384, %v56, %v124
  %v401 = vsel %vm384, %v57, %v126
  %v402 = vsel %vm384, %v58, %v128
  %v403 = vsel %vm384, %v59, %v130
  %v404 = vsel %vm384, %v60, %v132
  %v405 = vsel %vm384, %v61, %v134
  %v406 = vsel %vm384, %v62, %v136
  %v407 = vsel %vm384, %v63, %v138
  %v408 = vsel %vm384, %v64, %v140
  %vm409 = vcmask 457728
  %v410 = vsel %vm409, %v385, %v167
  %v411 = vsel %vm409, %v386, %v169
  %v412 = vsel %vm409, %v387, %v171
  %v413 = vsel %vm409, %v388, %v173
  %v414 = vsel %vm409, %v389, %v175
  %v415 = vsel %vm409, %v390, %v177
  %v416 = vsel %vm409, %v391, %v179
  %v417 = vsel %vm409, %v392, %v181
  %v418 = vsel %vm409, %v393, %v183
  %v419 = vsel %vm409, %v394, %v185
  %v420 = vsel %vm409, %v395, %v187
  %v421 = vsel %vm409, %v396, %v189
  %v422 = vsel %vm409, %v397, %v191
  %v423 = vsel %vm409, %v398, %v193
  %v424 = vsel %vm409, %v399, %v195
  %v425 = vsel %vm409, %v400, %v197
  %v426 = vsel %vm409, %v401, %v199
  %v427 = vsel %vm409, %v402, %v201
  %v428 = vsel %vm409, %v403, %v203
  %v429 = vsel %vm409, %v404, %v205
  %v430 = vsel %vm409, %v405, %v207
  %v431 = vsel %vm409, %v406, %v209
  %v432 = vsel %vm409, %v407, %v211
  %v433 = vsel %vm409, %v408, %v213
  %vm434 = vcmask 687104
  %v435 = vsel %vm434, %v410, %v240
  %v436 = vsel %vm434, %v411, %v242
  %v437 = vsel %vm434, %v412, %v244
  %v438 = vsel %vm434, %v413, %v246
  %v439 = vsel %vm434, %v414, %v248
  %v440 = vsel %vm434, %v415, %v250
  %v441 = vsel %vm434, %v416, %v252
  %v442 = vsel %vm434, %v417, %v254
  %v443 = vsel %vm434, %v418, %v256
  %v444 = vsel %vm434, %v419, %v258
  %v445 = vsel %vm434, %v420, %v260
  %v446 = vsel %vm434, %v421, %v262
  %v447 = vsel %vm434, %v422, %v264
  %v448 = vsel %vm434, %v423, %v266
  %v449 = vsel %vm434, %v424, %v268
  %v450 = vsel %vm434, %v425, %v270
  %v451 = vsel %vm434, %v426, %v272
  %v452 = vsel %vm434, %v427, %v274
  %v453 = vsel %vm434, %v428, %v276
  %v454 = vsel %vm434, %v429, %v278
  %v455 = vsel %vm434, %v430, %v280
  %v456 = vsel %vm434, %v431, %v282
  %v457 = vsel %vm434, %v432, %v284
  %v458 = vsel %vm434, %v433, %v286
  %vm459 = vcmask 916480
  %v460 = vsel %vm459, %v435, %v313
  %v461 = vsel %vm459, %v436, %v315
  %v462 = vsel %vm459, %v437, %v317
  %v463 = vsel %vm459, %v438, %v319
  %v464 = vsel %vm459, %v439, %v321
  %v465 = vsel %vm459, %v440, %v323
  %v466 = vsel %vm459, %v441, %v325
  %v467 = vsel %vm459, %v442, %v327
  %v468 = vsel %vm459, %v443, %v329
  %v469 = vsel %vm459, %v444, %v331
  %v470 = vsel %vm459, %v445, %v333
  %v471 = vsel %vm459, %v446, %v335
  %v472 = vsel %vm459, %v447, %v337
  %v473 = vsel %vm459, %v448, %v339
  %v474 = vsel %vm459, %v449, %v341
  %v475 = vsel %vm459, %v450, %v343
  %v476 = vsel %vm459, %v451, %v345
  %v477 = vsel %vm459, %v452, %v347
  %v478 = vsel %vm459, %v453, %v349
  %v479 = vsel %vm459, %v454, %v351
  %v480 = vsel %vm459, %v455, %v353
  %v481 = vsel %vm459, %v456, %v355
  %v482 = vsel %vm459, %v457, %v357
  %v483 = vsel %vm459, %v458, %v359
  %v484 = vpack.c.bf16 %v461, %v460
  %v485 = vpack.c.bf16 %v315, %v313
  %v486 = vpack.c.bf16 %v463, %v462
  %v487 = vpack.c.bf16 %v319, %v317
  %v488 = vpack.c.bf16 %v465, %v464
  %v489 = vpack.c.bf16 %v323, %v321
  %v490 = vpack.c.bf16 %v467, %v466
  %v491 = vpack.c.bf16 %v327, %v325
  %v492 = vpack.c.bf16 %v469, %v468
  %v493 = vpack.c.bf16 %v331, %v329
  %v494 = vpack.c.bf16 %v471, %v470
  %v495 = vpack.c.bf16 %v335, %v333
  %v496 = vpack.c.bf16 %v473, %v472
  %v497 = vpack.c.bf16 %v339, %v337
  %v498 = vpack.c.bf16 %v475, %v474
  %v499 = vpack.c.bf16 %v343, %v341
  %v500 = vpack.c.bf16 %v477, %v476
  %v501 = vpack.c.bf16 %v347, %v345
  %v502 = vpack.c.bf16 %v479, %v478
  %v503 = vpack.c.bf16 %v351, %v349
  %v504 = vpack.c.bf16 %v481, %v480
  %v505 = vpack.c.bf16 %v355, %v353
  %v506 = vpack.c.bf16 %v483, %v482
  %v507 = vpack.c.bf16 %v359, %v357
  %v508 = vld [vmem:[%s1] sm:$0xff]
  %v509 = vld [vmem:[%s1 + $0x8] sm:$0xff]
  %v510 = vld [vmem:[%s1 + $0x10] sm:$0xff]
  %v511 = vld [vmem:[%s1 + $0x18] sm:$0xff]
  %v512 = vld [vmem:[%s1 + $0x20] sm:$0xff]
  %v513 = vld [vmem:[%s1 + $0x28] sm:$0xff]
  %v514 = vld [vmem:[%s1 + $0x30] sm:$0xff]
  %v515 = vld [vmem:[%s1 + $0x38] sm:$0xff]
  %v516 = vld [vmem:[%s1 + $0x40] sm:$0xff]
  %v517 = vld [vmem:[%s1 + $0x48] sm:$0xff]
  %v518 = vld [vmem:[%s1 + $0x50] sm:$0xff]
  %v519 = vld [vmem:[%s1 + $0x58] sm:$0xff]
  %v520 = vld [vmem:[%s1 + $0x60] sm:$0xff]
  %v521 = vld [vmem:[%s1 + $0x68] sm:$0xff]
  %v522 = vld [vmem:[%s1 + $0x70] sm:$0xff]
  %v523 = vld [vmem:[%s1 + $0x78] sm:$0xff]
  %v524 = vld [vmem:[%s1 + $0x80] sm:$0xff]
  %v525 = vld [vmem:[%s1 + $0x88] sm:$0xff]
  %v526 = vld [vmem:[%s1 + $0x90] sm:$0xff]
  %v527 = vld [vmem:[%s1 + $0x98] sm:$0xff]
  %v528 = vld [vmem:[%s1 + $0xa0] sm:$0xff]
  %v529 = vld [vmem:[%s1 + $0xa8] sm:$0xff]
  %v530 = vld [vmem:[%s1 + $0xb0] sm:$0xff]
  %v531 = vld [vmem:[%s1 + $0xb8] sm:$0xff]
  %v532 = vld [vmem:[%s1 + $0xc0] sm:$0xff]
  %v533 = vld [vmem:[%s1 + $0xc8] sm:$0xff]
  %v534 = vld [vmem:[%s1 + $0xd0] sm:$0xff]
  %v535 = vld [vmem:[%s1 + $0xd8] sm:$0xff]
  %v536 = vld [vmem:[%s1 + $0xe0] sm:$0xff]
  %v537 = vld [vmem:[%s1 + $0xe8] sm:$0xff]
  %v538 = vld [vmem:[%s1 + $0xf0] sm:$0xff]
  %v539 = vld [vmem:[%s1 + $0xf8] sm:$0xff]
  %v540 = vld [vmem:[%s1 + $0x100] sm:$0xff]
  %v541 = vld [vmem:[%s1 + $0x108] sm:$0xff]
  %v542 = vld [vmem:[%s1 + $0x110] sm:$0x33]
  %v543 = vld [vmem:[%s1 + $0x118] sm:$0x33]
  %v544 = vld [vmem:[%s2] sm:$0xf]
  %v546 = vlaneseq
  %v547 = vshrl.u32 %v546, 7
  %v548 = vsub.s32 0, %v547
  %v549 = vrot.slane %v544, %v548
  %v550 = vlaneseq
  %v551 = vshrl.u32 %v550, 7
  %v552 = vsub.s32 1, %v551
  %v553 = vrot.slane %v544, %v552
  %v554 = vlaneseq
  %v555 = vshrl.u32 %v554, 7
  %v556 = vsub.s32 2, %v555
  %v557 = vrot.slane %v544, %v556
  %v558 = vlaneseq
  %v559 = vshrl.u32 %v558, 7
  %v560 = vsub.s32 3, %v559
  %v561 = vrot.slane %v544, %v560
  %v602 = vunpack.c.l.b16 %v508
  %v603 = vunpack.c.h.b16 %v508
  %v604 = vunpack.c.l.b16 %v509
  %v605 = vunpack.c.h.b16 %v509
  %v606 = vunpack.c.l.b16 %v510
  %v607 = vunpack.c.h.b16 %v510
  %v608 = vunpack.c.l.b16 %v511
  %v609 = vunpack.c.h.b16 %v511
  %v610 = vunpack.c.l.b16 %v512
  %v611 = vunpack.c.h.b16 %v512
  %v612 = vunpack.c.l.b16 %v513
  %v613 = vunpack.c.h.b16 %v513
  %v614 = vunpack.c.l.b16 %v514
  %v615 = vunpack.c.h.b16 %v514
  %v616 = vunpack.c.l.b16 %v515
  %v617 = vunpack.c.h.b16 %v515
  %v618 = vunpack.c.l.b16 %v516
  %v619 = vunpack.c.h.b16 %v516
  %v620 = vunpack.c.l.b16 %v517
  %v621 = vunpack.c.h.b16 %v517
  %v622 = vunpack.c.l.b16 %v518
  %v623 = vunpack.c.h.b16 %v518
  %v624 = vunpack.c.l.b16 %v519
  %v625 = vunpack.c.h.b16 %v519
  %v626 = vunpack.c.l.b16 %v520
  %v627 = vunpack.c.h.b16 %v520
  %v628 = vunpack.c.l.b16 %v521
  %v629 = vunpack.c.h.b16 %v521
  %v630 = vunpack.c.l.b16 %v522
  %v631 = vunpack.c.h.b16 %v522
  %v632 = vunpack.c.l.b16 %v523
  %v633 = vunpack.c.h.b16 %v523
  %v634 = vunpack.c.l.b16 %v524
  %v635 = vunpack.c.h.b16 %v524
  %v636 = vunpack.c.l.b16 %v525
  %v637 = vunpack.c.h.b16 %v525
  %v638 = vunpack.c.l.b16 %v526
  %v639 = vunpack.c.h.b16 %v526
  %v640 = vunpack.c.l.b16 %v527
  %v641 = vunpack.c.h.b16 %v527
  %v642 = vunpack.c.l.b16 %v528
  %v643 = vunpack.c.h.b16 %v528
  %v644 = vunpack.c.l.b16 %v529
  %v645 = vunpack.c.h.b16 %v529
  %v646 = vunpack.c.l.b16 %v530
  %v647 = vunpack.c.h.b16 %v530
  %v648 = vunpack.c.l.b16 %v531
  %v649 = vunpack.c.h.b16 %v531
  %v650 = vunpack.c.l.b16 %v532
  %v651 = vunpack.c.h.b16 %v532
  %v652 = vunpack.c.l.b16 %v533
  %v653 = vunpack.c.h.b16 %v533
  %v654 = vunpack.c.l.b16 %v534
  %v655 = vunpack.c.h.b16 %v534
  %v656 = vunpack.c.l.b16 %v535
  %v657 = vunpack.c.h.b16 %v535
  %v658 = vunpack.c.l.b16 %v536
  %v659 = vunpack.c.h.b16 %v536
  %v660 = vunpack.c.l.b16 %v537
  %v661 = vunpack.c.h.b16 %v537
  %v662 = vunpack.c.l.b16 %v538
  %v663 = vunpack.c.h.b16 %v538
  %v664 = vunpack.c.l.b16 %v539
  %v665 = vunpack.c.h.b16 %v539
  %v666 = vunpack.c.l.b16 %v540
  %v667 = vunpack.c.h.b16 %v540
  %v668 = vunpack.c.l.b16 %v541
  %v669 = vunpack.c.h.b16 %v541
  %v670 = vunpack.c.l.b16 %v542
  %v671 = vunpack.c.h.b16 %v542
  %v672 = vunpack.c.l.b16 %v543
  %v673 = vunpack.c.h.b16 %v543
  %v674 = vpack.c.b16 %v606, %v602
  %v675 = vpack.c.b16 %v607, %v603
  %v676 = vpack.c.b16 %v608, %v604
  %v677 = vpack.c.b16 %v609, %v605
  %v678 = vpack.c.b16 %v614, %v610
  %v679 = vpack.c.b16 %v615, %v611
  %v680 = vpack.c.b16 %v616, %v612
  %v681 = vpack.c.b16 %v617, %v613
  %v682 = vpack.c.b16 %v622, %v618
  %v683 = vpack.c.b16 %v623, %v619
  %v684 = vpack.c.b16 %v624, %v620
  %v685 = vpack.c.b16 %v625, %v621
  %v686 = vpack.c.b16 %v630, %v626
  %v687 = vpack.c.b16 %v631, %v627
  %v688 = vpack.c.b16 %v632, %v628
  %v689 = vpack.c.b16 %v633, %v629
  %v690 = vpack.c.b16 %v638, %v634
  %v691 = vpack.c.b16 %v639, %v635
  %v692 = vpack.c.b16 %v640, %v636
  %v693 = vpack.c.b16 %v641, %v637
  %v694 = vpack.c.b16 %v646, %v642
  %v695 = vpack.c.b16 %v647, %v643
  %v696 = vpack.c.b16 %v648, %v644
  %v697 = vpack.c.b16 %v649, %v645
  %v698 = vpack.c.b16 %v654, %v650
  %v699 = vpack.c.b16 %v655, %v651
  %v700 = vpack.c.b16 %v656, %v652
  %v701 = vpack.c.b16 %v657, %v653
  %v702 = vpack.c.b16 %v662, %v658
  %v703 = vpack.c.b16 %v663, %v659
  %v704 = vpack.c.b16 %v664, %v660
  %v705 = vpack.c.b16 %v665, %v661
  %v706 = vpack.c.b16 %v670, %v666
  %v707 = vpack.c.b16 %v671, %v667
  %v708 = vpack.c.b16 %v672, %v668
  %v709 = vpack.c.b16 %v673, %v669
  %vm742 = vcmask 97280
  %v744 = vsel %vm742, %v485, 0
  %v747 = vsel %vm742, %v487, 0
  %v750 = vsel %vm742, %v489, 0
  %v753 = vsel %vm742, %v491, 0
  %v756 = vsel %vm742, %v493, 0
  %v759 = vsel %vm742, %v495, 0
  %v762 = vsel %vm742, %v497, 0
  %v765 = vsel %vm742, %v499, 0
  %v768 = vsel %vm742, %v501, 0
  %v771 = vsel %vm742, %v503, 0
  %v774 = vsel %vm742, %v505, 0
  %v777 = vsel %vm742, %v507, 0
  %vm779 = vcmask 1045504
  %v781 = vsel %vm779, %v706, 0
  %v784 = vsel %vm779, %v707, 0
  %v787 = vsel %vm779, %v708, 0
  %v790 = vsel %vm779, %v709, 0
  %792 = vmatprep.subr.bf16.mxu0 %v703
  %793 = vmatpush1.bf16.msra.mxu0 %v702
  %794 = vmatprep.subr.bf16.mxu0 %v699
  %795 = vmatpush1.bf16.msra.mxu0 %v698
  %796 = vmatprep.subr.bf16.mxu0 %v695
  %797 = vmatpush1.bf16.msra.mxu0 %v694
  %798 = vmatprep.subr.bf16.mxu0 %v691
  %799 = vmatpush1.bf16.msra.mxu0 %v690
  %800 = vmatprep.subr.bf16.mxu0 %v687
  %801 = vmatpush1.bf16.msra.mxu0 %v686
  %802 = vmatprep.subr.bf16.mxu0 %v683
  %803 = vmatpush1.bf16.msra.mxu0 %v682
  %804 = vmatprep.subr.bf16.mxu0 %v679
  %805 = vmatpush1.bf16.msra.mxu0 %v678
  %806 = vmatprep.subr.bf16.mxu0 %v675
  %807 = vmatpush1.bf16.msra.mxu0 %v674
  %808 = vmatprep.subr.bf16.mxu0 0
  %809 = vmatpush2.bf16.msra.mxu0 0
  %810 = vmatprep.subr.bf16.mxu0 0
  %811 = vmatpush2.bf16.msra.mxu0 0
  %812 = vmatprep.subr.bf16.mxu0 0
  %813 = vmatpush2.bf16.msra.mxu0 0
  %814 = vmatprep.subr.bf16.mxu0 0
  %815 = vmatpush2.bf16.msra.mxu0 0
  %816 = vmatprep.subr.bf16.mxu0 0
  %817 = vmatpush2.bf16.msra.mxu0 0
  %818 = vmatprep.subr.bf16.mxu0 0
  %819 = vmatpush2.bf16.msra.mxu0 0
  %820 = vmatprep.subr.bf16.mxu0 0
  %821 = vmatpush2.bf16.msra.mxu0 0
  %822 = vmatprep.subr.bf16.mxu0 %v784
  %823 = vmatpush2.bf16.msra.mxu0 %v781
  %824 = vmatprep.mubr.bf16.mxu0 %v744
  %825 = vmatmul.mubr.bf16.gmra.mxu0 %v484
  %v826 = vpop.f32.mrf.mxu0
  %v827 = vadd.f32 %v549, %v826
  %v828 = vpop.f32.mrf.mxu0
  %v829 = vadd.f32 %v553, %v828
  %v830 = vpop.f32.mrf.mxu0
  %v831 = vadd.f32 %v549, %v830
  %v832 = vpop.f32.mrf.mxu0
  %v833 = vadd.f32 %v553, %v832
  %834 = vmatprep.mubr.bf16.mxu0 %v747
  %835 = vmatmul.mubr.bf16.gmra.mxu0 %v486
  %v836 = vpop.f32.mrf.mxu0
  %v837 = vadd.f32 %v549, %v836
  %v838 = vpop.f32.mrf.mxu0
  %v839 = vadd.f32 %v553, %v838
  %v840 = vpop.f32.mrf.mxu0
  %v841 = vadd.f32 %v549, %v840
  %v842 = vpop.f32.mrf.mxu0
  %v843 = vadd.f32 %v553, %v842
  %844 = vmatprep.mubr.bf16.mxu0 %v750
  %845 = vmatmul.mubr.bf16.gmra.mxu0 %v488
  %v846 = vpop.f32.mrf.mxu0
  %v847 = vadd.f32 %v549, %v846
  %v848 = vpop.f32.mrf.mxu0
  %v849 = vadd.f32 %v553, %v848
  %v850 = vpop.f32.mrf.mxu0
  %v851 = vadd.f32 %v549, %v850
  %v852 = vpop.f32.mrf.mxu0
  %v853 = vadd.f32 %v553, %v852
  %854 = vmatprep.mubr.bf16.mxu0 %v753
  %855 = vmatmul.mubr.bf16.gmra.mxu0 %v490
  %v856 = vpop.f32.mrf.mxu0
  %v857 = vadd.f32 %v549, %v856
  %v858 = vpop.f32.mrf.mxu0
  %v859 = vadd.f32 %v553, %v858
  %v860 = vpop.f32.mrf.mxu0
  %v861 = vadd.f32 %v549, %v860
  %v862 = vpop.f32.mrf.mxu0
  %v863 = vadd.f32 %v553, %v862
  %864 = vmatprep.mubr.bf16.mxu0 %v756
  %865 = vmatmul.mubr.bf16.gmra.mxu0 %v492
  %v866 = vpop.f32.mrf.mxu0
  %v867 = vadd.f32 %v549, %v866
  %v868 = vpop.f32.mrf.mxu0
  %v869 = vadd.f32 %v553, %v868
  %v870 = vpop.f32.mrf.mxu0
  %v871 = vadd.f32 %v549, %v870
  %v872 = vpop.f32.mrf.mxu0
  %v873 = vadd.f32 %v553, %v872
  %874 = vmatprep.mubr.bf16.mxu0 %v759
  %875 = vmatmul.mubr.bf16.gmra.mxu0 %v494
  %v876 = vpop.f32.mrf.mxu0
  %v877 = vadd.f32 %v549, %v876
  %v878 = vpop.f32.mrf.mxu0
  %v879 = vadd.f32 %v553, %v878
  %v880 = vpop.f32.mrf.mxu0
  %v881 = vadd.f32 %v549, %v880
  %v882 = vpop.f32.mrf.mxu0
  %v883 = vadd.f32 %v553, %v882
  %884 = vmatprep.mubr.bf16.mxu0 %v762
  %885 = vmatmul.mubr.bf16.gmra.mxu0 %v496
  %v886 = vpop.f32.mrf.mxu0
  %v887 = vadd.f32 %v549, %v886
  %v888 = vpop.f32.mrf.mxu0
  %v889 = vadd.f32 %v553, %v888
  %v890 = vpop.f32.mrf.mxu0
  %v891 = vadd.f32 %v549, %v890
  %v892 = vpop.f32.mrf.mxu0
  %v893 = vadd.f32 %v553, %v892
  %894 = vmatprep.mubr.bf16.mxu0 %v765
  %895 = vmatmul.mubr.bf16.gmra.mxu0 %v498
  %v896 = vpop.f32.mrf.mxu0
  %v897 = vadd.f32 %v549, %v896
  %v898 = vpop.f32.mrf.mxu0
  %v899 = vadd.f32 %v553, %v898
  %v900 = vpop.f32.mrf.mxu0
  %v901 = vadd.f32 %v549, %v900
  %v902 = vpop.f32.mrf.mxu0
  %v903 = vadd.f32 %v553, %v902
  %904 = vmatprep.mubr.bf16.mxu0 %v768
  %905 = vmatmul.mubr.bf16.gmra.mxu0 %v500
  %v906 = vpop.f32.mrf.mxu0
  %v907 = vadd.f32 %v549, %v906
  %v908 = vpop.f32.mrf.mxu0
  %v909 = vadd.f32 %v553, %v908
  %v910 = vpop.f32.mrf.mxu0
  %v911 = vadd.f32 %v549, %v910
  %v912 = vpop.f32.mrf.mxu0
  %v913 = vadd.f32 %v553, %v912
  %914 = vmatprep.mubr.bf16.mxu0 %v771
  %915 = vmatmul.mubr.bf16.gmra.mxu0 %v502
  %v916 = vpop.f32.mrf.mxu0
  %v917 = vadd.f32 %v549, %v916
  %v918 = vpop.f32.mrf.mxu0
  %v919 = vadd.f32 %v553, %v918
  %v920 = vpop.f32.mrf.mxu0
  %v921 = vadd.f32 %v549, %v920
  %v922 = vpop.f32.mrf.mxu0
  %v923 = vadd.f32 %v553, %v922
  %924 = vmatprep.mubr.bf16.mxu0 %v774
  %925 = vmatmul.mubr.bf16.gmra.mxu0 %v504
  %v926 = vpop.f32.mrf.mxu0
  %v927 = vadd.f32 %v549, %v926
  %v928 = vpop.f32.mrf.mxu0
  %v929 = vadd.f32 %v553, %v928
  %v930 = vpop.f32.mrf.mxu0
  %v931 = vadd.f32 %v549, %v930
  %v932 = vpop.f32.mrf.mxu0
  %v933 = vadd.f32 %v553, %v932
  %934 = vmatprep.mubr.bf16.mxu0 %v777
  %935 = vmatmul.mubr.bf16.gmra.mxu0 %v506
  %v936 = vpop.f32.mrf.mxu0
  %v937 = vadd.f32 %v549, %v936
  %v938 = vpop.f32.mrf.mxu0
  %v939 = vadd.f32 %v553, %v938
  %v940 = vpop.f32.mrf.mxu0
  %v941 = vadd.f32 %v549, %v940
  %v942 = vpop.f32.mrf.mxu0
  %v943 = vadd.f32 %v553, %v942
  %944 = vdwg.mxu0
  %945 = vmatprep.subr.bf16.mxu0 %v705
  %946 = vmatpush1.bf16.msra.mxu0 %v704
  %947 = vmatprep.subr.bf16.mxu0 %v701
  %948 = vmatpush1.bf16.msra.mxu0 %v700
  %949 = vmatprep.subr.bf16.mxu0 %v697
  %950 = vmatpush1.bf16.msra.mxu0 %v696
  %951 = vmatprep.subr.bf16.mxu0 %v693
  %952 = vmatpush1.bf16.msra.mxu0 %v692
  %953 = vmatprep.subr.bf16.mxu0 %v689
  %954 = vmatpush1.bf16.msra.mxu0 %v688
  %955 = vmatprep.subr.bf16.mxu0 %v685
  %956 = vmatpush1.bf16.msra.mxu0 %v684
  %957 = vmatprep.subr.bf16.mxu0 %v681
  %958 = vmatpush1.bf16.msra.mxu0 %v680
  %959 = vmatprep.subr.bf16.mxu0 %v677
  %960 = vmatpush1.bf16.msra.mxu0 %v676
  %961 = vmatprep.subr.bf16.mxu0 0
  %962 = vmatpush2.bf16.msra.mxu0 0
  %963 = vmatprep.subr.bf16.mxu0 0
  %964 = vmatpush2.bf16.msra.mxu0 0
  %965 = vmatprep.subr.bf16.mxu0 0
  %966 = vmatpush2.bf16.msra.mxu0 0
  %967 = vmatprep.subr.bf16.mxu0 0
  %968 = vmatpush2.bf16.msra.mxu0 0
  %969 = vmatprep.subr.bf16.mxu0 0
  %970 = vmatpush2.bf16.msra.mxu0 0
  %971 = vmatprep.subr.bf16.mxu0 0
  %972 = vmatpush2.bf16.msra.mxu0 0
  %973 = vmatprep.subr.bf16.mxu0 0
  %974 = vmatpush2.bf16.msra.mxu0 0
  %975 = vmatprep.subr.bf16.mxu0 %v790
  %976 = vmatpush2.bf16.msra.mxu0 %v787
  %977 = vmatprep.mubr.bf16.mxu0 %v744
  %978 = vmatmul.mubr.bf16.gmra.mxu0 %v484
  %v979 = vpop.f32.mrf.mxu0
  %v980 = vadd.f32 %v557, %v979
  %v981 = vpop.f32.mrf.mxu0
  %v982 = vadd.f32 %v561, %v981
  %v983 = vpop.f32.mrf.mxu0
  %v984 = vadd.f32 %v557, %v983
  %v985 = vpop.f32.mrf.mxu0
  %v986 = vadd.f32 %v561, %v985
  %987 = vmatprep.mubr.bf16.mxu0 %v747
  %988 = vmatmul.mubr.bf16.gmra.mxu0 %v486
  %v989 = vpop.f32.mrf.mxu0
  %v990 = vadd.f32 %v557, %v989
  %v991 = vpop.f32.mrf.mxu0
  %v992 = vadd.f32 %v561, %v991
  %v993 = vpop.f32.mrf.mxu0
  %v994 = vadd.f32 %v557, %v993
  %v995 = vpop.f32.mrf.mxu0
  %v996 = vadd.f32 %v561, %v995
  %997 = vmatprep.mubr.bf16.mxu0 %v750
  %998 = vmatmul.mubr.bf16.gmra.mxu0 %v488
  %v999 = vpop.f32.mrf.mxu0
  %v1000 = vadd.f32 %v557, %v999
  %v1001 = vpop.f32.mrf.mxu0
  %v1002 = vadd.f32 %v561, %v1001
  %v1003 = vpop.f32.mrf.mxu0
  %v1004 = vadd.f32 %v557, %v1003
  %v1005 = vpop.f32.mrf.mxu0
  %v1006 = vadd.f32 %v561, %v1005
  %1007 = vmatprep.mubr.bf16.mxu0 %v753
  %1008 = vmatmul.mubr.bf16.gmra.mxu0 %v490
  %v1009 = vpop.f32.mrf.mxu0
  %v1010 = vadd.f32 %v557, %v1009
  %v1011 = vpop.f32.mrf.mxu0
  %v1012 = vadd.f32 %v561, %v1011
  %v1013 = vpop.f32.mrf.mxu0
  %v1014 = vadd.f32 %v557, %v1013
  %v1015 = vpop.f32.mrf.mxu0
  %v1016 = vadd.f32 %v561, %v1015
  %1017 = vmatprep.mubr.bf16.mxu0 %v756
  %1018 = vmatmul.mubr.bf16.gmra.mxu0 %v492
  %v1019 = vpop.f32.mrf.mxu0
  %v1020 = vadd.f32 %v557, %v1019
  %v1021 = vpop.f32.mrf.mxu0
  %v1022 = vadd.f32 %v561, %v1021
  %v1023 = vpop.f32.mrf.mxu0
  %v1024 = vadd.f32 %v557, %v1023
  %v1025 = vpop.f32.mrf.mxu0
  %v1026 = vadd.f32 %v561, %v1025
  %1027 = vmatprep.mubr.bf16.mxu0 %v759
  %1028 = vmatmul.mubr.bf16.gmra.mxu0 %v494
  %v1029 = vpop.f32.mrf.mxu0
  %v1030 = vadd.f32 %v557, %v1029
  %v1031 = vpop.f32.mrf.mxu0
  %v1032 = vadd.f32 %v561, %v1031
  %v1033 = vpop.f32.mrf.mxu0
  %v1034 = vadd.f32 %v557, %v1033
  %v1035 = vpop.f32.mrf.mxu0
  %v1036 = vadd.f32 %v561, %v1035
  %1037 = vmatprep.mubr.bf16.mxu0 %v762
  %1038 = vmatmul.mubr.bf16.gmra.mxu0 %v496
  %v1039 = vpop.f32.mrf.mxu0
  %v1040 = vadd.f32 %v557, %v1039
  %v1041 = vpop.f32.mrf.mxu0
  %v1042 = vadd.f32 %v561, %v1041
  %v1043 = vpop.f32.mrf.mxu0
  %v1044 = vadd.f32 %v557, %v1043
  %v1045 = vpop.f32.mrf.mxu0
  %v1046 = vadd.f32 %v561, %v1045
  %1047 = vmatprep.mubr.bf16.mxu0 %v765
  %1048 = vmatmul.mubr.bf16.gmra.mxu0 %v498
  %v1049 = vpop.f32.mrf.mxu0
  %v1050 = vadd.f32 %v557, %v1049
  %v1051 = vpop.f32.mrf.mxu0
  %v1052 = vadd.f32 %v561, %v1051
  %v1053 = vpop.f32.mrf.mxu0
  %v1054 = vadd.f32 %v557, %v1053
  %v1055 = vpop.f32.mrf.mxu0
  %v1056 = vadd.f32 %v561, %v1055
  %1057 = vmatprep.mubr.bf16.mxu0 %v768
  %1058 = vmatmul.mubr.bf16.gmra.mxu0 %v500
  %v1059 = vpop.f32.mrf.mxu0
  %v1060 = vadd.f32 %v557, %v1059
  %v1061 = vpop.f32.mrf.mxu0
  %v1062 = vadd.f32 %v561, %v1061
  %v1063 = vpop.f32.mrf.mxu0
  %v1064 = vadd.f32 %v557, %v1063
  %v1065 = vpop.f32.mrf.mxu0
  %v1066 = vadd.f32 %v561, %v1065
  %1067 = vmatprep.mubr.bf16.mxu0 %v771
  %1068 = vmatmul.mubr.bf16.gmra.mxu0 %v502
  %v1069 = vpop.f32.mrf.mxu0
  %v1070 = vadd.f32 %v557, %v1069
  %v1071 = vpop.f32.mrf.mxu0
  %v1072 = vadd.f32 %v561, %v1071
  %v1073 = vpop.f32.mrf.mxu0
  %v1074 = vadd.f32 %v557, %v1073
  %v1075 = vpop.f32.mrf.mxu0
  %v1076 = vadd.f32 %v561, %v1075
  %1077 = vmatprep.mubr.bf16.mxu0 %v774
  %1078 = vmatmul.mubr.bf16.gmra.mxu0 %v504
  %v1079 = vpop.f32.mrf.mxu0
  %v1080 = vadd.f32 %v557, %v1079
  %v1081 = vpop.f32.mrf.mxu0
  %v1082 = vadd.f32 %v561, %v1081
  %v1083 = vpop.f32.mrf.mxu0
  %v1084 = vadd.f32 %v557, %v1083
  %v1085 = vpop.f32.mrf.mxu0
  %v1086 = vadd.f32 %v561, %v1085
  %1087 = vmatprep.mubr.bf16.mxu0 %v777
  %1088 = vmatmul.mubr.bf16.gmra.mxu0 %v506
  %v1089 = vpop.f32.mrf.mxu0
  %v1090 = vadd.f32 %v557, %v1089
  %v1091 = vpop.f32.mrf.mxu0
  %v1092 = vadd.f32 %v561, %v1091
  %v1093 = vpop.f32.mrf.mxu0
  %v1094 = vadd.f32 %v557, %v1093
  %v1095 = vpop.f32.mrf.mxu0
  %v1096 = vadd.f32 %v561, %v1095
  %1097 = vdwg.mxu0
  %v1098 = vmax.f32 %v827, 0.0
  %v1099 = vmax.f32 %v829, 0.0
  %v1100 = vmax.f32 %v980, 0.0
  %v1101 = vmax.f32 %v982, 0.0
  %v1102 = vmax.f32 %v831, 0.0
  %v1103 = vmax.f32 %v833, 0.0
  %v1104 = vmax.f32 %v984, 0.0
  %v1105 = vmax.f32 %v986, 0.0
  %v1106 = vmax.f32 %v837, 0.0
  %v1107 = vmax.f32 %v839, 0.0
  %v1108 = vmax.f32 %v990, 0.0
  %v1109 = vmax.f32 %v992, 0.0
  %v1110 = vmax.f32 %v841, 0.0
  %v1111 = vmax.f32 %v843, 0.0
  %v1112 = vmax.f32 %v994, 0.0
  %v1113 = vmax.f32 %v996, 0.0
  %v1114 = vmax.f32 %v847, 0.0
  %v1115 = vmax.f32 %v849, 0.0
  %v1116 = vmax.f32 %v1000, 0.0
  %v1117 = vmax.f32 %v1002, 0.0
  %v1118 = vmax.f32 %v851, 0.0
  %v1119 = vmax.f32 %v853, 0.0
  %v1120 = vmax.f32 %v1004, 0.0
  %v1121 = vmax.f32 %v1006, 0.0
  %v1122 = vmax.f32 %v857, 0.0
  %v1123 = vmax.f32 %v859, 0.0
  %v1124 = vmax.f32 %v1010, 0.0
  %v1125 = vmax.f32 %v1012, 0.0
  %v1126 = vmax.f32 %v861, 0.0
  %v1127 = vmax.f32 %v863, 0.0
  %v1128 = vmax.f32 %v1014, 0.0
  %v1129 = vmax.f32 %v1016, 0.0
  %v1130 = vmax.f32 %v867, 0.0
  %v1131 = vmax.f32 %v869, 0.0
  %v1132 = vmax.f32 %v1020, 0.0
  %v1133 = vmax.f32 %v1022, 0.0
  %v1134 = vmax.f32 %v871, 0.0
  %v1135 = vmax.f32 %v873, 0.0
  %v1136 = vmax.f32 %v1024, 0.0
  %v1137 = vmax.f32 %v1026, 0.0
  %v1138 = vmax.f32 %v877, 0.0
  %v1139 = vmax.f32 %v879, 0.0
  %v1140 = vmax.f32 %v1030, 0.0
  %v1141 = vmax.f32 %v1032, 0.0
  %v1142 = vmax.f32 %v881, 0.0
  %v1143 = vmax.f32 %v883, 0.0
  %v1144 = vmax.f32 %v1034, 0.0
  %v1145 = vmax.f32 %v1036, 0.0
  %v1146 = vmax.f32 %v887, 0.0
  %v1147 = vmax.f32 %v889, 0.0
  %v1148 = vmax.f32 %v1040, 0.0
  %v1149 = vmax.f32 %v1042, 0.0
  %v1150 = vmax.f32 %v891, 0.0
  %v1151 = vmax.f32 %v893, 0.0
  %v1152 = vmax.f32 %v1044, 0.0
  %v1153 = vmax.f32 %v1046, 0.0
  %v1154 = vmax.f32 %v897, 0.0
  %v1155 = vmax.f32 %v899, 0.0
  %v1156 = vmax.f32 %v1050, 0.0
  %v1157 = vmax.f32 %v1052, 0.0
  %v1158 = vmax.f32 %v901, 0.0
  %v1159 = vmax.f32 %v903, 0.0
  %v1160 = vmax.f32 %v1054, 0.0
  %v1161 = vmax.f32 %v1056, 0.0
  %v1162 = vmax.f32 %v907, 0.0
  %v1163 = vmax.f32 %v909, 0.0
  %v1164 = vmax.f32 %v1060, 0.0
  %v1165 = vmax.f32 %v1062, 0.0
  %v1166 = vmax.f32 %v911, 0.0
  %v1167 = vmax.f32 %v913, 0.0
  %v1168 = vmax.f32 %v1064, 0.0
  %v1169 = vmax.f32 %v1066, 0.0
  %v1170 = vmax.f32 %v917, 0.0
  %v1171 = vmax.f32 %v919, 0.0
  %v1172 = vmax.f32 %v1070, 0.0
  %v1173 = vmax.f32 %v1072, 0.0
  %v1174 = vmax.f32 %v921, 0.0
  %v1175 = vmax.f32 %v923, 0.0
  %v1176 = vmax.f32 %v1074, 0.0
  %v1177 = vmax.f32 %v1076, 0.0
  %v1178 = vmax.f32 %v927, 0.0
  %v1179 = vmax.f32 %v929, 0.0
  %v1180 = vmax.f32 %v1080, 0.0
  %v1181 = vmax.f32 %v1082, 0.0
  %v1182 = vmax.f32 %v931, 0.0
  %v1183 = vmax.f32 %v933, 0.0
  %v1184 = vmax.f32 %v1084, 0.0
  %v1185 = vmax.f32 %v1086, 0.0
  %v1186 = vmax.f32 %v937, 0.0
  %v1187 = vmax.f32 %v939, 0.0
  %v1188 = vmax.f32 %v1090, 0.0
  %v1189 = vmax.f32 %v1092, 0.0
  %v1190 = vmax.f32 %v941, 0.0
  %v1191 = vmax.f32 %v943, 0.0
  %v1192 = vmax.f32 %v1094, 0.0
  %v1193 = vmax.f32 %v1096, 0.0
  %1266 = vrot.lane.b32.xlu0 %v1099, 16
  %v1267 = vpop.permute.xlu0 %1266
  %1268 = vrot.lane.b32.xlu0 %v1100, 16
  %v1269 = vpop.permute.xlu0 %1268
  %1270 = vrot.lane.b32.xlu0 %v1101, 16
  %v1271 = vpop.permute.xlu0 %1270
  %1272 = vrot.lane.b32.xlu0 %v1103, 16
  %v1273 = vpop.permute.xlu0 %1272
  %1274 = vrot.lane.b32.xlu0 %v1104, 16
  %v1275 = vpop.permute.xlu0 %1274
  %1276 = vrot.lane.b32.xlu0 %v1105, 16
  %v1277 = vpop.permute.xlu0 %1276
  %1278 = vrot.lane.b32.xlu0 %v1107, 16
  %v1279 = vpop.permute.xlu0 %1278
  %1280 = vrot.lane.b32.xlu0 %v1108, 16
  %v1281 = vpop.permute.xlu0 %1280
  %1282 = vrot.lane.b32.xlu0 %v1109, 16
  %v1283 = vpop.permute.xlu0 %1282
  %1284 = vrot.lane.b32.xlu0 %v1111, 16
  %v1285 = vpop.permute.xlu0 %1284
  %1286 = vrot.lane.b32.xlu0 %v1112, 16
  %v1287 = vpop.permute.xlu0 %1286
  %1288 = vrot.lane.b32.xlu0 %v1113, 16
  %v1289 = vpop.permute.xlu0 %1288
  %1290 = vrot.lane.b32.xlu0 %v1115, 16
  %v1291 = vpop.permute.xlu0 %1290
  %1292 = vrot.lane.b32.xlu0 %v1116, 16
  %v1293 = vpop.permute.xlu0 %1292
  %1294 = vrot.lane.b32.xlu0 %v1117, 16
  %v1295 = vpop.permute.xlu0 %1294
  %1296 = vrot.lane.b32.xlu0 %v1119, 16
  %v1297 = vpop.permute.xlu0 %1296
  %1298 = vrot.lane.b32.xlu0 %v1120, 16
  %v1299 = vpop.permute.xlu0 %1298
  %1300 = vrot.lane.b32.xlu0 %v1121, 16
  %v1301 = vpop.permute.xlu0 %1300
  %1302 = vrot.lane.b32.xlu0 %v1123, 16
  %v1303 = vpop.permute.xlu0 %1302
  %1304 = vrot.lane.b32.xlu0 %v1124, 16
  %v1305 = vpop.permute.xlu0 %1304
  %1306 = vrot.lane.b32.xlu0 %v1125, 16
  %v1307 = vpop.permute.xlu0 %1306
  %1308 = vrot.lane.b32.xlu0 %v1127, 16
  %v1309 = vpop.permute.xlu0 %1308
  %1310 = vrot.lane.b32.xlu0 %v1128, 16
  %v1311 = vpop.permute.xlu0 %1310
  %1312 = vrot.lane.b32.xlu0 %v1129, 16
  %v1313 = vpop.permute.xlu0 %1312
  %1314 = vrot.lane.b32.xlu0 %v1131, 16
  %v1315 = vpop.permute.xlu0 %1314
  %1316 = vrot.lane.b32.xlu0 %v1132, 16
  %v1317 = vpop.permute.xlu0 %1316
  %1318 = vrot.lane.b32.xlu0 %v1133, 16
  %v1319 = vpop.permute.xlu0 %1318
  %1320 = vrot.lane.b32.xlu0 %v1135, 16
  %v1321 = vpop.permute.xlu0 %1320
  %1322 = vrot.lane.b32.xlu0 %v1136, 16
  %v1323 = vpop.permute.xlu0 %1322
  %1324 = vrot.lane.b32.xlu0 %v1137, 16
  %v1325 = vpop.permute.xlu0 %1324
  %1326 = vrot.lane.b32.xlu0 %v1139, 16
  %v1327 = vpop.permute.xlu0 %1326
  %1328 = vrot.lane.b32.xlu0 %v1140, 16
  %v1329 = vpop.permute.xlu0 %1328
  %1330 = vrot.lane.b32.xlu0 %v1141, 16
  %v1331 = vpop.permute.xlu0 %1330
  %1332 = vrot.lane.b32.xlu0 %v1143, 16
  %v1333 = vpop.permute.xlu0 %1332
  %1334 = vrot.lane.b32.xlu0 %v1144, 16
  %v1335 = vpop.permute.xlu0 %1334
  %1336 = vrot.lane.b32.xlu0 %v1145, 16
  %v1337 = vpop.permute.xlu0 %1336
  %1338 = vrot.lane.b32.xlu0 %v1147, 16
  %v1339 = vpop.permute.xlu0 %1338
  %1340 = vrot.lane.b32.xlu0 %v1148, 16
  %v1341 = vpop.permute.xlu0 %1340
  %1342 = vrot.lane.b32.xlu0 %v1149, 16
  %v1343 = vpop.permute.xlu0 %1342
  %1344 = vrot.lane.b32.xlu0 %v1151, 16
  %v1345 = vpop.permute.xlu0 %1344
  %1346 = vrot.lane.b32.xlu0 %v1152, 16
  %v1347 = vpop.permute.xlu0 %1346
  %1348 = vrot.lane.b32.xlu0 %v1153, 16
  %v1349 = vpop.permute.xlu0 %1348
  %1350 = vrot.lane.b32.xlu0 %v1155, 16
  %v1351 = vpop.permute.xlu0 %1350
  %1352 = vrot.lane.b32.xlu0 %v1156, 16
  %v1353 = vpop.permute.xlu0 %1352
  %1354 = vrot.lane.b32.xlu0 %v1157, 16
  %v1355 = vpop.permute.xlu0 %1354
  %1356 = vrot.lane.b32.xlu0 %v1159, 16
  %v1357 = vpop.permute.xlu0 %1356
  %1358 = vrot.lane.b32.xlu0 %v1160, 16
  %v1359 = vpop.permute.xlu0 %1358
  %1360 = vrot.lane.b32.xlu0 %v1161, 16
  %v1361 = vpop.permute.xlu0 %1360
  %1362 = vrot.lane.b32.xlu0 %v1163, 16
  %v1363 = vpop.permute.xlu0 %1362
  %1364 = vrot.lane.b32.xlu0 %v1164, 16
  %v1365 = vpop.permute.xlu0 %1364
  %1366 = vrot.lane.b32.xlu0 %v1165, 16
  %v1367 = vpop.permute.xlu0 %1366
  %1368 = vrot.lane.b32.xlu0 %v1167, 16
  %v1369 = vpop.permute.xlu0 %1368
  %1370 = vrot.lane.b32.xlu0 %v1168, 16
  %v1371 = vpop.permute.xlu0 %1370
  %1372 = vrot.lane.b32.xlu0 %v1169, 16
  %v1373 = vpop.permute.xlu0 %1372
  %1374 = vrot.lane.b32.xlu0 %v1171, 16
  %v1375 = vpop.permute.xlu0 %1374
  %1376 = vrot.lane.b32.xlu0 %v1172, 16
  %v1377 = vpop.permute.xlu0 %1376
  %1378 = vrot.lane.b32.xlu0 %v1173, 16
  %v1379 = vpop.permute.xlu0 %1378
  %1380 = vrot.lane.b32.xlu0 %v1175, 16
  %v1381 = vpop.permute.xlu0 %1380
  %1382 = vrot.lane.b32.xlu0 %v1176, 16
  %v1383 = vpop.permute.xlu0 %1382
  %1384 = vrot.lane.b32.xlu0 %v1177, 16
  %v1385 = vpop.permute.xlu0 %1384
  %1386 = vrot.lane.b32.xlu0 %v1179, 16
  %v1387 = vpop.permute.xlu0 %1386
  %1388 = vrot.lane.b32.xlu0 %v1180, 16
  %v1389 = vpop.permute.xlu0 %1388
  %1390 = vrot.lane.b32.xlu0 %v1181, 16
  %v1391 = vpop.permute.xlu0 %1390
  %1392 = vrot.lane.b32.xlu0 %v1183, 16
  %v1393 = vpop.permute.xlu0 %1392
  %1394 = vrot.lane.b32.xlu0 %v1184, 16
  %v1395 = vpop.permute.xlu0 %1394
  %1396 = vrot.lane.b32.xlu0 %v1185, 16
  %v1397 = vpop.permute.xlu0 %1396
  %1398 = vrot.lane.b32.xlu0 %v1187, 16
  %v1399 = vpop.permute.xlu0 %1398
  %1400 = vrot.lane.b32.xlu0 %v1188, 16
  %v1401 = vpop.permute.xlu0 %1400
  %1402 = vrot.lane.b32.xlu0 %v1189, 16
  %v1403 = vpop.permute.xlu0 %1402
  %1404 = vrot.lane.b32.xlu0 %v1191, 16
  %v1405 = vpop.permute.xlu0 %1404
  %1406 = vrot.lane.b32.xlu0 %v1192, 16
  %v1407 = vpop.permute.xlu0 %1406
  %1408 = vrot.lane.b32.xlu0 %v1193, 16
  %v1409 = vpop.permute.xlu0 %1408
  %vm1410 = vcmask 130048
  %v1411 = vsel %vm1410, %v1267, %v1269
  %v1412 = vsel %vm1410, %v1269, %v1271
  %v1413 = vsel %vm1410, %v1273, %v1275
  %v1414 = vsel %vm1410, %v1275, %v1277
  %v1415 = vsel %vm1410, %v1279, %v1281
  %v1416 = vsel %vm1410, %v1281, %v1283
  %v1417 = vsel %vm1410, %v1285, %v1287
  %v1418 = vsel %vm1410, %v1287, %v1289
  %v1419 = vsel %vm1410, %v1291, %v1293
  %v1420 = vsel %vm1410, %v1293, %v1295
  %v1421 = vsel %vm1410, %v1297, %v1299
  %v1422 = vsel %vm1410, %v1299, %v1301
  %v1423 = vsel %vm1410, %v1303, %v1305
  %v1424 = vsel %vm1410, %v1305, %v1307
  %v1425 = vsel %vm1410, %v1309, %v1311
  %v1426 = vsel %vm1410, %v1311, %v1313
  %v1427 = vsel %vm1410, %v1315, %v1317
  %v1428 = vsel %vm1410, %v1317, %v1319
  %v1429 = vsel %vm1410, %v1321, %v1323
  %v1430 = vsel %vm1410, %v1323, %v1325
  %v1431 = vsel %vm1410, %v1327, %v1329
  %v1432 = vsel %vm1410, %v1329, %v1331
  %v1433 = vsel %vm1410, %v1333, %v1335
  %v1434 = vsel %vm1410, %v1335, %v1337
  %v1435 = vsel %vm1410, %v1339, %v1341
  %v1436 = vsel %vm1410, %v1341, %v1343
  %v1437 = vsel %vm1410, %v1345, %v1347
  %v1438 = vsel %vm1410, %v1347, %v1349
  %v1439 = vsel %vm1410, %v1351, %v1353
  %v1440 = vsel %vm1410, %v1353, %v1355
  %v1441 = vsel %vm1410, %v1357, %v1359
  %v1442 = vsel %vm1410, %v1359, %v1361
  %v1443 = vsel %vm1410, %v1363, %v1365
  %v1444 = vsel %vm1410, %v1365, %v1367
  %v1445 = vsel %vm1410, %v1369, %v1371
  %v1446 = vsel %vm1410, %v1371, %v1373
  %v1447 = vsel %vm1410, %v1375, %v1377
  %v1448 = vsel %vm1410, %v1377, %v1379
  %v1449 = vsel %vm1410, %v1381, %v1383
  %v1450 = vsel %vm1410, %v1383, %v1385
  %v1451 = vsel %vm1410, %v1387, %v1389
  %v1452 = vsel %vm1410, %v1389, %v1391
  %v1453 = vsel %vm1410, %v1393, %v1395
  %v1454 = vsel %vm1410, %v1395, %v1397
  %v1455 = vsel %vm1410, %v1399, %v1401
  %v1456 = vsel %vm1410, %v1401, %v1403
  %v1457 = vsel %vm1410, %v1405, %v1407
  %v1458 = vsel %vm1410, %v1407, %v1409
  %v1507 = vmax.f32 %v1098, %v1411
  %v1508 = vmax.f32 %v1099, %v1412
  %v1509 = vmax.f32 %v1102, %v1413
  %v1510 = vmax.f32 %v1103, %v1414
  %v1511 = vmax.f32 %v1106, %v1415
  %v1512 = vmax.f32 %v1107, %v1416
  %v1513 = vmax.f32 %v1110, %v1417
  %v1514 = vmax.f32 %v1111, %v1418
  %v1515 = vmax.f32 %v1114, %v1419
  %v1516 = vmax.f32 %v1115, %v1420
  %v1517 = vmax.f32 %v1118, %v1421
  %v1518 = vmax.f32 %v1119, %v1422
  %v1519 = vmax.f32 %v1122, %v1423
  %v1520 = vmax.f32 %v1123, %v1424
  %v1521 = vmax.f32 %v1126, %v1425
  %v1522 = vmax.f32 %v1127, %v1426
  %v1523 = vmax.f32 %v1130, %v1427
  %v1524 = vmax.f32 %v1131, %v1428
  %v1525 = vmax.f32 %v1134, %v1429
  %v1526 = vmax.f32 %v1135, %v1430
  %v1527 = vmax.f32 %v1138, %v1431
  %v1528 = vmax.f32 %v1139, %v1432
  %v1529 = vmax.f32 %v1142, %v1433
  %v1530 = vmax.f32 %v1143, %v1434
  %v1531 = vmax.f32 %v1146, %v1435
  %v1532 = vmax.f32 %v1147, %v1436
  %v1533 = vmax.f32 %v1150, %v1437
  %v1534 = vmax.f32 %v1151, %v1438
  %v1535 = vmax.f32 %v1154, %v1439
  %v1536 = vmax.f32 %v1155, %v1440
  %v1537 = vmax.f32 %v1158, %v1441
  %v1538 = vmax.f32 %v1159, %v1442
  %v1539 = vmax.f32 %v1162, %v1443
  %v1540 = vmax.f32 %v1163, %v1444
  %v1541 = vmax.f32 %v1166, %v1445
  %v1542 = vmax.f32 %v1167, %v1446
  %v1543 = vmax.f32 %v1170, %v1447
  %v1544 = vmax.f32 %v1171, %v1448
  %v1545 = vmax.f32 %v1174, %v1449
  %v1546 = vmax.f32 %v1175, %v1450
  %v1547 = vmax.f32 %v1178, %v1451
  %v1548 = vmax.f32 %v1179, %v1452
  %v1549 = vmax.f32 %v1182, %v1453
  %v1550 = vmax.f32 %v1183, %v1454
  %v1551 = vmax.f32 %v1186, %v1455
  %v1552 = vmax.f32 %v1187, %v1456
  %v1553 = vmax.f32 %v1190, %v1457
  %v1554 = vmax.f32 %v1191, %v1458
  %v1555 = vmax.f32 %v1507, %v1509
  %v1556 = vmax.f32 %v1508, %v1510
  %v1557 = vmax.f32 %v1511, %v1513
  %v1558 = vmax.f32 %v1512, %v1514
  %v1559 = vmax.f32 %v1515, %v1517
  %v1560 = vmax.f32 %v1516, %v1518
  %v1561 = vmax.f32 %v1519, %v1521
  %v1562 = vmax.f32 %v1520, %v1522
  %v1563 = vmax.f32 %v1523, %v1525
  %v1564 = vmax.f32 %v1524, %v1526
  %v1565 = vmax.f32 %v1527, %v1529
  %v1566 = vmax.f32 %v1528, %v1530
  %v1567 = vmax.f32 %v1531, %v1533
  %v1568 = vmax.f32 %v1532, %v1534
  %v1569 = vmax.f32 %v1535, %v1537
  %v1570 = vmax.f32 %v1536, %v1538
  %v1571 = vmax.f32 %v1539, %v1541
  %v1572 = vmax.f32 %v1540, %v1542
  %v1573 = vmax.f32 %v1543, %v1545
  %v1574 = vmax.f32 %v1544, %v1546
  %v1575 = vmax.f32 %v1547, %v1549
  %v1576 = vmax.f32 %v1548, %v1550
  %v1577 = vmax.f32 %v1551, %v1553
  %v1578 = vmax.f32 %v1552, %v1554
  %1599 = vrot.lane.b32.xlu0 %v1557, 112
  %v1600 = vpop.permute.xlu0 %1599
  %1601 = vrot.lane.b32.xlu0 %v1558, 112
  %v1602 = vpop.permute.xlu0 %1601
  %1603 = vrot.lane.b32.xlu0 %v1559, 112
  %v1604 = vpop.permute.xlu0 %1603
  %1605 = vrot.lane.b32.xlu0 %v1560, 112
  %v1606 = vpop.permute.xlu0 %1605
  %1607 = vrot.lane.b32.xlu0 %v1561, 112
  %v1608 = vpop.permute.xlu0 %1607
  %1609 = vrot.lane.b32.xlu0 %v1562, 112
  %v1610 = vpop.permute.xlu0 %1609
  %1611 = vrot.lane.b32.xlu0 %v1563, 112
  %v1612 = vpop.permute.xlu0 %1611
  %1613 = vrot.lane.b32.xlu0 %v1564, 112
  %v1614 = vpop.permute.xlu0 %1613
  %1615 = vrot.lane.b32.xlu0 %v1565, 112
  %v1616 = vpop.permute.xlu0 %1615
  %1617 = vrot.lane.b32.xlu0 %v1566, 112
  %v1618 = vpop.permute.xlu0 %1617
  %1619 = vrot.lane.b32.xlu0 %v1567, 112
  %v1620 = vpop.permute.xlu0 %1619
  %1621 = vrot.lane.b32.xlu0 %v1568, 112
  %v1622 = vpop.permute.xlu0 %1621
  %1623 = vrot.lane.b32.xlu0 %v1569, 112
  %v1624 = vpop.permute.xlu0 %1623
  %1625 = vrot.lane.b32.xlu0 %v1570, 112
  %v1626 = vpop.permute.xlu0 %1625
  %1627 = vrot.lane.b32.xlu0 %v1571, 112
  %v1628 = vpop.permute.xlu0 %1627
  %1629 = vrot.lane.b32.xlu0 %v1572, 112
  %v1630 = vpop.permute.xlu0 %1629
  %1631 = vrot.lane.b32.xlu0 %v1573, 112
  %v1632 = vpop.permute.xlu0 %1631
  %1633 = vrot.lane.b32.xlu0 %v1574, 112
  %v1634 = vpop.permute.xlu0 %1633
  %1635 = vrot.lane.b32.xlu0 %v1575, 112
  %v1636 = vpop.permute.xlu0 %1635
  %1637 = vrot.lane.b32.xlu0 %v1576, 112
  %v1638 = vpop.permute.xlu0 %1637
  %v1639 = vsel %vm459, %v1600, %v1602
  %v1640 = vsel %vm459, %v1604, %v1606
  %v1641 = vsel %vm459, %v1608, %v1610
  %v1642 = vsel %vm459, %v1612, %v1614
  %v1643 = vsel %vm459, %v1616, %v1618
  %v1644 = vsel %vm459, %v1620, %v1622
  %v1645 = vsel %vm459, %v1624, %v1626
  %v1646 = vsel %vm459, %v1628, %v1630
  %v1647 = vsel %vm459, %v1632, %v1634
  %v1648 = vsel %vm459, %v1636, %v1638
  %1681 = vrot.lane.b32.xlu0 %v1559, 96
  %v1682 = vpop.permute.xlu0 %1681
  %1683 = vrot.lane.b32.xlu0 %v1560, 96
  %v1684 = vpop.permute.xlu0 %1683
  %1685 = vrot.lane.b32.xlu0 %v1561, 96
  %v1686 = vpop.permute.xlu0 %1685
  %1687 = vrot.lane.b32.xlu0 %v1562, 96
  %v1688 = vpop.permute.xlu0 %1687
  %1689 = vrot.lane.b32.xlu0 %v1563, 96
  %v1690 = vpop.permute.xlu0 %1689
  %1691 = vrot.lane.b32.xlu0 %v1564, 96
  %v1692 = vpop.permute.xlu0 %1691
  %1693 = vrot.lane.b32.xlu0 %v1565, 96
  %v1694 = vpop.permute.xlu0 %1693
  %1695 = vrot.lane.b32.xlu0 %v1566, 96
  %v1696 = vpop.permute.xlu0 %1695
  %1697 = vrot.lane.b32.xlu0 %v1567, 96
  %v1698 = vpop.permute.xlu0 %1697
  %1699 = vrot.lane.b32.xlu0 %v1568, 96
  %v1700 = vpop.permute.xlu0 %1699
  %1701 = vrot.lane.b32.xlu0 %v1569, 96
  %v1702 = vpop.permute.xlu0 %1701
  %1703 = vrot.lane.b32.xlu0 %v1570, 96
  %v1704 = vpop.permute.xlu0 %1703
  %1705 = vrot.lane.b32.xlu0 %v1571, 96
  %v1706 = vpop.permute.xlu0 %1705
  %1707 = vrot.lane.b32.xlu0 %v1572, 96
  %v1708 = vpop.permute.xlu0 %1707
  %1709 = vrot.lane.b32.xlu0 %v1573, 96
  %v1710 = vpop.permute.xlu0 %1709
  %1711 = vrot.lane.b32.xlu0 %v1574, 96
  %v1712 = vpop.permute.xlu0 %1711
  %1713 = vrot.lane.b32.xlu0 %v1575, 96
  %v1714 = vpop.permute.xlu0 %1713
  %1715 = vrot.lane.b32.xlu0 %v1576, 96
  %v1716 = vpop.permute.xlu0 %1715
  %1717 = vrot.lane.b32.xlu0 %v1577, 96
  %v1718 = vpop.permute.xlu0 %1717
  %1719 = vrot.lane.b32.xlu0 %v1578, 96
  %v1720 = vpop.permute.xlu0 %1719
  %vm1721 = vcmask 785408
  %v1722 = vsel %vm1721, %v1682, %v1684
  %v1723 = vsel %vm1721, %v1686, %v1688
  %v1724 = vsel %vm1721, %v1690, %v1692
  %v1725 = vsel %vm1721, %v1694, %v1696
  %v1726 = vsel %vm1721, %v1698, %v1700
  %v1727 = vsel %vm1721, %v1702, %v1704
  %v1728 = vsel %vm1721, %v1706, %v1708
  %v1729 = vsel %vm1721, %v1710, %v1712
  %v1730 = vsel %vm1721, %v1714, %v1716
  %v1731 = vsel %vm1721, %v1718, %v1720
  %v1762 = vsel %vm459, %v1556, %v1600
  %v1763 = vsel %vm459, %v1558, %v1604
  %v1764 = vsel %vm459, %v1560, %v1608
  %v1765 = vsel %vm459, %v1562, %v1612
  %v1766 = vsel %vm459, %v1564, %v1616
  %v1767 = vsel %vm459, %v1566, %v1620
  %v1768 = vsel %vm459, %v1568, %v1624
  %v1769 = vsel %vm459, %v1570, %v1628
  %v1770 = vsel %vm459, %v1572, %v1632
  %v1771 = vsel %vm459, %v1574, %v1636
  %v1772 = vsel %vm1721, %v1602, %v1682
  %v1773 = vsel %vm1721, %v1606, %v1686
  %v1774 = vsel %vm1721, %v1610, %v1690
  %v1775 = vsel %vm1721, %v1614, %v1694
  %v1776 = vsel %vm1721, %v1618, %v1698
  %v1777 = vsel %vm1721, %v1622, %v1702
  %v1778 = vsel %vm1721, %v1626, %v1706
  %v1779 = vsel %vm1721, %v1630, %v1710
  %v1780 = vsel %vm1721, %v1634, %v1714
  %v1781 = vsel %vm1721, %v1638, %v1718
  %v1782 = vpack.c.bf16 %v1557, %v1555
  %v1783 = vpack.c.bf16 %v1763, %v1762
  %v1784 = vpack.c.bf16 %v1640, %v1639
  %v1785 = vpack.c.bf16 %v1773, %v1772
  %v1786 = vpack.c.bf16 %v1723, %v1722
  %v1787 = vpack.c.bf16 %v1688, %v1684
  %v1788 = vpack.c.bf16 %v1561, %v1559
  %v1789 = vpack.c.bf16 %v1765, %v1764
  %v1790 = vpack.c.bf16 %v1642, %v1641
  %v1791 = vpack.c.bf16 %v1775, %v1774
  %v1792 = vpack.c.bf16 %v1725, %v1724
  %v1793 = vpack.c.bf16 %v1696, %v1692
  %v1794 = vpack.c.bf16 %v1565, %v1563
  %v1795 = vpack.c.bf16 %v1767, %v1766
  %v1796 = vpack.c.bf16 %v1644, %v1643
  %v1797 = vpack.c.bf16 %v1777, %v1776
  %v1798 = vpack.c.bf16 %v1727, %v1726
  %v1799 = vpack.c.bf16 %v1704, %v1700
  %v1800 = vpack.c.bf16 %v1569, %v1567
  %v1801 = vpack.c.bf16 %v1769, %v1768
  %v1802 = vpack.c.bf16 %v1646, %v1645
  %v1803 = vpack.c.bf16 %v1779, %v1778
  %v1804 = vpack.c.bf16 %v1729, %v1728
  %v1805 = vpack.c.bf16 %v1712, %v1708
  %v1806 = vpack.c.bf16 %v1573, %v1571
  %v1807 = vpack.c.bf16 %v1771, %v1770
  %v1808 = vpack.c.bf16 %v1648, %v1647
  %v1809 = vpack.c.bf16 %v1781, %v1780
  %v1810 = vpack.c.bf16 %v1731, %v1730
  %v1811 = vpack.c.bf16 %v1720, %v1716
  %v1812 = vld [vmem:[%s3] sm:$0xff]
  %v1813 = vld [vmem:[%s3 + $0x8] sm:$0xff]
  %v1814 = vld [vmem:[%s3 + $0x10] sm:$0xff]
  %v1815 = vld [vmem:[%s3 + $0x18] sm:$0xff]
  %v1816 = vld [vmem:[%s3 + $0x20] sm:$0xff]
  %v1817 = vld [vmem:[%s3 + $0x28] sm:$0xff]
  %v1818 = vld [vmem:[%s3 + $0x30] sm:$0xff]
  %v1819 = vld [vmem:[%s3 + $0x38] sm:$0xff]
  %v1820 = vld [vmem:[%s3 + $0x40] sm:$0xff]
  %v1821 = vld [vmem:[%s3 + $0x48] sm:$0xff]
  %v1822 = vld [vmem:[%s3 + $0x50] sm:$0xff]
  %v1823 = vld [vmem:[%s3 + $0x58] sm:$0xff]
  %v1824 = vld [vmem:[%s3 + $0x60] sm:$0xff]
  %v1825 = vld [vmem:[%s3 + $0x68] sm:$0xff]
  %v1826 = vld [vmem:[%s3 + $0x70] sm:$0xff]
  %v1827 = vld [vmem:[%s3 + $0x78] sm:$0xff]
  %v1828 = vld [vmem:[%s3 + $0x80] sm:$0xff]
  %v1829 = vld [vmem:[%s3 + $0x88] sm:$0xff]
  %v1830 = vld [vmem:[%s3 + $0x90] sm:$0xff]
  %v1831 = vld [vmem:[%s3 + $0x98] sm:$0xff]
  %v1832 = vld [vmem:[%s3 + $0xa0] sm:$0xff]
  %v1833 = vld [vmem:[%s3 + $0xa8] sm:$0xff]
  %v1834 = vld [vmem:[%s3 + $0xb0] sm:$0xff]
  %v1835 = vld [vmem:[%s3 + $0xb8] sm:$0xff]
  %v1836 = vld [vmem:[%s3 + $0xc0] sm:$0xff]
  %v1837 = vld [vmem:[%s3 + $0xc8] sm:$0xff]
  %v1838 = vld [vmem:[%s3 + $0xd0] sm:$0xff]
  %v1839 = vld [vmem:[%s3 + $0xd8] sm:$0xff]
  %v1840 = vld [vmem:[%s3 + $0xe0] sm:$0xff]
  %v1841 = vld [vmem:[%s3 + $0xe8] sm:$0xff]
  %v1842 = vld [vmem:[%s3 + $0xf0] sm:$0xff]
  %v1843 = vld [vmem:[%s3 + $0xf8] sm:$0xff]
  %v1844 = vld [vmem:[%s3 + $0x100] sm:$0xff]
  %v1845 = vld [vmem:[%s3 + $0x108] sm:$0xff]
  %v1846 = vld [vmem:[%s3 + $0x110] sm:$0xff]
  %v1847 = vld [vmem:[%s3 + $0x118] sm:$0xff]
  %v1848 = vld [vmem:[%s3 + $0x120] sm:$0xff]
  %v1849 = vld [vmem:[%s3 + $0x128] sm:$0xff]
  %v1850 = vld [vmem:[%s3 + $0x130] sm:$0xff]
  %v1851 = vld [vmem:[%s3 + $0x138] sm:$0xff]
  %v1852 = vld [vmem:[%s3 + $0x140] sm:$0xff]
  %v1853 = vld [vmem:[%s3 + $0x148] sm:$0xff]
  %v1854 = vld [vmem:[%s3 + $0x150] sm:$0xff]
  %v1855 = vld [vmem:[%s3 + $0x158] sm:$0xff]
  %v1856 = vld [vmem:[%s3 + $0x160] sm:$0xff]
  %v1857 = vld [vmem:[%s3 + $0x168] sm:$0xff]
  %v1858 = vld [vmem:[%s3 + $0x170] sm:$0xff]
  %v1859 = vld [vmem:[%s3 + $0x178] sm:$0xff]
  %v1860 = vld [vmem:[%s3 + $0x180] sm:$0xff]
  %v1861 = vld [vmem:[%s3 + $0x188] sm:$0xff]
  %v1862 = vld [vmem:[%s3 + $0x190] sm:$0xff]
  %v1863 = vld [vmem:[%s3 + $0x198] sm:$0xff]
  %v1864 = vld [vmem:[%s3 + $0x1a0] sm:$0xff]
  %v1865 = vld [vmem:[%s3 + $0x1a8] sm:$0xff]
  %v1866 = vld [vmem:[%s3 + $0x1b0] sm:$0xff]
  %v1867 = vld [vmem:[%s3 + $0x1b8] sm:$0xff]
  %v1868 = vld [vmem:[%s3 + $0x1c0] sm:$0xff]
  %v1869 = vld [vmem:[%s3 + $0x1c8] sm:$0xff]
  %v1870 = vld [vmem:[%s3 + $0x1d0] sm:$0xff]
  %v1871 = vld [vmem:[%s3 + $0x1d8] sm:$0xff]
  %v1872 = vld [vmem:[%s3 + $0x1e0] sm:$0xff]
  %v1873 = vld [vmem:[%s3 + $0x1e8] sm:$0xff]
  %v1874 = vld [vmem:[%s3 + $0x1f0] sm:$0xff]
  %v1875 = vld [vmem:[%s3 + $0x1f8] sm:$0xff]
  %v1876 = vld [vmem:[%s3 + $0x200] sm:$0xff]
  %v1877 = vld [vmem:[%s3 + $0x208] sm:$0xff]
  %v1878 = vld [vmem:[%s3 + $0x210] sm:$0xff]
  %v1879 = vld [vmem:[%s3 + $0x218] sm:$0xff]
  %v1880 = vld [vmem:[%s3 + $0x220] sm:$0xff]
  %v1881 = vld [vmem:[%s3 + $0x228] sm:$0xff]
  %v1882 = vld [vmem:[%s3 + $0x230] sm:$0xff]
  %v1883 = vld [vmem:[%s3 + $0x238] sm:$0xff]
  %v1884 = vld [vmem:[%s3 + $0x240] sm:$0xff]
  %v1885 = vld [vmem:[%s3 + $0x248] sm:$0xff]
  %v1886 = vld [vmem:[%s3 + $0x250] sm:$0xff]
  %v1887 = vld [vmem:[%s3 + $0x258] sm:$0xff]
  %v1888 = vld [vmem:[%s3 + $0x260] sm:$0xff]
  %v1889 = vld [vmem:[%s3 + $0x268] sm:$0xff]
  %v1890 = vld [vmem:[%s3 + $0x270] sm:$0xff]
  %v1891 = vld [vmem:[%s3 + $0x278] sm:$0xff]
  %v1892 = vld [vmem:[%s3 + $0x280] sm:$0xff]
  %v1893 = vld [vmem:[%s3 + $0x288] sm:$0xff]
  %v1894 = vld [vmem:[%s3 + $0x290] sm:$0xff]
  %v1895 = vld [vmem:[%s3 + $0x298] sm:$0xff]
  %v1896 = vld [vmem:[%s3 + $0x2a0] sm:$0xff]
  %v1897 = vld [vmem:[%s3 + $0x2a8] sm:$0xff]
  %v1898 = vld [vmem:[%s3 + $0x2b0] sm:$0xff]
  %v1899 = vld [vmem:[%s3 + $0x2b8] sm:$0xff]
  %v1900 = vld [vmem:[%s3 + $0x2c0] sm:$0xff]
  %v1901 = vld [vmem:[%s3 + $0x2c8] sm:$0xff]
  %v1902 = vld [vmem:[%s3 + $0x2d0] sm:$0xff]
  %v1903 = vld [vmem:[%s3 + $0x2d8] sm:$0xff]
  %v1904 = vld [vmem:[%s3 + $0x2e0] sm:$0xff]
  %v1905 = vld [vmem:[%s3 + $0x2e8] sm:$0xff]
  %v1906 = vld [vmem:[%s3 + $0x2f0] sm:$0xff]
  %v1907 = vld [vmem:[%s3 + $0x2f8] sm:$0xff]
  %v1908 = vld [vmem:[%s3 + $0x300] sm:$0xff]
  %v1909 = vld [vmem:[%s3 + $0x308] sm:$0xff]
  %v1910 = vld [vmem:[%s3 + $0x310] sm:$0xff]
  %v1911 = vld [vmem:[%s3 + $0x318] sm:$0xff]
  %v1912 = vld [vmem:[%s3 + $0x320] sm:$0xff]
  %v1913 = vld [vmem:[%s3 + $0x328] sm:$0xff]
  %v1914 = vld [vmem:[%s3 + $0x330] sm:$0xff]
  %v1915 = vld [vmem:[%s3 + $0x338] sm:$0xff]
  %v1916 = vld [vmem:[%s3 + $0x340] sm:$0xff]
  %v1917 = vld [vmem:[%s3 + $0x348] sm:$0xff]
  %v1918 = vld [vmem:[%s3 + $0x350] sm:$0xff]
  %v1919 = vld [vmem:[%s3 + $0x358] sm:$0xff]
  %v1920 = vld [vmem:[%s3 + $0x360] sm:$0xff]
  %v1921 = vld [vmem:[%s3 + $0x368] sm:$0xff]
  %v1922 = vld [vmem:[%s3 + $0x370] sm:$0xff]
  %v1923 = vld [vmem:[%s3 + $0x378] sm:$0xff]
  %v1924 = vld [vmem:[%s3 + $0x380] sm:$0xff]
  %v1925 = vld [vmem:[%s3 + $0x388] sm:$0xff]
  %v1926 = vld [vmem:[%s3 + $0x390] sm:$0xff]
  %v1927 = vld [vmem:[%s3 + $0x398] sm:$0xff]
  %v1928 = vld [vmem:[%s3 + $0x3a0] sm:$0xff]
  %v1929 = vld [vmem:[%s3 + $0x3a8] sm:$0xff]
  %v1930 = vld [vmem:[%s3 + $0x3b0] sm:$0xff]
  %v1931 = vld [vmem:[%s3 + $0x3b8] sm:$0xff]
  %v1932 = vld [vmem:[%s3 + $0x3c0] sm:$0xff]
  %v1933 = vld [vmem:[%s3 + $0x3c8] sm:$0xff]
  %v1934 = vld [vmem:[%s3 + $0x3d0] sm:$0xff]
  %v1935 = vld [vmem:[%s3 + $0x3d8] sm:$0xff]
  %v1936 = vld [vmem:[%s3 + $0x3e0] sm:$0xff]
  %v1937 = vld [vmem:[%s3 + $0x3e8] sm:$0xff]
  %v1938 = vld [vmem:[%s3 + $0x3f0] sm:$0xff]
  %v1939 = vld [vmem:[%s3 + $0x3f8] sm:$0xff]
  %v1940 = vld [vmem:[%s3 + $0x400] sm:$0xff]
  %v1941 = vld [vmem:[%s3 + $0x408] sm:$0xff]
  %v1942 = vld [vmem:[%s3 + $0x410] sm:$0xff]
  %v1943 = vld [vmem:[%s3 + $0x418] sm:$0xff]
  %v1944 = vld [vmem:[%s3 + $0x420] sm:$0xff]
  %v1945 = vld [vmem:[%s3 + $0x428] sm:$0xff]
  %v1946 = vld [vmem:[%s3 + $0x430] sm:$0xff]
  %v1947 = vld [vmem:[%s3 + $0x438] sm:$0xff]
  %v1948 = vld [vmem:[%s3 + $0x440] sm:$0xff]
  %v1949 = vld [vmem:[%s3 + $0x448] sm:$0xff]
  %v1950 = vld [vmem:[%s3 + $0x450] sm:$0xff]
  %v1951 = vld [vmem:[%s3 + $0x458] sm:$0xff]
  %v1952 = vld [vmem:[%s3 + $0x460] sm:$0xff]
  %v1953 = vld [vmem:[%s3 + $0x468] sm:$0xff]
  %v1954 = vld [vmem:[%s3 + $0x470] sm:$0xff]
  %v1955 = vld [vmem:[%s3 + $0x478] sm:$0xff]
  %v1956 = vld [vmem:[%s3 + $0x480] sm:$0xff]
  %v1957 = vld [vmem:[%s3 + $0x488] sm:$0xff]
  %v1958 = vld [vmem:[%s3 + $0x490] sm:$0xff]
  %v1959 = vld [vmem:[%s3 + $0x498] sm:$0xff]
  %v1960 = vld [vmem:[%s3 + $0x4a0] sm:$0xff]
  %v1961 = vld [vmem:[%s3 + $0x4a8] sm:$0xff]
  %v1962 = vld [vmem:[%s3 + $0x4b0] sm:$0xff]
  %v1963 = vld [vmem:[%s3 + $0x4b8] sm:$0xff]
  %v1964 = vld [vmem:[%s3 + $0x4c0] sm:$0xff]
  %v1965 = vld [vmem:[%s3 + $0x4c8] sm:$0xff]
  %v1966 = vld [vmem:[%s3 + $0x4d0] sm:$0xff]
  %v1967 = vld [vmem:[%s3 + $0x4d8] sm:$0xff]
  %v1968 = vld [vmem:[%s3 + $0x4e0] sm:$0xff]
  %v1969 = vld [vmem:[%s3 + $0x4e8] sm:$0xff]
  %v1970 = vld [vmem:[%s3 + $0x4f0] sm:$0xff]
  %v1971 = vld [vmem:[%s3 + $0x4f8] sm:$0xff]
  %v1972 = vld [vmem:[%s3 + $0x500] sm:$0xff]
  %v1973 = vld [vmem:[%s3 + $0x508] sm:$0xff]
  %v1974 = vld [vmem:[%s3 + $0x510] sm:$0xff]
  %v1975 = vld [vmem:[%s3 + $0x518] sm:$0xff]
  %v1976 = vld [vmem:[%s3 + $0x520] sm:$0xff]
  %v1977 = vld [vmem:[%s3 + $0x528] sm:$0xff]
  %v1978 = vld [vmem:[%s3 + $0x530] sm:$0xff]
  %v1979 = vld [vmem:[%s3 + $0x538] sm:$0xff]
  %v1980 = vld [vmem:[%s3 + $0x540] sm:$0xff]
  %v1981 = vld [vmem:[%s3 + $0x548] sm:$0xff]
  %v1982 = vld [vmem:[%s3 + $0x550] sm:$0xff]
  %v1983 = vld [vmem:[%s3 + $0x558] sm:$0xff]
  %v1984 = vld [vmem:[%s3 + $0x560] sm:$0xff]
  %v1985 = vld [vmem:[%s3 + $0x568] sm:$0xff]
  %v1986 = vld [vmem:[%s3 + $0x570] sm:$0xff]
  %v1987 = vld [vmem:[%s3 + $0x578] sm:$0xff]
  %v1988 = vld [vmem:[%s3 + $0x580] sm:$0xff]
  %v1989 = vld [vmem:[%s3 + $0x588] sm:$0xff]
  %v1990 = vld [vmem:[%s3 + $0x590] sm:$0xff]
  %v1991 = vld [vmem:[%s3 + $0x598] sm:$0xff]
  %v1992 = vld [vmem:[%s4] sm:$0xf]
  %v1994 = vlaneseq
  %v1995 = vshrl.u32 %v1994, 7
  %v1996 = vsub.s32 0, %v1995
  %v1997 = vrot.slane %v1992, %v1996
  %v1998 = vlaneseq
  %v1999 = vshrl.u32 %v1998, 7
  %v2000 = vsub.s32 1, %v1999
  %v2001 = vrot.slane %v1992, %v2000
  %v2002 = vlaneseq
  %v2003 = vshrl.u32 %v2002, 7
  %v2004 = vsub.s32 2, %v2003
  %v2005 = vrot.slane %v1992, %v2004
  %v2006 = vlaneseq
  %v2007 = vshrl.u32 %v2006, 7
  %v2008 = vsub.s32 3, %v2007
  %v2009 = vrot.slane %v1992, %v2008
  %v2194 = vunpack.c.l.b16 %v1812
  %v2195 = vunpack.c.h.b16 %v1812
  %v2196 = vunpack.c.l.b16 %v1813
  %v2197 = vunpack.c.h.b16 %v1813
  %v2198 = vunpack.c.l.b16 %v1814
  %v2199 = vunpack.c.h.b16 %v1814
  %v2200 = vunpack.c.l.b16 %v1815
  %v2201 = vunpack.c.h.b16 %v1815
  %v2202 = vunpack.c.l.b16 %v1816
  %v2203 = vunpack.c.h.b16 %v1816
  %v2204 = vunpack.c.l.b16 %v1817
  %v2205 = vunpack.c.h.b16 %v1817
  %v2206 = vunpack.c.l.b16 %v1818
  %v2207 = vunpack.c.h.b16 %v1818
  %v2208 = vunpack.c.l.b16 %v1819
  %v2209 = vunpack.c.h.b16 %v1819
  %v2210 = vunpack.c.l.b16 %v1820
  %v2211 = vunpack.c.h.b16 %v1820
  %v2212 = vunpack.c.l.b16 %v1821
  %v2213 = vunpack.c.h.b16 %v1821
  %v2214 = vunpack.c.l.b16 %v1822
  %v2215 = vunpack.c.h.b16 %v1822
  %v2216 = vunpack.c.l.b16 %v1823
  %v2217 = vunpack.c.h.b16 %v1823
  %v2218 = vunpack.c.l.b16 %v1824
  %v2219 = vunpack.c.h.b16 %v1824
  %v2220 = vunpack.c.l.b16 %v1825
  %v2221 = vunpack.c.h.b16 %v1825
  %v2222 = vunpack.c.l.b16 %v1826
  %v2223 = vunpack.c.h.b16 %v1826
  %v2224 = vunpack.c.l.b16 %v1827
  %v2225 = vunpack.c.h.b16 %v1827
  %v2226 = vunpack.c.l.b16 %v1828
  %v2227 = vunpack.c.h.b16 %v1828
  %v2228 = vunpack.c.l.b16 %v1829
  %v2229 = vunpack.c.h.b16 %v1829
  %v2230 = vunpack.c.l.b16 %v1830
  %v2231 = vunpack.c.h.b16 %v1830
  %v2232 = vunpack.c.l.b16 %v1831
  %v2233 = vunpack.c.h.b16 %v1831
  %v2234 = vunpack.c.l.b16 %v1832
  %v2235 = vunpack.c.h.b16 %v1832
  %v2236 = vunpack.c.l.b16 %v1833
  %v2237 = vunpack.c.h.b16 %v1833
  %v2238 = vunpack.c.l.b16 %v1834
  %v2239 = vunpack.c.h.b16 %v1834
  %v2240 = vunpack.c.l.b16 %v1835
  %v2241 = vunpack.c.h.b16 %v1835
  %v2242 = vunpack.c.l.b16 %v1836
  %v2243 = vunpack.c.h.b16 %v1836
  %v2244 = vunpack.c.l.b16 %v1837
  %v2245 = vunpack.c.h.b16 %v1837
  %v2246 = vunpack.c.l.b16 %v1838
  %v2247 = vunpack.c.h.b16 %v1838
  %v2248 = vunpack.c.l.b16 %v1839
  %v2249 = vunpack.c.h.b16 %v1839
  %v2250 = vunpack.c.l.b16 %v1840
  %v2251 = vunpack.c.h.b16 %v1840
  %v2252 = vunpack.c.l.b16 %v1841
  %v2253 = vunpack.c.h.b16 %v1841
  %v2254 = vunpack.c.l.b16 %v1842
  %v2255 = vunpack.c.h.b16 %v1842
  %v2256 = vunpack.c.l.b16 %v1843
  %v2257 = vunpack.c.h.b16 %v1843
  %v2258 = vunpack.c.l.b16 %v1844
  %v2259 = vunpack.c.h.b16 %v1844
  %v2260 = vunpack.c.l.b16 %v1845
  %v2261 = vunpack.c.h.b16 %v1845
  %v2262 = vunpack.c.l.b16 %v1846
  %v2263 = vunpack.c.h.b16 %v1846
  %v2264 = vunpack.c.l.b16 %v1847
  %v2265 = vunpack.c.h.b16 %v1847
  %v2266 = vunpack.c.l.b16 %v1848
  %v2267 = vunpack.c.h.b16 %v1848
  %v2268 = vunpack.c.l.b16 %v1849
  %v2269 = vunpack.c.h.b16 %v1849
  %v2270 = vunpack.c.l.b16 %v1850
  %v2271 = vunpack.c.h.b16 %v1850
  %v2272 = vunpack.c.l.b16 %v1851
  %v2273 = vunpack.c.h.b16 %v1851
  %v2274 = vunpack.c.l.b16 %v1852
  %v2275 = vunpack.c.h.b16 %v1852
  %v2276 = vunpack.c.l.b16 %v1853
  %v2277 = vunpack.c.h.b16 %v1853
  %v2278 = vunpack.c.l.b16 %v1854
  %v2279 = vunpack.c.h.b16 %v1854
  %v2280 = vunpack.c.l.b16 %v1855
  %v2281 = vunpack.c.h.b16 %v1855
  %v2282 = vunpack.c.l.b16 %v1856
  %v2283 = vunpack.c.h.b16 %v1856
  %v2284 = vunpack.c.l.b16 %v1857
  %v2285 = vunpack.c.h.b16 %v1857
  %v2286 = vunpack.c.l.b16 %v1858
  %v2287 = vunpack.c.h.b16 %v1858
  %v2288 = vunpack.c.l.b16 %v1859
  %v2289 = vunpack.c.h.b16 %v1859
  %v2290 = vunpack.c.l.b16 %v1860
  %v2291 = vunpack.c.h.b16 %v1860
  %v2292 = vunpack.c.l.b16 %v1861
  %v2293 = vunpack.c.h.b16 %v1861
  %v2294 = vunpack.c.l.b16 %v1862
  %v2295 = vunpack.c.h.b16 %v1862
  %v2296 = vunpack.c.l.b16 %v1863
  %v2297 = vunpack.c.h.b16 %v1863
  %v2298 = vunpack.c.l.b16 %v1864
  %v2299 = vunpack.c.h.b16 %v1864
  %v2300 = vunpack.c.l.b16 %v1865
  %v2301 = vunpack.c.h.b16 %v1865
  %v2302 = vunpack.c.l.b16 %v1866
  %v2303 = vunpack.c.h.b16 %v1866
  %v2304 = vunpack.c.l.b16 %v1867
  %v2305 = vunpack.c.h.b16 %v1867
  %v2306 = vunpack.c.l.b16 %v1868
  %v2307 = vunpack.c.h.b16 %v1868
  %v2308 = vunpack.c.l.b16 %v1869
  %v2309 = vunpack.c.h.b16 %v1869
  %v2310 = vunpack.c.l.b16 %v1870
  %v2311 = vunpack.c.h.b16 %v1870
  %v2312 = vunpack.c.l.b16 %v1871
  %v2313 = vunpack.c.h.b16 %v1871
  %v2314 = vunpack.c.l.b16 %v1872
  %v2315 = vunpack.c.h.b16 %v1872
  %v2316 = vunpack.c.l.b16 %v1873
  %v2317 = vunpack.c.h.b16 %v1873
  %v2318 = vunpack.c.l.b16 %v1874
  %v2319 = vunpack.c.h.b16 %v1874
  %v2320 = vunpack.c.l.b16 %v1875
  %v2321 = vunpack.c.h.b16 %v1875
  %v2322 = vunpack.c.l.b16 %v1876
  %v2323 = vunpack.c.h.b16 %v1876
  %v2324 = vunpack.c.l.b16 %v1877
  %v2325 = vunpack.c.h.b16 %v1877
  %v2326 = vunpack.c.l.b16 %v1878
  %v2327 = vunpack.c.h.b16 %v1878
  %v2328 = vunpack.c.l.b16 %v1879
  %v2329 = vunpack.c.h.b16 %v1879
  %v2330 = vunpack.c.l.b16 %v1880
  %v2331 = vunpack.c.h.b16 %v1880
  %v2332 = vunpack.c.l.b16 %v1881
  %v2333 = vunpack.c.h.b16 %v1881
  %v2334 = vunpack.c.l.b16 %v1882
  %v2335 = vunpack.c.h.b16 %v1882
  %v2336 = vunpack.c.l.b16 %v1883
  %v2337 = vunpack.c.h.b16 %v1883
  %v2338 = vunpack.c.l.b16 %v1884
  %v2339 = vunpack.c.h.b16 %v1884
  %v2340 = vunpack.c.l.b16 %v1885
  %v2341 = vunpack.c.h.b16 %v1885
  %v2342 = vunpack.c.l.b16 %v1886
  %v2343 = vunpack.c.h.b16 %v1886
  %v2344 = vunpack.c.l.b16 %v1887
  %v2345 = vunpack.c.h.b16 %v1887
  %v2346 = vunpack.c.l.b16 %v1888
  %v2347 = vunpack.c.h.b16 %v1888
  %v2348 = vunpack.c.l.b16 %v1889
  %v2349 = vunpack.c.h.b16 %v1889
  %v2350 = vunpack.c.l.b16 %v1890
  %v2351 = vunpack.c.h.b16 %v1890
  %v2352 = vunpack.c.l.b16 %v1891
  %v2353 = vunpack.c.h.b16 %v1891
  %v2354 = vunpack.c.l.b16 %v1892
  %v2355 = vunpack.c.h.b16 %v1892
  %v2356 = vunpack.c.l.b16 %v1893
  %v2357 = vunpack.c.h.b16 %v1893
  %v2358 = vunpack.c.l.b16 %v1894
  %v2359 = vunpack.c.h.b16 %v1894
  %v2360 = vunpack.c.l.b16 %v1895
  %v2361 = vunpack.c.h.b16 %v1895
  %v2362 = vunpack.c.l.b16 %v1896
  %v2363 = vunpack.c.h.b16 %v1896
  %v2364 = vunpack.c.l.b16 %v1897
  %v2365 = vunpack.c.h.b16 %v1897
  %v2366 = vunpack.c.l.b16 %v1898
  %v2367 = vunpack.c.h.b16 %v1898
  %v2368 = vunpack.c.l.b16 %v1899
  %v2369 = vunpack.c.h.b16 %v1899
  %v2370 = vunpack.c.l.b16 %v1900
  %v2371 = vunpack.c.h.b16 %v1900
  %v2372 = vunpack.c.l.b16 %v1901
  %v2373 = vunpack.c.h.b16 %v1901
  %v2374 = vunpack.c.l.b16 %v1902
  %v2375 = vunpack.c.h.b16 %v1902
  %v2376 = vunpack.c.l.b16 %v1903
  %v2377 = vunpack.c.h.b16 %v1903
  %v2378 = vunpack.c.l.b16 %v1904
  %v2379 = vunpack.c.h.b16 %v1904
  %v2380 = vunpack.c.l.b16 %v1905
  %v2381 = vunpack.c.h.b16 %v1905
  %v2382 = vunpack.c.l.b16 %v1906
  %v2383 = vunpack.c.h.b16 %v1906
  %v2384 = vunpack.c.l.b16 %v1907
  %v2385 = vunpack.c.h.b16 %v1907
  %v2386 = vunpack.c.l.b16 %v1908
  %v2387 = vunpack.c.h.b16 %v1908
  %v2388 = vunpack.c.l.b16 %v1909
  %v2389 = vunpack.c.h.b16 %v1909
  %v2390 = vunpack.c.l.b16 %v1910
  %v2391 = vunpack.c.h.b16 %v1910
  %v2392 = vunpack.c.l.b16 %v1911
  %v2393 = vunpack.c.h.b16 %v1911
  %v2394 = vunpack.c.l.b16 %v1912
  %v2395 = vunpack.c.h.b16 %v1912
  %v2396 = vunpack.c.l.b16 %v1913
  %v2397 = vunpack.c.h.b16 %v1913
  %v2398 = vunpack.c.l.b16 %v1914
  %v2399 = vunpack.c.h.b16 %v1914
  %v2400 = vunpack.c.l.b16 %v1915
  %v2401 = vunpack.c.h.b16 %v1915
  %v2402 = vunpack.c.l.b16 %v1916
  %v2403 = vunpack.c.h.b16 %v1916
  %v2404 = vunpack.c.l.b16 %v1917
  %v2405 = vunpack.c.h.b16 %v1917
  %v2406 = vunpack.c.l.b16 %v1918
  %v2407 = vunpack.c.h.b16 %v1918
  %v2408 = vunpack.c.l.b16 %v1919
  %v2409 = vunpack.c.h.b16 %v1919
  %v2410 = vunpack.c.l.b16 %v1920
  %v2411 = vunpack.c.h.b16 %v1920
  %v2412 = vunpack.c.l.b16 %v1921
  %v2413 = vunpack.c.h.b16 %v1921
  %v2414 = vunpack.c.l.b16 %v1922
  %v2415 = vunpack.c.h.b16 %v1922
  %v2416 = vunpack.c.l.b16 %v1923
  %v2417 = vunpack.c.h.b16 %v1923
  %v2418 = vunpack.c.l.b16 %v1924
  %v2419 = vunpack.c.h.b16 %v1924
  %v2420 = vunpack.c.l.b16 %v1925
  %v2421 = vunpack.c.h.b16 %v1925
  %v2422 = vunpack.c.l.b16 %v1926
  %v2423 = vunpack.c.h.b16 %v1926
  %v2424 = vunpack.c.l.b16 %v1927
  %v2425 = vunpack.c.h.b16 %v1927
  %v2426 = vunpack.c.l.b16 %v1928
  %v2427 = vunpack.c.h.b16 %v1928
  %v2428 = vunpack.c.l.b16 %v1929
  %v2429 = vunpack.c.h.b16 %v1929
  %v2430 = vunpack.c.l.b16 %v1930
  %v2431 = vunpack.c.h.b16 %v1930
  %v2432 = vunpack.c.l.b16 %v1931
  %v2433 = vunpack.c.h.b16 %v1931
  %v2434 = vunpack.c.l.b16 %v1932
  %v2435 = vunpack.c.h.b16 %v1932
  %v2436 = vunpack.c.l.b16 %v1933
  %v2437 = vunpack.c.h.b16 %v1933
  %v2438 = vunpack.c.l.b16 %v1934
  %v2439 = vunpack.c.h.b16 %v1934
  %v2440 = vunpack.c.l.b16 %v1935
  %v2441 = vunpack.c.h.b16 %v1935
  %v2442 = vunpack.c.l.b16 %v1936
  %v2443 = vunpack.c.h.b16 %v1936
  %v2444 = vunpack.c.l.b16 %v1937
  %v2445 = vunpack.c.h.b16 %v1937
  %v2446 = vunpack.c.l.b16 %v1938
  %v2447 = vunpack.c.h.b16 %v1938
  %v2448 = vunpack.c.l.b16 %v1939
  %v2449 = vunpack.c.h.b16 %v1939
  %v2450 = vunpack.c.l.b16 %v1940
  %v2451 = vunpack.c.h.b16 %v1940
  %v2452 = vunpack.c.l.b16 %v1941
  %v2453 = vunpack.c.h.b16 %v1941
  %v2454 = vunpack.c.l.b16 %v1942
  %v2455 = vunpack.c.h.b16 %v1942
  %v2456 = vunpack.c.l.b16 %v1943
  %v2457 = vunpack.c.h.b16 %v1943
  %v2458 = vunpack.c.l.b16 %v1944
  %v2459 = vunpack.c.h.b16 %v1944
  %v2460 = vunpack.c.l.b16 %v1945
  %v2461 = vunpack.c.h.b16 %v1945
  %v2462 = vunpack.c.l.b16 %v1946
  %v2463 = vunpack.c.h.b16 %v1946
  %v2464 = vunpack.c.l.b16 %v1947
  %v2465 = vunpack.c.h.b16 %v1947
  %v2466 = vunpack.c.l.b16 %v1948
  %v2467 = vunpack.c.h.b16 %v1948
  %v2468 = vunpack.c.l.b16 %v1949
  %v2469 = vunpack.c.h.b16 %v1949
  %v2470 = vunpack.c.l.b16 %v1950
  %v2471 = vunpack.c.h.b16 %v1950
  %v2472 = vunpack.c.l.b16 %v1951
  %v2473 = vunpack.c.h.b16 %v1951
  %v2474 = vunpack.c.l.b16 %v1952
  %v2475 = vunpack.c.h.b16 %v1952
  %v2476 = vunpack.c.l.b16 %v1953
  %v2477 = vunpack.c.h.b16 %v1953
  %v2478 = vunpack.c.l.b16 %v1954
  %v2479 = vunpack.c.h.b16 %v1954
  %v2480 = vunpack.c.l.b16 %v1955
  %v2481 = vunpack.c.h.b16 %v1955
  %v2482 = vunpack.c.l.b16 %v1956
  %v2483 = vunpack.c.h.b16 %v1956
  %v2484 = vunpack.c.l.b16 %v1957
  %v2485 = vunpack.c.h.b16 %v1957
  %v2486 = vunpack.c.l.b16 %v1958
  %v2487 = vunpack.c.h.b16 %v1958
  %v2488 = vunpack.c.l.b16 %v1959
  %v2489 = vunpack.c.h.b16 %v1959
  %v2490 = vunpack.c.l.b16 %v1960
  %v2491 = vunpack.c.h.b16 %v1960
  %v2492 = vunpack.c.l.b16 %v1961
  %v2493 = vunpack.c.h.b16 %v1961
  %v2494 = vunpack.c.l.b16 %v1962
  %v2495 = vunpack.c.h.b16 %v1962
  %v2496 = vunpack.c.l.b16 %v1963
  %v2497 = vunpack.c.h.b16 %v1963
  %v2498 = vunpack.c.l.b16 %v1964
  %v2499 = vunpack.c.h.b16 %v1964
  %v2500 = vunpack.c.l.b16 %v1965
  %v2501 = vunpack.c.h.b16 %v1965
  %v2502 = vunpack.c.l.b16 %v1966
  %v2503 = vunpack.c.h.b16 %v1966
  %v2504 = vunpack.c.l.b16 %v1967
  %v2505 = vunpack.c.h.b16 %v1967
  %v2506 = vunpack.c.l.b16 %v1968
  %v2507 = vunpack.c.h.b16 %v1968
  %v2508 = vunpack.c.l.b16 %v1969
  %v2509 = vunpack.c.h.b16 %v1969
  %v2510 = vunpack.c.l.b16 %v1970
  %v2511 = vunpack.c.h.b16 %v1970
  %v2512 = vunpack.c.l.b16 %v1971
  %v2513 = vunpack.c.h.b16 %v1971
  %v2514 = vunpack.c.l.b16 %v1972
  %v2515 = vunpack.c.h.b16 %v1972
  %v2516 = vunpack.c.l.b16 %v1973
  %v2517 = vunpack.c.h.b16 %v1973
  %v2518 = vunpack.c.l.b16 %v1974
  %v2519 = vunpack.c.h.b16 %v1974
  %v2520 = vunpack.c.l.b16 %v1975
  %v2521 = vunpack.c.h.b16 %v1975
  %v2522 = vunpack.c.l.b16 %v1976
  %v2523 = vunpack.c.h.b16 %v1976
  %v2524 = vunpack.c.l.b16 %v1977
  %v2525 = vunpack.c.h.b16 %v1977
  %v2526 = vunpack.c.l.b16 %v1978
  %v2527 = vunpack.c.h.b16 %v1978
  %v2528 = vunpack.c.l.b16 %v1979
  %v2529 = vunpack.c.h.b16 %v1979
  %v2530 = vunpack.c.l.b16 %v1980
  %v2531 = vunpack.c.h.b16 %v1980
  %v2532 = vunpack.c.l.b16 %v1981
  %v2533 = vunpack.c.h.b16 %v1981
  %v2534 = vunpack.c.l.b16 %v1982
  %v2535 = vunpack.c.h.b16 %v1982
  %v2536 = vunpack.c.l.b16 %v1983
  %v2537 = vunpack.c.h.b16 %v1983
  %v2538 = vunpack.c.l.b16 %v1984
  %v2539 = vunpack.c.h.b16 %v1984
  %v2540 = vunpack.c.l.b16 %v1985
  %v2541 = vunpack.c.h.b16 %v1985
  %v2542 = vunpack.c.l.b16 %v1986
  %v2543 = vunpack.c.h.b16 %v1986
  %v2544 = vunpack.c.l.b16 %v1987
  %v2545 = vunpack.c.h.b16 %v1987
  %v2546 = vunpack.c.l.b16 %v1988
  %v2547 = vunpack.c.h.b16 %v1988
  %v2548 = vunpack.c.l.b16 %v1989
  %v2549 = vunpack.c.h.b16 %v1989
  %v2550 = vunpack.c.l.b16 %v1990
  %v2551 = vunpack.c.h.b16 %v1990
  %v2552 = vunpack.c.l.b16 %v1991
  %v2553 = vunpack.c.h.b16 %v1991
  %v2554 = vpack.c.b16 %v2198, %v2194
  %v2555 = vpack.c.b16 %v2199, %v2195
  %v2556 = vpack.c.b16 %v2200, %v2196
  %v2557 = vpack.c.b16 %v2201, %v2197
  %v2558 = vpack.c.b16 %v2206, %v2202
  %v2559 = vpack.c.b16 %v2207, %v2203
  %v2560 = vpack.c.b16 %v2208, %v2204
  %v2561 = vpack.c.b16 %v2209, %v2205
  %v2562 = vpack.c.b16 %v2214, %v2210
  %v2563 = vpack.c.b16 %v2215, %v2211
  %v2564 = vpack.c.b16 %v2216, %v2212
  %v2565 = vpack.c.b16 %v2217, %v2213
  %v2566 = vpack.c.b16 %v2222, %v2218
  %v2567 = vpack.c.b16 %v2223, %v2219
  %v2568 = vpack.c.b16 %v2224, %v2220
  %v2569 = vpack.c.b16 %v2225, %v2221
  %v2570 = vpack.c.b16 %v2230, %v2226
  %v2571 = vpack.c.b16 %v2231, %v2227
  %v2572 = vpack.c.b16 %v2232, %v2228
  %v2573 = vpack.c.b16 %v2233, %v2229
  %v2574 = vpack.c.b16 %v2238, %v2234
  %v2575 = vpack.c.b16 %v2239, %v2235
  %v2576 = vpack.c.b16 %v2240, %v2236
  %v2577 = vpack.c.b16 %v2241, %v2237
  %v2578 = vpack.c.b16 %v2246, %v2242
  %v2579 = vpack.c.b16 %v2247, %v2243
  %v2580 = vpack.c.b16 %v2248, %v2244
  %v2581 = vpack.c.b16 %v2249, %v2245
  %v2582 = vpack.c.b16 %v2254, %v2250
  %v2583 = vpack.c.b16 %v2255, %v2251
  %v2584 = vpack.c.b16 %v2256, %v2252
  %v2585 = vpack.c.b16 %v2257, %v2253
  %v2586 = vpack.c.b16 %v2262, %v2258
  %v2587 = vpack.c.b16 %v2263, %v2259
  %v2588 = vpack.c.b16 %v2264, %v2260
  %v2589 = vpack.c.b16 %v2265, %v2261
  %v2590 = vpack.c.b16 %v2270, %v2266
  %v2591 = vpack.c.b16 %v2271, %v2267
  %v2592 = vpack.c.b16 %v2272, %v2268
  %v2593 = vpack.c.b16 %v2273, %v2269
  %v2594 = vpack.c.b16 %v2278, %v2274
  %v2595 = vpack.c.b16 %v2279, %v2275
  %v2596 = vpack.c.b16 %v2280, %v2276
  %v2597 = vpack.c.b16 %v2281, %v2277
  %v2598 = vpack.c.b16 %v2286, %v2282
  %v2599 = vpack.c.b16 %v2287, %v2283
  %v2600 = vpack.c.b16 %v2288, %v2284
  %v2601 = vpack.c.b16 %v2289, %v2285
  %v2602 = vpack.c.b16 %v2294, %v2290
  %v2603 = vpack.c.b16 %v2295, %v2291
  %v2604 = vpack.c.b16 %v2296, %v2292
  %v2605 = vpack.c.b16 %v2297, %v2293
  %v2606 = vpack.c.b16 %v2302, %v2298
  %v2607 = vpack.c.b16 %v2303, %v2299
  %v2608 = vpack.c.b16 %v2304, %v2300
  %v2609 = vpack.c.b16 %v2305, %v2301
  %v2610 = vpack.c.b16 %v2310, %v2306
  %v2611 = vpack.c.b16 %v2311, %v2307
  %v2612 = vpack.c.b16 %v2312, %v2308
  %v2613 = vpack.c.b16 %v2313, %v2309
  %v2614 = vpack.c.b16 %v2318, %v2314
  %v2615 = vpack.c.b16 %v2319, %v2315
  %v2616 = vpack.c.b16 %v2320, %v2316
  %v2617 = vpack.c.b16 %v2321, %v2317
  %v2618 = vpack.c.b16 %v2326, %v2322
  %v2619 = vpack.c.b16 %v2327, %v2323
  %v2620 = vpack.c.b16 %v2328, %v2324
  %v2621 = vpack.c.b16 %v2329, %v2325
  %v2622 = vpack.c.b16 %v2334, %v2330
  %v2623 = vpack.c.b16 %v2335, %v2331
  %v2624 = vpack.c.b16 %v2336, %v2332
  %v2625 = vpack.c.b16 %v2337, %v2333
  %v2626 = vpack.c.b16 %v2342, %v2338
  %v2627 = vpack.c.b16 %v2343, %v2339
  %v2628 = vpack.c.b16 %v2344, %v2340
  %v2629 = vpack.c.b16 %v2345, %v2341
  %v2630 = vpack.c.b16 %v2350, %v2346
  %v2631 = vpack.c.b16 %v2351, %v2347
  %v2632 = vpack.c.b16 %v2352, %v2348
  %v2633 = vpack.c.b16 %v2353, %v2349
  %v2634 = vpack.c.b16 %v2358, %v2354
  %v2635 = vpack.c.b16 %v2359, %v2355
  %v2636 = vpack.c.b16 %v2360, %v2356
  %v2637 = vpack.c.b16 %v2361, %v2357
  %v2638 = vpack.c.b16 %v2366, %v2362
  %v2639 = vpack.c.b16 %v2367, %v2363
  %v2640 = vpack.c.b16 %v2368, %v2364
  %v2641 = vpack.c.b16 %v2369, %v2365
  %v2642 = vpack.c.b16 %v2374, %v2370
  %v2643 = vpack.c.b16 %v2375, %v2371
  %v2644 = vpack.c.b16 %v2376, %v2372
  %v2645 = vpack.c.b16 %v2377, %v2373
  %v2646 = vpack.c.b16 %v2382, %v2378
  %v2647 = vpack.c.b16 %v2383, %v2379
  %v2648 = vpack.c.b16 %v2384, %v2380
  %v2649 = vpack.c.b16 %v2385, %v2381
  %v2650 = vpack.c.b16 %v2390, %v2386
  %v2651 = vpack.c.b16 %v2391, %v2387
  %v2652 = vpack.c.b16 %v2392, %v2388
  %v2653 = vpack.c.b16 %v2393, %v2389
  %v2654 = vpack.c.b16 %v2398, %v2394
  %v2655 = vpack.c.b16 %v2399, %v2395
  %v2656 = vpack.c.b16 %v2400, %v2396
  %v2657 = vpack.c.b16 %v2401, %v2397
  %v2658 = vpack.c.b16 %v2406, %v2402
  %v2659 = vpack.c.b16 %v2407, %v2403
  %v2660 = vpack.c.b16 %v2408, %v2404
  %v2661 = vpack.c.b16 %v2409, %v2405
  %v2662 = vpack.c.b16 %v2414, %v2410
  %v2663 = vpack.c.b16 %v2415, %v2411
  %v2664 = vpack.c.b16 %v2416, %v2412
  %v2665 = vpack.c.b16 %v2417, %v2413
  %v2666 = vpack.c.b16 %v2422, %v2418
  %v2667 = vpack.c.b16 %v2423, %v2419
  %v2668 = vpack.c.b16 %v2424, %v2420
  %v2669 = vpack.c.b16 %v2425, %v2421
  %v2670 = vpack.c.b16 %v2430, %v2426
  %v2671 = vpack.c.b16 %v2431, %v2427
  %v2672 = vpack.c.b16 %v2432, %v2428
  %v2673 = vpack.c.b16 %v2433, %v2429
  %v2674 = vpack.c.b16 %v2438, %v2434
  %v2675 = vpack.c.b16 %v2439, %v2435
  %v2676 = vpack.c.b16 %v2440, %v2436
  %v2677 = vpack.c.b16 %v2441, %v2437
  %v2678 = vpack.c.b16 %v2446, %v2442
  %v2679 = vpack.c.b16 %v2447, %v2443
  %v2680 = vpack.c.b16 %v2448, %v2444
  %v2681 = vpack.c.b16 %v2449, %v2445
  %v2682 = vpack.c.b16 %v2454, %v2450
  %v2683 = vpack.c.b16 %v2455, %v2451
  %v2684 = vpack.c.b16 %v2456, %v2452
  %v2685 = vpack.c.b16 %v2457, %v2453
  %v2686 = vpack.c.b16 %v2462, %v2458
  %v2687 = vpack.c.b16 %v2463, %v2459
  %v2688 = vpack.c.b16 %v2464, %v2460
  %v2689 = vpack.c.b16 %v2465, %v2461
  %v2690 = vpack.c.b16 %v2470, %v2466
  %v2691 = vpack.c.b16 %v2471, %v2467
  %v2692 = vpack.c.b16 %v2472, %v2468
  %v2693 = vpack.c.b16 %v2473, %v2469
  %v2694 = vpack.c.b16 %v2478, %v2474
  %v2695 = vpack.c.b16 %v2479, %v2475
  %v2696 = vpack.c.b16 %v2480, %v2476
  %v2697 = vpack.c.b16 %v2481, %v2477
  %v2698 = vpack.c.b16 %v2486, %v2482
  %v2699 = vpack.c.b16 %v2487, %v2483
  %v2700 = vpack.c.b16 %v2488, %v2484
  %v2701 = vpack.c.b16 %v2489, %v2485
  %v2702 = vpack.c.b16 %v2494, %v2490
  %v2703 = vpack.c.b16 %v2495, %v2491
  %v2704 = vpack.c.b16 %v2496, %v2492
  %v2705 = vpack.c.b16 %v2497, %v2493
  %v2706 = vpack.c.b16 %v2502, %v2498
  %v2707 = vpack.c.b16 %v2503, %v2499
  %v2708 = vpack.c.b16 %v2504, %v2500
  %v2709 = vpack.c.b16 %v2505, %v2501
  %v2710 = vpack.c.b16 %v2510, %v2506
  %v2711 = vpack.c.b16 %v2511, %v2507
  %v2712 = vpack.c.b16 %v2512, %v2508
  %v2713 = vpack.c.b16 %v2513, %v2509
  %v2714 = vpack.c.b16 %v2518, %v2514
  %v2715 = vpack.c.b16 %v2519, %v2515
  %v2716 = vpack.c.b16 %v2520, %v2516
  %v2717 = vpack.c.b16 %v2521, %v2517
  %v2718 = vpack.c.b16 %v2526, %v2522
  %v2719 = vpack.c.b16 %v2527, %v2523
  %v2720 = vpack.c.b16 %v2528, %v2524
  %v2721 = vpack.c.b16 %v2529, %v2525
  %v2722 = vpack.c.b16 %v2534, %v2530
  %v2723 = vpack.c.b16 %v2535, %v2531
  %v2724 = vpack.c.b16 %v2536, %v2532
  %v2725 = vpack.c.b16 %v2537, %v2533
  %v2726 = vpack.c.b16 %v2542, %v2538
  %v2727 = vpack.c.b16 %v2543, %v2539
  %v2728 = vpack.c.b16 %v2544, %v2540
  %v2729 = vpack.c.b16 %v2545, %v2541
  %v2730 = vpack.c.b16 %v2550, %v2546
  %v2731 = vpack.c.b16 %v2551, %v2547
  %v2732 = vpack.c.b16 %v2552, %v2548
  %v2733 = vpack.c.b16 %v2553, %v2549
  %vm2914 = vcmask 654336
  %v2916 = vsel %vm2914, %v1787, 0
  %v2919 = vsel %vm2914, %v1793, 0
  %v2922 = vsel %vm2914, %v1799, 0
  %v2925 = vsel %vm2914, %v1805, 0
  %v2928 = vsel %vm2914, %v1811, 0
  %2930 = vmatprep.subr.bf16.mxu0 %v2583
  %2931 = vmatpush1.bf16.msra.mxu0 %v2582
  %2932 = vmatprep.subr.bf16.mxu0 %v2579
  %2933 = vmatpush1.bf16.msra.mxu0 %v2578
  %2934 = vmatprep.subr.bf16.mxu0 %v2575
  %2935 = vmatpush1.bf16.msra.mxu0 %v2574
  %2936 = vmatprep.subr.bf16.mxu0 %v2571
  %2937 = vmatpush1.bf16.msra.mxu0 %v2570
  %2938 = vmatprep.subr.bf16.mxu0 %v2567
  %2939 = vmatpush1.bf16.msra.mxu0 %v2566
  %2940 = vmatprep.subr.bf16.mxu0 %v2563
  %2941 = vmatpush1.bf16.msra.mxu0 %v2562
  %2942 = vmatprep.subr.bf16.mxu0 %v2559
  %2943 = vmatpush1.bf16.msra.mxu0 %v2558
  %2944 = vmatprep.subr.bf16.mxu0 %v2555
  %2945 = vmatpush1.bf16.msra.mxu0 %v2554
  %2946 = vmatprep.subr.bf16.mxu0 %v2615
  %2947 = vmatpush2.bf16.msra.mxu0 %v2614
  %2948 = vmatprep.subr.bf16.mxu0 %v2611
  %2949 = vmatpush2.bf16.msra.mxu0 %v2610
  %2950 = vmatprep.subr.bf16.mxu0 %v2607
  %2951 = vmatpush2.bf16.msra.mxu0 %v2606
  %2952 = vmatprep.subr.bf16.mxu0 %v2603
  %2953 = vmatpush2.bf16.msra.mxu0 %v2602
  %2954 = vmatprep.subr.bf16.mxu0 %v2599
  %2955 = vmatpush2.bf16.msra.mxu0 %v2598
  %2956 = vmatprep.subr.bf16.mxu0 %v2595
  %2957 = vmatpush2.bf16.msra.mxu0 %v2594
  %2958 = vmatprep.subr.bf16.mxu0 %v2591
  %2959 = vmatpush2.bf16.msra.mxu0 %v2590
  %2960 = vmatprep.subr.bf16.mxu0 %v2587
  %2961 = vmatpush2.bf16.msra.mxu0 %v2586
  %2962 = vmatprep.mubr.bf16.mxu0 %v1783
  %2963 = vmatmul.mubr.bf16.gmra.mxu0 %v1782
  %v2964 = vpop.f32.mrf.mxu0
  %v2965 = vadd.f32 %v1997, %v2964
  %v2966 = vpop.f32.mrf.mxu0
  %v2967 = vadd.f32 %v2001, %v2966
  %v2968 = vpop.f32.mrf.mxu0
  %v2969 = vadd.f32 %v1997, %v2968
  %v2970 = vpop.f32.mrf.mxu0
  %v2971 = vadd.f32 %v2001, %v2970
  %2972 = vmatprep.mubr.bf16.mxu0 %v1789
  %2973 = vmatmul.mubr.bf16.gmra.mxu0 %v1788
  %v2974 = vpop.f32.mrf.mxu0
  %v2975 = vadd.f32 %v1997, %v2974
  %v2976 = vpop.f32.mrf.mxu0
  %v2977 = vadd.f32 %v2001, %v2976
  %v2978 = vpop.f32.mrf.mxu0
  %v2979 = vadd.f32 %v1997, %v2978
  %v2980 = vpop.f32.mrf.mxu0
  %v2981 = vadd.f32 %v2001, %v2980
  %2982 = vmatprep.mubr.bf16.mxu0 %v1795
  %2983 = vmatmul.mubr.bf16.gmra.mxu0 %v1794
  %v2984 = vpop.f32.mrf.mxu0
  %v2985 = vadd.f32 %v1997, %v2984
  %v2986 = vpop.f32.mrf.mxu0
  %v2987 = vadd.f32 %v2001, %v2986
  %v2988 = vpop.f32.mrf.mxu0
  %v2989 = vadd.f32 %v1997, %v2988
  %v2990 = vpop.f32.mrf.mxu0
  %v2991 = vadd.f32 %v2001, %v2990
  %2992 = vmatprep.mubr.bf16.mxu0 %v1801
  %2993 = vmatmul.mubr.bf16.gmra.mxu0 %v1800
  %v2994 = vpop.f32.mrf.mxu0
  %v2995 = vadd.f32 %v1997, %v2994
  %v2996 = vpop.f32.mrf.mxu0
  %v2997 = vadd.f32 %v2001, %v2996
  %v2998 = vpop.f32.mrf.mxu0
  %v2999 = vadd.f32 %v1997, %v2998
  %v3000 = vpop.f32.mrf.mxu0
  %v3001 = vadd.f32 %v2001, %v3000
  %3002 = vmatprep.mubr.bf16.mxu0 %v1807
  %3003 = vmatmul.mubr.bf16.gmra.mxu0 %v1806
  %v3004 = vpop.f32.mrf.mxu0
  %v3005 = vadd.f32 %v1997, %v3004
  %v3006 = vpop.f32.mrf.mxu0
  %v3007 = vadd.f32 %v2001, %v3006
  %v3008 = vpop.f32.mrf.mxu0
  %v3009 = vadd.f32 %v1997, %v3008
  %v3010 = vpop.f32.mrf.mxu0
  %v3011 = vadd.f32 %v2001, %v3010
  %3012 = vdwg.mxu0
  %3013 = vmatprep.subr.bf16.mxu0 %v2647
  %3014 = vmatpush1.bf16.msra.mxu0 %v2646
  %3015 = vmatprep.subr.bf16.mxu0 %v2643
  %3016 = vmatpush1.bf16.msra.mxu0 %v2642
  %3017 = vmatprep.subr.bf16.mxu0 %v2639
  %3018 = vmatpush1.bf16.msra.mxu0 %v2638
  %3019 = vmatprep.subr.bf16.mxu0 %v2635
  %3020 = vmatpush1.bf16.msra.mxu0 %v2634
  %3021 = vmatprep.subr.bf16.mxu0 %v2631
  %3022 = vmatpush1.bf16.msra.mxu0 %v2630
  %3023 = vmatprep.subr.bf16.mxu0 %v2627
  %3024 = vmatpush1.bf16.msra.mxu0 %v2626
  %3025 = vmatprep.subr.bf16.mxu0 %v2623
  %3026 = vmatpush1.bf16.msra.mxu0 %v2622
  %3027 = vmatprep.subr.bf16.mxu0 %v2619
  %3028 = vmatpush1.bf16.msra.mxu0 %v2618
  %3029 = vmatprep.subr.bf16.mxu0 %v2679
  %3030 = vmatpush2.bf16.msra.mxu0 %v2678
  %3031 = vmatprep.subr.bf16.mxu0 %v2675
  %3032 = vmatpush2.bf16.msra.mxu0 %v2674
  %3033 = vmatprep.subr.bf16.mxu0 %v2671
  %3034 = vmatpush2.bf16.msra.mxu0 %v2670
  %3035 = vmatprep.subr.bf16.mxu0 %v2667
  %3036 = vmatpush2.bf16.msra.mxu0 %v2666
  %3037 = vmatprep.subr.bf16.mxu0 %v2663
  %3038 = vmatpush2.bf16.msra.mxu0 %v2662
  %3039 = vmatprep.subr.bf16.mxu0 %v2659
  %3040 = vmatpush2.bf16.msra.mxu0 %v2658
  %3041 = vmatprep.subr.bf16.mxu0 %v2655
  %3042 = vmatpush2.bf16.msra.mxu0 %v2654
  %3043 = vmatprep.subr.bf16.mxu0 %v2651
  %3044 = vmatpush2.bf16.msra.mxu0 %v2650
  %3045 = vmatprep.mubr.bf16.mxu0 %v1785
  %3046 = vmatmul.mubr.bf16.gmra.mxu0 %v1784
  %v3047 = vpop.f32.mrf.mxu0
  %v3048 = vadd.f32 %v2965, %v3047
  %v3049 = vpop.f32.mrf.mxu0
  %v3050 = vadd.f32 %v2967, %v3049
  %v3051 = vpop.f32.mrf.mxu0
  %v3052 = vadd.f32 %v2969, %v3051
  %v3053 = vpop.f32.mrf.mxu0
  %v3054 = vadd.f32 %v2971, %v3053
  %3055 = vmatprep.mubr.bf16.mxu0 %v1791
  %3056 = vmatmul.mubr.bf16.gmra.mxu0 %v1790
  %v3057 = vpop.f32.mrf.mxu0
  %v3058 = vadd.f32 %v2975, %v3057
  %v3059 = vpop.f32.mrf.mxu0
  %v3060 = vadd.f32 %v2977, %v3059
  %v3061 = vpop.f32.mrf.mxu0
  %v3062 = vadd.f32 %v2979, %v3061
  %v3063 = vpop.f32.mrf.mxu0
  %v3064 = vadd.f32 %v2981, %v3063
  %3065 = vmatprep.mubr.bf16.mxu0 %v1797
  %3066 = vmatmul.mubr.bf16.gmra.mxu0 %v1796
  %v3067 = vpop.f32.mrf.mxu0
  %v3068 = vadd.f32 %v2985, %v3067
  %v3069 = vpop.f32.mrf.mxu0
  %v3070 = vadd.f32 %v2987, %v3069
  %v3071 = vpop.f32.mrf.mxu0
  %v3072 = vadd.f32 %v2989, %v3071
  %v3073 = vpop.f32.mrf.mxu0
  %v3074 = vadd.f32 %v2991, %v3073
  %3075 = vmatprep.mubr.bf16.mxu0 %v1803
  %3076 = vmatmul.mubr.bf16.gmra.mxu0 %v1802
  %v3077 = vpop.f32.mrf.mxu0
  %v3078 = vadd.f32 %v2995, %v3077
  %v3079 = vpop.f32.mrf.mxu0
  %v3080 = vadd.f32 %v2997, %v3079
  %v3081 = vpop.f32.mrf.mxu0
  %v3082 = vadd.f32 %v2999, %v3081
  %v3083 = vpop.f32.mrf.mxu0
  %v3084 = vadd.f32 %v3001, %v3083
  %3085 = vmatprep.mubr.bf16.mxu0 %v1809
  %3086 = vmatmul.mubr.bf16.gmra.mxu0 %v1808
  %v3087 = vpop.f32.mrf.mxu0
  %v3088 = vadd.f32 %v3005, %v3087
  %v3089 = vpop.f32.mrf.mxu0
  %v3090 = vadd.f32 %v3007, %v3089
  %v3091 = vpop.f32.mrf.mxu0
  %v3092 = vadd.f32 %v3009, %v3091
  %v3093 = vpop.f32.mrf.mxu0
  %v3094 = vadd.f32 %v3011, %v3093
  %3095 = vdwg.mxu0
  %3096 = vmatprep.subr.bf16.mxu0 %v2711
  %3097 = vmatpush1.bf16.msra.mxu0 %v2710
  %3098 = vmatprep.subr.bf16.mxu0 %v2707
  %3099 = vmatpush1.bf16.msra.mxu0 %v2706
  %3100 = vmatprep.subr.bf16.mxu0 %v2703
  %3101 = vmatpush1.bf16.msra.mxu0 %v2702
  %3102 = vmatprep.subr.bf16.mxu0 %v2699
  %3103 = vmatpush1.bf16.msra.mxu0 %v2698
  %3104 = vmatprep.subr.bf16.mxu0 %v2695
  %3105 = vmatpush1.bf16.msra.mxu0 %v2694
  %3106 = vmatprep.subr.bf16.mxu0 %v2691
  %3107 = vmatpush1.bf16.msra.mxu0 %v2690
  %3108 = vmatprep.subr.bf16.mxu0 %v2687
  %3109 = vmatpush1.bf16.msra.mxu0 %v2686
  %3110 = vmatprep.subr.bf16.mxu0 %v2683
  %3111 = vmatpush1.bf16.msra.mxu0 %v2682
  %3112 = vmatprep.subr.bf16.mxu0 0
  %3113 = vmatpush2.bf16.msra.mxu0 0
  %3114 = vmatprep.subr.bf16.mxu0 0
  %3115 = vmatpush2.bf16.msra.mxu0 0
  %3116 = vmatprep.subr.bf16.mxu0 0
  %3117 = vmatpush2.bf16.msra.mxu0 0
  %3118 = vmatprep.subr.bf16.mxu0 %v2731
  %3119 = vmatpush2.bf16.msra.mxu0 %v2730
  %3120 = vmatprep.subr.bf16.mxu0 %v2727
  %3121 = vmatpush2.bf16.msra.mxu0 %v2726
  %3122 = vmatprep.subr.bf16.mxu0 %v2723
  %3123 = vmatpush2.bf16.msra.mxu0 %v2722
  %3124 = vmatprep.subr.bf16.mxu0 %v2719
  %3125 = vmatpush2.bf16.msra.mxu0 %v2718
  %3126 = vmatprep.subr.bf16.mxu0 %v2715
  %3127 = vmatpush2.bf16.msra.mxu0 %v2714
  %3128 = vmatprep.mubr.bf16.mxu0 %v2916
  %3129 = vmatmul.mubr.bf16.gmra.mxu0 %v1786
  %v3130 = vpop.f32.mrf.mxu0
  %v3131 = vadd.f32 %v3048, %v3130
  %v3132 = vpop.f32.mrf.mxu0
  %v3133 = vadd.f32 %v3050, %v3132
  %v3134 = vpop.f32.mrf.mxu0
  %v3135 = vadd.f32 %v3052, %v3134
  %v3136 = vpop.f32.mrf.mxu0
  %v3137 = vadd.f32 %v3054, %v3136
  %3138 = vmatprep.mubr.bf16.mxu0 %v2919
  %3139 = vmatmul.mubr.bf16.gmra.mxu0 %v1792
  %v3140 = vpop.f32.mrf.mxu0
  %v3141 = vadd.f32 %v3058, %v3140
  %v3142 = vpop.f32.mrf.mxu0
  %v3143 = vadd.f32 %v3060, %v3142
  %v3144 = vpop.f32.mrf.mxu0
  %v3145 = vadd.f32 %v3062, %v3144
  %v3146 = vpop.f32.mrf.mxu0
  %v3147 = vadd.f32 %v3064, %v3146
  %3148 = vmatprep.mubr.bf16.mxu0 %v2922
  %3149 = vmatmul.mubr.bf16.gmra.mxu0 %v1798
  %v3150 = vpop.f32.mrf.mxu0
  %v3151 = vadd.f32 %v3068, %v3150
  %v3152 = vpop.f32.mrf.mxu0
  %v3153 = vadd.f32 %v3070, %v3152
  %v3154 = vpop.f32.mrf.mxu0
  %v3155 = vadd.f32 %v3072, %v3154
  %v3156 = vpop.f32.mrf.mxu0
  %v3157 = vadd.f32 %v3074, %v3156
  %3158 = vmatprep.mubr.bf16.mxu0 %v2925
  %3159 = vmatmul.mubr.bf16.gmra.mxu0 %v1804
  %v3160 = vpop.f32.mrf.mxu0
  %v3161 = vadd.f32 %v3078, %v3160
  %v3162 = vpop.f32.mrf.mxu0
  %v3163 = vadd.f32 %v3080, %v3162
  %v3164 = vpop.f32.mrf.mxu0
  %v3165 = vadd.f32 %v3082, %v3164
  %v3166 = vpop.f32.mrf.mxu0
  %v3167 = vadd.f32 %v3084, %v3166
  %3168 = vmatprep.mubr.bf16.mxu0 %v2928
  %3169 = vmatmul.mubr.bf16.gmra.mxu0 %v1810
  %v3170 = vpop.f32.mrf.mxu0
  %v3171 = vadd.f32 %v3088, %v3170
  %v3172 = vpop.f32.mrf.mxu0
  %v3173 = vadd.f32 %v3090, %v3172
  %v3174 = vpop.f32.mrf.mxu0
  %v3175 = vadd.f32 %v3092, %v3174
  %v3176 = vpop.f32.mrf.mxu0
  %v3177 = vadd.f32 %v3094, %v3176
  %3178 = vdwg.mxu0
  %3179 = vmatprep.subr.bf16.mxu0 %v2585
  %3180 = vmatpush1.bf16.msra.mxu0 %v2584
  %3181 = vmatprep.subr.bf16.mxu0 %v2581
  %3182 = vmatpush1.bf16.msra.mxu0 %v2580
  %3183 = vmatprep.subr.bf16.mxu0 %v2577
  %3184 = vmatpush1.bf16.msra.mxu0 %v2576
  %3185 = vmatprep.subr.bf16.mxu0 %v2573
  %3186 = vmatpush1.bf16.msra.mxu0 %v2572
  %3187 = vmatprep.subr.bf16.mxu0 %v2569
  %3188 = vmatpush1.bf16.msra.mxu0 %v2568
  %3189 = vmatprep.subr.bf16.mxu0 %v2565
  %3190 = vmatpush1.bf16.msra.mxu0 %v2564
  %3191 = vmatprep.subr.bf16.mxu0 %v2561
  %3192 = vmatpush1.bf16.msra.mxu0 %v2560
  %3193 = vmatprep.subr.bf16.mxu0 %v2557
  %3194 = vmatpush1.bf16.msra.mxu0 %v2556
  %3195 = vmatprep.subr.bf16.mxu0 %v2617
  %3196 = vmatpush2.bf16.msra.mxu0 %v2616
  %3197 = vmatprep.subr.bf16.mxu0 %v2613
  %3198 = vmatpush2.bf16.msra.mxu0 %v2612
  %3199 = vmatprep.subr.bf16.mxu0 %v2609
  %3200 = vmatpush2.bf16.msra.mxu0 %v2608
  %3201 = vmatprep.subr.bf16.mxu0 %v2605
  %3202 = vmatpush2.bf16.msra.mxu0 %v2604
  %3203 = vmatprep.subr.bf16.mxu0 %v2601
  %3204 = vmatpush2.bf16.msra.mxu0 %v2600
  %3205 = vmatprep.subr.bf16.mxu0 %v2597
  %3206 = vmatpush2.bf16.msra.mxu0 %v2596
  %3207 = vmatprep.subr.bf16.mxu0 %v2593
  %3208 = vmatpush2.bf16.msra.mxu0 %v2592
  %3209 = vmatprep.subr.bf16.mxu0 %v2589
  %3210 = vmatpush2.bf16.msra.mxu0 %v2588
  %3211 = vmatprep.mubr.bf16.mxu0 %v1783
  %3212 = vmatmul.mubr.bf16.gmra.mxu0 %v1782
  %v3213 = vpop.f32.mrf.mxu0
  %v3214 = vadd.f32 %v2005, %v3213
  %v3215 = vpop.f32.mrf.mxu0
  %v3216 = vadd.f32 %v2009, %v3215
  %v3217 = vpop.f32.mrf.mxu0
  %v3218 = vadd.f32 %v2005, %v3217
  %v3219 = vpop.f32.mrf.mxu0
  %v3220 = vadd.f32 %v2009, %v3219
  %3221 = vmatprep.mubr.bf16.mxu0 %v1789
  %3222 = vmatmul.mubr.bf16.gmra.mxu0 %v1788
  %v3223 = vpop.f32.mrf.mxu0
  %v3224 = vadd.f32 %v2005, %v3223
  %v3225 = vpop.f32.mrf.mxu0
  %v3226 = vadd.f32 %v2009, %v3225
  %v3227 = vpop.f32.mrf.mxu0
  %v3228 = vadd.f32 %v2005, %v3227
  %v3229 = vpop.f32.mrf.mxu0
  %v3230 = vadd.f32 %v2009, %v3229
  %3231 = vmatprep.mubr.bf16.mxu0 %v1795
  %3232 = vmatmul.mubr.bf16.gmra.mxu0 %v1794
  %v3233 = vpop.f32.mrf.mxu0
  %v3234 = vadd.f32 %v2005, %v3233
  %v3235 = vpop.f32.mrf.mxu0
  %v3236 = vadd.f32 %v2009, %v3235
  %v3237 = vpop.f32.mrf.mxu0
  %v3238 = vadd.f32 %v2005, %v3237
  %v3239 = vpop.f32.mrf.mxu0
  %v3240 = vadd.f32 %v2009, %v3239
  %3241 = vmatprep.mubr.bf16.mxu0 %v1801
  %3242 = vmatmul.mubr.bf16.gmra.mxu0 %v1800
  %v3243 = vpop.f32.mrf.mxu0
  %v3244 = vadd.f32 %v2005, %v3243
  %v3245 = vpop.f32.mrf.mxu0
  %v3246 = vadd.f32 %v2009, %v3245
  %v3247 = vpop.f32.mrf.mxu0
  %v3248 = vadd.f32 %v2005, %v3247
  %v3249 = vpop.f32.mrf.mxu0
  %v3250 = vadd.f32 %v2009, %v3249
  %3251 = vmatprep.mubr.bf16.mxu0 %v1807
  %3252 = vmatmul.mubr.bf16.gmra.mxu0 %v1806
  %v3253 = vpop.f32.mrf.mxu0
  %v3254 = vadd.f32 %v2005, %v3253
  %v3255 = vpop.f32.mrf.mxu0
  %v3256 = vadd.f32 %v2009, %v3255
  %v3257 = vpop.f32.mrf.mxu0
  %v3258 = vadd.f32 %v2005, %v3257
  %v3259 = vpop.f32.mrf.mxu0
  %v3260 = vadd.f32 %v2009, %v3259
  %3261 = vdwg.mxu0
  %3262 = vmatprep.subr.bf16.mxu0 %v2649
  %3263 = vmatpush1.bf16.msra.mxu0 %v2648
  %3264 = vmatprep.subr.bf16.mxu0 %v2645
  %3265 = vmatpush1.bf16.msra.mxu0 %v2644
  %3266 = vmatprep.subr.bf16.mxu0 %v2641
  %3267 = vmatpush1.bf16.msra.mxu0 %v2640
  %3268 = vmatprep.subr.bf16.mxu0 %v2637
  %3269 = vmatpush1.bf16.msra.mxu0 %v2636
  %3270 = vmatprep.subr.bf16.mxu0 %v2633
  %3271 = vmatpush1.bf16.msra.mxu0 %v2632
  %3272 = vmatprep.subr.bf16.mxu0 %v2629
  %3273 = vmatpush1.bf16.msra.mxu0 %v2628
  %3274 = vmatprep.subr.bf16.mxu0 %v2625
  %3275 = vmatpush1.bf16.msra.mxu0 %v2624
  %3276 = vmatprep.subr.bf16.mxu0 %v2621
  %3277 = vmatpush1.bf16.msra.mxu0 %v2620
  %3278 = vmatprep.subr.bf16.mxu0 %v2681
  %3279 = vmatpush2.bf16.msra.mxu0 %v2680
  %3280 = vmatprep.subr.bf16.mxu0 %v2677
  %3281 = vmatpush2.bf16.msra.mxu0 %v2676
  %3282 = vmatprep.subr.bf16.mxu0 %v2673
  %3283 = vmatpush2.bf16.msra.mxu0 %v2672
  %3284 = vmatprep.subr.bf16.mxu0 %v2669
  %3285 = vmatpush2.bf16.msra.mxu0 %v2668
  %3286 = vmatprep.subr.bf16.mxu0 %v2665
  %3287 = vmatpush2.bf16.msra.mxu0 %v2664
  %3288 = vmatprep.subr.bf16.mxu0 %v2661
  %3289 = vmatpush2.bf16.msra.mxu0 %v2660
  %3290 = vmatprep.subr.bf16.mxu0 %v2657
  %3291 = vmatpush2.bf16.msra.mxu0 %v2656
  %3292 = vmatprep.subr.bf16.mxu0 %v2653
  %3293 = vmatpush2.bf16.msra.mxu0 %v2652
  %3294 = vmatprep.mubr.bf16.mxu0 %v1785
  %3295 = vmatmul.mubr.bf16.gmra.mxu0 %v1784
  %v3296 = vpop.f32.mrf.mxu0
  %v3297 = vadd.f32 %v3214, %v3296
  %v3298 = vpop.f32.mrf.mxu0
  %v3299 = vadd.f32 %v3216, %v3298
  %v3300 = vpop.f32.mrf.mxu0
  %v3301 = vadd.f32 %v3218, %v3300
  %v3302 = vpop.f32.mrf.mxu0
  %v3303 = vadd.f32 %v3220, %v3302
  %3304 = vmatprep.mubr.bf16.mxu0 %v1791
  %3305 = vmatmul.mubr.bf16.gmra.mxu0 %v1790
  %v3306 = vpop.f32.mrf.mxu0
  %v3307 = vadd.f32 %v3224, %v3306
  %v3308 = vpop.f32.mrf.mxu0
  %v3309 = vadd.f32 %v3226, %v3308
  %v3310 = vpop.f32.mrf.mxu0
  %v3311 = vadd.f32 %v3228, %v3310
  %v3312 = vpop.f32.mrf.mxu0
  %v3313 = vadd.f32 %v3230, %v3312
  %3314 = vmatprep.mubr.bf16.mxu0 %v1797
  %3315 = vmatmul.mubr.bf16.gmra.mxu0 %v1796
  %v3316 = vpop.f32.mrf.mxu0
  %v3317 = vadd.f32 %v3234, %v3316
  %v3318 = vpop.f32.mrf.mxu0
  %v3319 = vadd.f32 %v3236, %v3318
  %v3320 = vpop.f32.mrf.mxu0
  %v3321 = vadd.f32 %v3238, %v3320
  %v3322 = vpop.f32.mrf.mxu0
  %v3323 = vadd.f32 %v3240, %v3322
  %3324 = vmatprep.mubr.bf16.mxu0 %v1803
  %3325 = vmatmul.mubr.bf16.gmra.mxu0 %v1802
  %v3326 = vpop.f32.mrf.mxu0
  %v3327 = vadd.f32 %v3244, %v3326
  %v3328 = vpop.f32.mrf.mxu0
  %v3329 = vadd.f32 %v3246, %v3328
  %v3330 = vpop.f32.mrf.mxu0
  %v3331 = vadd.f32 %v3248, %v3330
  %v3332 = vpop.f32.mrf.mxu0
  %v3333 = vadd.f32 %v3250, %v3332
  %3334 = vmatprep.mubr.bf16.mxu0 %v1809
  %3335 = vmatmul.mubr.bf16.gmra.mxu0 %v1808
  %v3336 = vpop.f32.mrf.mxu0
  %v3337 = vadd.f32 %v3254, %v3336
  %v3338 = vpop.f32.mrf.mxu0
  %v3339 = vadd.f32 %v3256, %v3338
  %v3340 = vpop.f32.mrf.mxu0
  %v3341 = vadd.f32 %v3258, %v3340
  %v3342 = vpop.f32.mrf.mxu0
  %v3343 = vadd.f32 %v3260, %v3342
  %3344 = vdwg.mxu0
  %3345 = vmatprep.subr.bf16.mxu0 %v2713
  %3346 = vmatpush1.bf16.msra.mxu0 %v2712
  %3347 = vmatprep.subr.bf16.mxu0 %v2709
  %3348 = vmatpush1.bf16.msra.mxu0 %v2708
  %3349 = vmatprep.subr.bf16.mxu0 %v2705
  %3350 = vmatpush1.bf16.msra.mxu0 %v2704
  %3351 = vmatprep.subr.bf16.mxu0 %v2701
  %3352 = vmatpush1.bf16.msra.mxu0 %v2700
  %3353 = vmatprep.subr.bf16.mxu0 %v2697
  %3354 = vmatpush1.bf16.msra.mxu0 %v2696
  %3355 = vmatprep.subr.bf16.mxu0 %v2693
  %3356 = vmatpush1.bf16.msra.mxu0 %v2692
  %3357 = vmatprep.subr.bf16.mxu0 %v2689
  %3358 = vmatpush1.bf16.msra.mxu0 %v2688
  %3359 = vmatprep.subr.bf16.mxu0 %v2685
  %3360 = vmatpush1.bf16.msra.mxu0 %v2684
  %3361 = vmatprep.subr.bf16.mxu0 0
  %3362 = vmatpush2.bf16.msra.mxu0 0
  %3363 = vmatprep.subr.bf16.mxu0 0
  %3364 = vmatpush2.bf16.msra.mxu0 0
  %3365 = vmatprep.subr.bf16.mxu0 0
  %3366 = vmatpush2.bf16.msra.mxu0 0
  %3367 = vmatprep.subr.bf16.mxu0 %v2733
  %3368 = vmatpush2.bf16.msra.mxu0 %v2732
  %3369 = vmatprep.subr.bf16.mxu0 %v2729
  %3370 = vmatpush2.bf16.msra.mxu0 %v2728
  %3371 = vmatprep.subr.bf16.mxu0 %v2725
  %3372 = vmatpush2.bf16.msra.mxu0 %v2724
  %3373 = vmatprep.subr.bf16.mxu0 %v2721
  %3374 = vmatpush2.bf16.msra.mxu0 %v2720
  %3375 = vmatprep.subr.bf16.mxu0 %v2717
  %3376 = vmatpush2.bf16.msra.mxu0 %v2716
  %3377 = vmatprep.mubr.bf16.mxu0 %v2916
  %3378 = vmatmul.mubr.bf16.gmra.mxu0 %v1786
  %v3379 = vpop.f32.mrf.mxu0
  %v3380 = vadd.f32 %v3297, %v3379
  %v3381 = vpop.f32.mrf.mxu0
  %v3382 = vadd.f32 %v3299, %v3381
  %v3383 = vpop.f32.mrf.mxu0
  %v3384 = vadd.f32 %v3301, %v3383
  %v3385 = vpop.f32.mrf.mxu0
  %v3386 = vadd.f32 %v3303, %v3385
  %3387 = vmatprep.mubr.bf16.mxu0 %v2919
  %3388 = vmatmul.mubr.bf16.gmra.mxu0 %v1792
  %v3389 = vpop.f32.mrf.mxu0
  %v3390 = vadd.f32 %v3307, %v3389
  %v3391 = vpop.f32.mrf.mxu0
  %v3392 = vadd.f32 %v3309, %v3391
  %v3393 = vpop.f32.mrf.mxu0
  %v3394 = vadd.f32 %v3311, %v3393
  %v3395 = vpop.f32.mrf.mxu0
  %v3396 = vadd.f32 %v3313, %v3395
  %3397 = vmatprep.mubr.bf16.mxu0 %v2922
  %3398 = vmatmul.mubr.bf16.gmra.mxu0 %v1798
  %v3399 = vpop.f32.mrf.mxu0
  %v3400 = vadd.f32 %v3317, %v3399
  %v3401 = vpop.f32.mrf.mxu0
  %v3402 = vadd.f32 %v3319, %v3401
  %v3403 = vpop.f32.mrf.mxu0
  %v3404 = vadd.f32 %v3321, %v3403
  %v3405 = vpop.f32.mrf.mxu0
  %v3406 = vadd.f32 %v3323, %v3405
  %3407 = vmatprep.mubr.bf16.mxu0 %v2925
  %3408 = vmatmul.mubr.bf16.gmra.mxu0 %v1804
  %v3409 = vpop.f32.mrf.mxu0
  %v3410 = vadd.f32 %v3327, %v3409
  %v3411 = vpop.f32.mrf.mxu0
  %v3412 = vadd.f32 %v3329, %v3411
  %v3413 = vpop.f32.mrf.mxu0
  %v3414 = vadd.f32 %v3331, %v3413
  %v3415 = vpop.f32.mrf.mxu0
  %v3416 = vadd.f32 %v3333, %v3415
  %3417 = vmatprep.mubr.bf16.mxu0 %v2928
  %3418 = vmatmul.mubr.bf16.gmra.mxu0 %v1810
  %v3419 = vpop.f32.mrf.mxu0
  %v3420 = vadd.f32 %v3337, %v3419
  %v3421 = vpop.f32.mrf.mxu0
  %v3422 = vadd.f32 %v3339, %v3421
  %v3423 = vpop.f32.mrf.mxu0
  %v3424 = vadd.f32 %v3341, %v3423
  %v3425 = vpop.f32.mrf.mxu0
  %v3426 = vadd.f32 %v3343, %v3425
  %3427 = vdwg.mxu0
  %v3428 = vmax.f32 %v3131, 0.0
  %v3429 = vmax.f32 %v3133, 0.0
  %v3430 = vmax.f32 %v3380, 0.0
  %v3431 = vmax.f32 %v3382, 0.0
  %v3432 = vmax.f32 %v3135, 0.0
  %v3433 = vmax.f32 %v3137, 0.0
  %v3434 = vmax.f32 %v3384, 0.0
  %v3435 = vmax.f32 %v3386, 0.0
  %v3436 = vmax.f32 %v3141, 0.0
  %v3437 = vmax.f32 %v3143, 0.0
  %v3438 = vmax.f32 %v3390, 0.0
  %v3439 = vmax.f32 %v3392, 0.0
  %v3440 = vmax.f32 %v3145, 0.0
  %v3441 = vmax.f32 %v3147, 0.0
  %v3442 = vmax.f32 %v3394, 0.0
  %v3443 = vmax.f32 %v3396, 0.0
  %v3444 = vmax.f32 %v3151, 0.0
  %v3445 = vmax.f32 %v3153, 0.0
  %v3446 = vmax.f32 %v3400, 0.0
  %v3447 = vmax.f32 %v3402, 0.0
  %v3448 = vmax.f32 %v3155, 0.0
  %v3449 = vmax.f32 %v3157, 0.0
  %v3450 = vmax.f32 %v3404, 0.0
  %v3451 = vmax.f32 %v3406, 0.0
  %v3452 = vmax.f32 %v3161, 0.0
  %v3453 = vmax.f32 %v3163, 0.0
  %v3454 = vmax.f32 %v3410, 0.0
  %v3455 = vmax.f32 %v3412, 0.0
  %v3456 = vmax.f32 %v3165, 0.0
  %v3457 = vmax.f32 %v3167, 0.0
  %v3458 = vmax.f32 %v3414, 0.0
  %v3459 = vmax.f32 %v3416, 0.0
  %v3460 = vmax.f32 %v3171, 0.0
  %v3461 = vmax.f32 %v3173, 0.0
  %v3462 = vmax.f32 %v3420, 0.0
  %v3463 = vmax.f32 %v3422, 0.0
  %v3464 = vmax.f32 %v3175, 0.0
  %v3465 = vmax.f32 %v3177, 0.0
  %v3466 = vmax.f32 %v3424, 0.0
  %v3467 = vmax.f32 %v3426, 0.0
  %3498 = vrot.lane.b32.xlu0 %v3429, 56
  %v3499 = vpop.permute.xlu0 %3498
  %3500 = vrot.lane.b32.xlu0 %v3430, 56
  %v3501 = vpop.permute.xlu0 %3500
  %3502 = vrot.lane.b32.xlu0 %v3431, 56
  %v3503 = vpop.permute.xlu0 %3502
  %3504 = vrot.lane.b32.xlu0 %v3433, 56
  %v3505 = vpop.permute.xlu0 %3504
  %3506 = vrot.lane.b32.xlu0 %v3434, 56
  %v3507 = vpop.permute.xlu0 %3506
  %3508 = vrot.lane.b32.xlu0 %v3435, 56
  %v3509 = vpop.permute.xlu0 %3508
  %3510 = vrot.lane.b32.xlu0 %v3437, 56
  %v3511 = vpop.permute.xlu0 %3510
  %3512 = vrot.lane.b32.xlu0 %v3438, 56
  %v3513 = vpop.permute.xlu0 %3512
  %3514 = vrot.lane.b32.xlu0 %v3439, 56
  %v3515 = vpop.permute.xlu0 %3514
  %3516 = vrot.lane.b32.xlu0 %v3441, 56
  %v3517 = vpop.permute.xlu0 %3516
  %3518 = vrot.lane.b32.xlu0 %v3442, 56
  %v3519 = vpop.permute.xlu0 %3518
  %3520 = vrot.lane.b32.xlu0 %v3443, 56
  %v3521 = vpop.permute.xlu0 %3520
  %3522 = vrot.lane.b32.xlu0 %v3445, 56
  %v3523 = vpop.permute.xlu0 %3522
  %3524 = vrot.lane.b32.xlu0 %v3446, 56
  %v3525 = vpop.permute.xlu0 %3524
  %3526 = vrot.lane.b32.xlu0 %v3447, 56
  %v3527 = vpop.permute.xlu0 %3526
  %3528 = vrot.lane.b32.xlu0 %v3449, 56
  %v3529 = vpop.permute.xlu0 %3528
  %3530 = vrot.lane.b32.xlu0 %v3450, 56
  %v3531 = vpop.permute.xlu0 %3530
  %3532 = vrot.lane.b32.xlu0 %v3451, 56
  %v3533 = vpop.permute.xlu0 %3532
  %3534 = vrot.lane.b32.xlu0 %v3453, 56
  %v3535 = vpop.permute.xlu0 %3534
  %3536 = vrot.lane.b32.xlu0 %v3454, 56
  %v3537 = vpop.permute.xlu0 %3536
  %3538 = vrot.lane.b32.xlu0 %v3455, 56
  %v3539 = vpop.permute.xlu0 %3538
  %3540 = vrot.lane.b32.xlu0 %v3457, 56
  %v3541 = vpop.permute.xlu0 %3540
  %3542 = vrot.lane.b32.xlu0 %v3458, 56
  %v3543 = vpop.permute.xlu0 %3542
  %3544 = vrot.lane.b32.xlu0 %v3459, 56
  %v3545 = vpop.permute.xlu0 %3544
  %3546 = vrot.lane.b32.xlu0 %v3461, 56
  %v3547 = vpop.permute.xlu0 %3546
  %3548 = vrot.lane.b32.xlu0 %v3462, 56
  %v3549 = vpop.permute.xlu0 %3548
  %3550 = vrot.lane.b32.xlu0 %v3463, 56
  %v3551 = vpop.permute.xlu0 %3550
  %3552 = vrot.lane.b32.xlu0 %v3465, 56
  %v3553 = vpop.permute.xlu0 %3552
  %3554 = vrot.lane.b32.xlu0 %v3466, 56
  %v3555 = vpop.permute.xlu0 %3554
  %3556 = vrot.lane.b32.xlu0 %v3467, 56
  %v3557 = vpop.permute.xlu0 %3556
  %v3558 = vsel %vm409, %v3499, %v3501
  %v3559 = vsel %vm409, %v3501, %v3503
  %v3560 = vsel %vm409, %v3505, %v3507
  %v3561 = vsel %vm409, %v3507, %v3509
  %v3562 = vsel %vm409, %v3511, %v3513
  %v3563 = vsel %vm409, %v3513, %v3515
  %v3564 = vsel %vm409, %v3517, %v3519
  %v3565 = vsel %vm409, %v3519, %v3521
  %v3566 = vsel %vm409, %v3523, %v3525
  %v3567 = vsel %vm409, %v3525, %v3527
  %v3568 = vsel %vm409, %v3529, %v3531
  %v3569 = vsel %vm409, %v3531, %v3533
  %v3570 = vsel %vm409, %v3535, %v3537
  %v3571 = vsel %vm409, %v3537, %v3539
  %v3572 = vsel %vm409, %v3541, %v3543
  %v3573 = vsel %vm409, %v3543, %v3545
  %v3574 = vsel %vm409, %v3547, %v3549
  %v3575 = vsel %vm409, %v3549, %v3551
  %v3576 = vsel %vm409, %v3553, %v3555
  %v3577 = vsel %vm409, %v3555, %v3557
  %v3598 = vmax.f32 %v3428, %v3558
  %v3599 = vmax.f32 %v3429, %v3559
  %v3600 = vmax.f32 %v3432, %v3560
  %v3601 = vmax.f32 %v3433, %v3561
  %v3602 = vmax.f32 %v3436, %v3562
  %v3603 = vmax.f32 %v3437, %v3563
  %v3604 = vmax.f32 %v3440, %v3564
  %v3605 = vmax.f32 %v3441, %v3565
  %v3606 = vmax.f32 %v3444, %v3566
  %v3607 = vmax.f32 %v3445, %v3567
  %v3608 = vmax.f32 %v3448, %v3568
  %v3609 = vmax.f32 %v3449, %v3569
  %v3610 = vmax.f32 %v3452, %v3570
  %v3611 = vmax.f32 %v3453, %v3571
  %v3612 = vmax.f32 %v3456, %v3572
  %v3613 = vmax.f32 %v3457, %v3573
  %v3614 = vmax.f32 %v3460, %v3574
  %v3615 = vmax.f32 %v3461, %v3575
  %v3616 = vmax.f32 %v3464, %v3576
  %v3617 = vmax.f32 %v3465, %v3577
  %v3618 = vmax.f32 %v3598, %v3600
  %v3619 = vmax.f32 %v3599, %v3601
  %v3620 = vpack.c.bf16 %v3618, %v3618
  %v3621 = vpack.c.bf16 %v3619, %v3619
  %v3622 = vld [vmem:[%s5] sm:$0xff]
  %v3623 = vld [vmem:[%s5 + $0x8] sm:$0xff]
  %v3624 = vld [vmem:[%s5 + $0x10] sm:$0xf]
  %v3625 = vld [vmem:[%s5 + $0x14] sm:$0xff]
  %v3626 = vld [vmem:[%s5 + $0x1c] sm:$0xff]
  %v3627 = vld [vmem:[%s5 + $0x24] sm:$0xf]
  %v3628 = vld [vmem:[%s5 + $0x28] sm:$0xff]
  %v3629 = vld [vmem:[%s5 + $0x30] sm:$0xff]
  %v3630 = vld [vmem:[%s5 + $0x38] sm:$0xf]
  %v3631 = vld [vmem:[%s5 + $0x3c] sm:$0xff]
  %v3632 = vld [vmem:[%s5 + $0x44] sm:$0xff]
  %v3633 = vld [vmem:[%s5 + $0x4c] sm:$0xf]
  %v3634 = vld [vmem:[%s5 + $0x50] sm:$0xff]
  %v3635 = vld [vmem:[%s5 + $0x58] sm:$0xff]
  %v3636 = vld [vmem:[%s5 + $0x60] sm:$0xf]
  %v3637 = vld [vmem:[%s5 + $0x64] sm:$0xff]
  %v3638 = vld [vmem:[%s5 + $0x6c] sm:$0xff]
  %v3639 = vld [vmem:[%s5 + $0x74] sm:$0xf]
  %v3640 = vld [vmem:[%s5 + $0x78] sm:$0xff]
  %v3641 = vld [vmem:[%s5 + $0x80] sm:$0xff]
  %v3642 = vld [vmem:[%s5 + $0x88] sm:$0xf]
  %v3643 = vld [vmem:[%s5 + $0x8c] sm:$0xff]
  %v3644 = vld [vmem:[%s5 + $0x94] sm:$0xff]
  %v3645 = vld [vmem:[%s5 + $0x9c] sm:$0xf]
  %v3646 = vld [vmem:[%s5 + $0xa0] sm:$0xff]
  %v3647 = vld [vmem:[%s5 + $0xa8] sm:$0xff]
  %v3648 = vld [vmem:[%s5 + $0xb0] sm:$0xf]
  %v3649 = vld [vmem:[%s5 + $0xb4] sm:$0xff]
  %v3650 = vld [vmem:[%s5 + $0xbc] sm:$0xff]
  %v3651 = vld [vmem:[%s5 + $0xc4] sm:$0xf]
  %v3652 = vld [vmem:[%s5 + $0xc8] sm:$0xff]
  %v3653 = vld [vmem:[%s5 + $0xd0] sm:$0xff]
  %v3654 = vld [vmem:[%s5 + $0xd8] sm:$0xf]
  %v3655 = vld [vmem:[%s5 + $0xdc] sm:$0xff]
  %v3656 = vld [vmem:[%s5 + $0xe4] sm:$0xff]
  %v3657 = vld [vmem:[%s5 + $0xec] sm:$0xf]
  %v3658 = vld [vmem:[%s5 + $0xf0] sm:$0xff]
  %v3659 = vld [vmem:[%s5 + $0xf8] sm:$0xff]
  %v3660 = vld [vmem:[%s5 + $0x100] sm:$0xf]
  %v3661 = vld [vmem:[%s5 + $0x104] sm:$0xff]
  %v3662 = vld [vmem:[%s5 + $0x10c] sm:$0xff]
  %v3663 = vld [vmem:[%s5 + $0x114] sm:$0xf]
  %v3664 = vld [vmem:[%s5 + $0x118] sm:$0xff]
  %v3665 = vld [vmem:[%s5 + $0x120] sm:$0xff]
  %v3666 = vld [vmem:[%s5 + $0x128] sm:$0xf]
  %v3667 = vld [vmem:[%s5 + $0x12c] sm:$0xff]
  %v3668 = vld [vmem:[%s5 + $0x134] sm:$0xff]
  %v3669 = vld [vmem:[%s5 + $0x13c] sm:$0xf]
  %v3670 = vld [vmem:[%s5 + $0x140] sm:$0xff]
  %v3671 = vld [vmem:[%s5 + $0x148] sm:$0xff]
  %v3672 = vld [vmem:[%s5 + $0x150] sm:$0xf]
  %v3673 = vld [vmem:[%s5 + $0x154] sm:$0xff]
  %v3674 = vld [vmem:[%s5 + $0x15c] sm:$0xff]
  %v3675 = vld [vmem:[%s5 + $0x164] sm:$0xf]
  %v3676 = vld [vmem:[%s5 + $0x168] sm:$0xff]
  %v3677 = vld [vmem:[%s5 + $0x170] sm:$0xff]
  %v3678 = vld [vmem:[%s5 + $0x178] sm:$0xf]
  %v3679 = vld [vmem:[%s5 + $0x17c] sm:$0xff]
  %v3680 = vld [vmem:[%s5 + $0x184] sm:$0xff]
  %v3681 = vld [vmem:[%s5 + $0x18c] sm:$0xf]
  %v3682 = vld [vmem:[%s5 + $0x190] sm:$0xff]
  %v3683 = vld [vmem:[%s5 + $0x198] sm:$0xff]
  %v3684 = vld [vmem:[%s5 + $0x1a0] sm:$0xf]
  %v3685 = vld [vmem:[%s5 + $0x1a4] sm:$0xff]
  %v3686 = vld [vmem:[%s5 + $0x1ac] sm:$0xff]
  %v3687 = vld [vmem:[%s5 + $0x1b4] sm:$0xf]
  %v3688 = vld [vmem:[%s5 + $0x1b8] sm:$0xff]
  %v3689 = vld [vmem:[%s5 + $0x1c0] sm:$0xff]
  %v3690 = vld [vmem:[%s5 + $0x1c8] sm:$0xf]
  %v3691 = vld [vmem:[%s5 + $0x1cc] sm:$0xff]
  %v3692 = vld [vmem:[%s5 + $0x1d4] sm:$0xff]
  %v3693 = vld [vmem:[%s5 + $0x1dc] sm:$0xf]
  %v3694 = vld [vmem:[%s5 + $0x1e0] sm:$0xff]
  %v3695 = vld [vmem:[%s5 + $0x1e8] sm:$0xff]
  %v3696 = vld [vmem:[%s5 + $0x1f0] sm:$0xf]
  %v3697 = vmax.f32 %v3602, %v3604
  %v3698 = vmax.f32 %v3603, %v3605
  %v3699 = vpack.c.bf16 %v3697, %v3697
  %v3700 = vpack.c.bf16 %v3698, %v3698
  %v3701 = vld [vmem:[%s5 + $0x1f4] sm:$0xff]
  %v3702 = vld [vmem:[%s5 + $0x1fc] sm:$0xff]
  %v3703 = vld [vmem:[%s5 + $0x204] sm:$0xf]
  %v3704 = vld [vmem:[%s5 + $0x208] sm:$0xff]
  %v3705 = vld [vmem:[%s5 + $0x210] sm:$0xff]
  %v3706 = vld [vmem:[%s5 + $0x218] sm:$0xf]
  %v3707 = vld [vmem:[%s5 + $0x21c] sm:$0xff]
  %v3708 = vld [vmem:[%s5 + $0x224] sm:$0xff]
  %v3709 = vld [vmem:[%s5 + $0x22c] sm:$0xf]
  %v3710 = vld [vmem:[%s5 + $0x230] sm:$0xff]
  %v3711 = vld [vmem:[%s5 + $0x238] sm:$0xff]
  %v3712 = vld [vmem:[%s5 + $0x240] sm:$0xf]
  %v3713 = vld [vmem:[%s5 + $0x244] sm:$0xff]
  %v3714 = vld [vmem:[%s5 + $0x24c] sm:$0xff]
  %v3715 = vld [vmem:[%s5 + $0x254] sm:$0xf]
  %v3716 = vld [vmem:[%s5 + $0x258] sm:$0xff]
  %v3717 = vld [vmem:[%s5 + $0x260] sm:$0xff]
  %v3718 = vld [vmem:[%s5 + $0x268] sm:$0xf]
  %v3719 = vld [vmem:[%s5 + $0x26c] sm:$0xff]
  %v3720 = vld [vmem:[%s5 + $0x274] sm:$0xff]
  %v3721 = vld [vmem:[%s5 + $0x27c] sm:$0xf]
  %v3722 = vld [vmem:[%s5 + $0x280] sm:$0xff]
  %v3723 = vld [vmem:[%s5 + $0x288] sm:$0xff]
  %v3724 = vld [vmem:[%s5 + $0x290] sm:$0xf]
  %v3725 = vld [vmem:[%s5 + $0x294] sm:$0xff]
  %v3726 = vld [vmem:[%s5 + $0x29c] sm:$0xff]
  %v3727 = vld [vmem:[%s5 + $0x2a4] sm:$0xf]
  %v3728 = vld [vmem:[%s5 + $0x2a8] sm:$0xff]
  %v3729 = vld [vmem:[%s5 + $0x2b0] sm:$0xff]
  %v3730 = vld [vmem:[%s5 + $0x2b8] sm:$0xf]
  %v3731 = vld [vmem:[%s5 + $0x2bc] sm:$0xff]
  %v3732 = vld [vmem:[%s5 + $0x2c4] sm:$0xff]
  %v3733 = vld [vmem:[%s5 + $0x2cc] sm:$0xf]
  %v3734 = vld [vmem:[%s5 + $0x2d0] sm:$0xff]
  %v3735 = vld [vmem:[%s5 + $0x2d8] sm:$0xff]
  %v3736 = vld [vmem:[%s5 + $0x2e0] sm:$0xf]
  %v3737 = vld [vmem:[%s5 + $0x2e4] sm:$0xff]
  %v3738 = vld [vmem:[%s5 + $0x2ec] sm:$0xff]
  %v3739 = vld [vmem:[%s5 + $0x2f4] sm:$0xf]
  %v3740 = vld [vmem:[%s5 + $0x2f8] sm:$0xff]
  %v3741 = vld [vmem:[%s5 + $0x300] sm:$0xff]
  %v3742 = vld [vmem:[%s5 + $0x308] sm:$0xf]
  %v3743 = vld [vmem:[%s5 + $0x30c] sm:$0xff]
  %v3744 = vld [vmem:[%s5 + $0x314] sm:$0xff]
  %v3745 = vld [vmem:[%s5 + $0x31c] sm:$0xf]
  %v3746 = vld [vmem:[%s5 + $0x320] sm:$0xff]
  %v3747 = vld [vmem:[%s5 + $0x328] sm:$0xff]
  %v3748 = vld [vmem:[%s5 + $0x330] sm:$0xf]
  %v3749 = vld [vmem:[%s5 + $0x334] sm:$0xff]
  %v3750 = vld [vmem:[%s5 + $0x33c] sm:$0xff]
  %v3751 = vld [vmem:[%s5 + $0x344] sm:$0xf]
  %v3752 = vld [vmem:[%s5 + $0x348] sm:$0xff]
  %v3753 = vld [vmem:[%s5 + $0x350] sm:$0xff]
  %v3754 = vld [vmem:[%s5 + $0x358] sm:$0xf]
  %v3755 = vld [vmem:[%s5 + $0x35c] sm:$0xff]
  %v3756 = vld [vmem:[%s5 + $0x364] sm:$0xff]
  %v3757 = vld [vmem:[%s5 + $0x36c] sm:$0xf]
  %v3758 = vld [vmem:[%s5 + $0x370] sm:$0xff]
  %v3759 = vld [vmem:[%s5 + $0x378] sm:$0xff]
  %v3760 = vld [vmem:[%s5 + $0x380] sm:$0xf]
  %v3761 = vld [vmem:[%s5 + $0x384] sm:$0xff]
  %v3762 = vld [vmem:[%s5 + $0x38c] sm:$0xff]
  %v3763 = vld [vmem:[%s5 + $0x394] sm:$0xf]
  %v3764 = vld [vmem:[%s5 + $0x398] sm:$0xff]
  %v3765 = vld [vmem:[%s5 + $0x3a0] sm:$0xff]
  %v3766 = vld [vmem:[%s5 + $0x3a8] sm:$0xf]
  %v3767 = vld [vmem:[%s5 + $0x3ac] sm:$0xff]
  %v3768 = vld [vmem:[%s5 + $0x3b4] sm:$0xff]
  %v3769 = vld [vmem:[%s5 + $0x3bc] sm:$0xf]
  %v3770 = vld [vmem:[%s5 + $0x3c0] sm:$0xff]
  %v3771 = vld [vmem:[%s5 + $0x3c8] sm:$0xff]
  %v3772 = vld [vmem:[%s5 + $0x3d0] sm:$0xf]
  %v3773 = vld [vmem:[%s5 + $0x3d4] sm:$0xff]
  %v3774 = vld [vmem:[%s5 + $0x3dc] sm:$0xff]
  %v3775 = vld [vmem:[%s5 + $0x3e4] sm:$0xf]
  %v3851 = vunpack.c.l.b16 %v3701
  %v3852 = vunpack.c.h.b16 %v3701
  %v3853 = vunpack.c.l.b16 %v3702
  %v3854 = vunpack.c.h.b16 %v3702
  %v3855 = vunpack.c.l.b16 %v3703
  %v3856 = vunpack.c.l.b16 %v3704
  %v3857 = vunpack.c.h.b16 %v3704
  %v3858 = vunpack.c.l.b16 %v3705
  %v3859 = vunpack.c.h.b16 %v3705
  %v3860 = vunpack.c.l.b16 %v3706
  %v3861 = vunpack.c.l.b16 %v3707
  %v3862 = vunpack.c.h.b16 %v3707
  %v3863 = vunpack.c.l.b16 %v3708
  %v3864 = vunpack.c.h.b16 %v3708
  %v3865 = vunpack.c.l.b16 %v3709
  %v3866 = vunpack.c.l.b16 %v3710
  %v3867 = vunpack.c.h.b16 %v3710
  %v3868 = vunpack.c.l.b16 %v3711
  %v3869 = vunpack.c.h.b16 %v3711
  %v3870 = vunpack.c.l.b16 %v3712
  %v3871 = vunpack.c.l.b16 %v3713
  %v3872 = vunpack.c.h.b16 %v3713
  %v3873 = vunpack.c.l.b16 %v3714
  %v3874 = vunpack.c.h.b16 %v3714
  %v3875 = vunpack.c.l.b16 %v3715
  %v3876 = vunpack.c.l.b16 %v3716
  %v3877 = vunpack.c.h.b16 %v3716
  %v3878 = vunpack.c.l.b16 %v3717
  %v3879 = vunpack.c.h.b16 %v3717
  %v3880 = vunpack.c.l.b16 %v3718
  %v3881 = vunpack.c.l.b16 %v3719
  %v3882 = vunpack.c.h.b16 %v3719
  %v3883 = vunpack.c.l.b16 %v3720
  %v3884 = vunpack.c.h.b16 %v3720
  %v3885 = vunpack.c.l.b16 %v3721
  %v3886 = vunpack.c.l.b16 %v3722
  %v3887 = vunpack.c.h.b16 %v3722
  %v3888 = vunpack.c.l.b16 %v3723
  %v3889 = vunpack.c.h.b16 %v3723
  %v3890 = vunpack.c.l.b16 %v3724
  %v3891 = vunpack.c.l.b16 %v3725
  %v3892 = vunpack.c.h.b16 %v3725
  %v3893 = vunpack.c.l.b16 %v3726
  %v3894 = vunpack.c.h.b16 %v3726
  %v3895 = vunpack.c.l.b16 %v3727
  %v3896 = vunpack.c.l.b16 %v3728
  %v3897 = vunpack.c.h.b16 %v3728
  %v3898 = vunpack.c.l.b16 %v3729
  %v3899 = vunpack.c.h.b16 %v3729
  %v3900 = vunpack.c.l.b16 %v3730
  %v3901 = vunpack.c.l.b16 %v3731
  %v3902 = vunpack.c.h.b16 %v3731
  %v3903 = vunpack.c.l.b16 %v3732
  %v3904 = vunpack.c.h.b16 %v3732
  %v3905 = vunpack.c.l.b16 %v3733
  %v3906 = vunpack.c.l.b16 %v3734
  %v3907 = vunpack.c.h.b16 %v3734
  %v3908 = vunpack.c.l.b16 %v3735
  %v3909 = vunpack.c.h.b16 %v3735
  %v3910 = vunpack.c.l.b16 %v3736
  %v3911 = vunpack.c.l.b16 %v3737
  %v3912 = vunpack.c.h.b16 %v3737
  %v3913 = vunpack.c.l.b16 %v3738
  %v3914 = vunpack.c.h.b16 %v3738
  %v3915 = vunpack.c.l.b16 %v3739
  %v3916 = vunpack.c.l.b16 %v3740
  %v3917 = vunpack.c.h.b16 %v3740
  %v3918 = vunpack.c.l.b16 %v3741
  %v3919 = vunpack.c.h.b16 %v3741
  %v3920 = vunpack.c.l.b16 %v3742
  %v3921 = vunpack.c.l.b16 %v3743
  %v3922 = vunpack.c.h.b16 %v3743
  %v3923 = vunpack.c.l.b16 %v3744
  %v3924 = vunpack.c.h.b16 %v3744
  %v3925 = vunpack.c.l.b16 %v3745
  %v3926 = vunpack.c.l.b16 %v3746
  %v3927 = vunpack.c.h.b16 %v3746
  %v3928 = vunpack.c.l.b16 %v3747
  %v3929 = vunpack.c.h.b16 %v3747
  %v3930 = vunpack.c.l.b16 %v3748
  %v3931 = vunpack.c.l.b16 %v3749
  %v3932 = vunpack.c.h.b16 %v3749
  %v3933 = vunpack.c.l.b16 %v3750
  %v3934 = vunpack.c.h.b16 %v3750
  %v3935 = vunpack.c.l.b16 %v3751
  %v3936 = vunpack.c.l.b16 %v3752
  %v3937 = vunpack.c.h.b16 %v3752
  %v3938 = vunpack.c.l.b16 %v3753
  %v3939 = vunpack.c.h.b16 %v3753
  %v3940 = vunpack.c.l.b16 %v3754
  %v3941 = vunpack.c.l.b16 %v3755
  %v3942 = vunpack.c.h.b16 %v3755
  %v3943 = vunpack.c.l.b16 %v3756
  %v3944 = vunpack.c.h.b16 %v3756
  %v3945 = vunpack.c.l.b16 %v3757
  %v3946 = vunpack.c.l.b16 %v3758
  %v3947 = vunpack.c.h.b16 %v3758
  %v3948 = vunpack.c.l.b16 %v3759
  %v3949 = vunpack.c.h.b16 %v3759
  %v3950 = vunpack.c.l.b16 %v3760
  %v3951 = vunpack.c.l.b16 %v3761
  %v3952 = vunpack.c.h.b16 %v3761
  %v3953 = vunpack.c.l.b16 %v3762
  %v3954 = vunpack.c.h.b16 %v3762
  %v3955 = vunpack.c.l.b16 %v3763
  %v3956 = vunpack.c.l.b16 %v3764
  %v3957 = vunpack.c.h.b16 %v3764
  %v3958 = vunpack.c.l.b16 %v3765
  %v3959 = vunpack.c.h.b16 %v3765
  %v3960 = vunpack.c.l.b16 %v3766
  %v3961 = vunpack.c.l.b16 %v3767
  %v3962 = vunpack.c.h.b16 %v3767
  %v3963 = vunpack.c.l.b16 %v3768
  %v3964 = vunpack.c.h.b16 %v3768
  %v3965 = vunpack.c.l.b16 %v3769
  %v3966 = vunpack.c.l.b16 %v3770
  %v3967 = vunpack.c.h.b16 %v3770
  %v3968 = vunpack.c.l.b16 %v3771
  %v3969 = vunpack.c.h.b16 %v3771
  %v3970 = vunpack.c.l.b16 %v3772
  %v3971 = vunpack.c.l.b16 %v3773
  %v3972 = vunpack.c.h.b16 %v3773
  %v3973 = vunpack.c.l.b16 %v3774
  %v3974 = vunpack.c.h.b16 %v3774
  %v3975 = vunpack.c.l.b16 %v3775
  %v3976 = vpack.c.b16 %v3856, %v3851
  %v3977 = vpack.c.b16 %v3857, %v3852
  %v3978 = vpack.c.b16 %v3858, %v3853
  %v3979 = vpack.c.b16 %v3859, %v3854
  %v3980 = vpack.c.b16 %v3860, %v3855
  %v3981 = vpack.c.b16 %v3866, %v3861
  %v3982 = vpack.c.b16 %v3867, %v3862
  %v3983 = vpack.c.b16 %v3868, %v3863
  %v3984 = vpack.c.b16 %v3869, %v3864
  %v3985 = vpack.c.b16 %v3870, %v3865
  %v3986 = vpack.c.b16 %v3876, %v3871
  %v3987 = vpack.c.b16 %v3877, %v3872
  %v3988 = vpack.c.b16 %v3878, %v3873
  %v3989 = vpack.c.b16 %v3879, %v3874
  %v3990 = vpack.c.b16 %v3880, %v3875
  %v3991 = vpack.c.b16 %v3886, %v3881
  %v3992 = vpack.c.b16 %v3887, %v3882
  %v3993 = vpack.c.b16 %v3888, %v3883
  %v3994 = vpack.c.b16 %v3889, %v3884
  %v3995 = vpack.c.b16 %v3890, %v3885
  %v3996 = vpack.c.b16 %v3896, %v3891
  %v3997 = vpack.c.b16 %v3897, %v3892
  %v3998 = vpack.c.b16 %v3898, %v3893
  %v3999 = vpack.c.b16 %v3899, %v3894
  %v4000 = vpack.c.b16 %v3900, %v3895
  %v4001 = vpack.c.b16 %v3906, %v3901
  %v4002 = vpack.c.b16 %v3907, %v3902
  %v4003 = vpack.c.b16 %v3908, %v3903
  %v4004 = vpack.c.b16 %v3909, %v3904
  %v4005 = vpack.c.b16 %v3910, %v3905
  %v4006 = vpack.c.b16 %v3916, %v3911
  %v4007 = vpack.c.b16 %v3917, %v3912
  %v4008 = vpack.c.b16 %v3918, %v3913
  %v4009 = vpack.c.b16 %v3919, %v3914
  %v4010 = vpack.c.b16 %v3920, %v3915
  %v4011 = vpack.c.b16 %v3926, %v3921
  %v4012 = vpack.c.b16 %v3927, %v3922
  %v4013 = vpack.c.b16 %v3928, %v3923
  %v4014 = vpack.c.b16 %v3929, %v3924
  %v4015 = vpack.c.b16 %v3930, %v3925
  %v4016 = vpack.c.b16 %v3936, %v3931
  %v4017 = vpack.c.b16 %v3937, %v3932
  %v4018 = vpack.c.b16 %v3938, %v3933
  %v4019 = vpack.c.b16 %v3939, %v3934
  %v4020 = vpack.c.b16 %v3940, %v3935
  %v4021 = vpack.c.b16 %v3946, %v3941
  %v4022 = vpack.c.b16 %v3947, %v3942
  %v4023 = vpack.c.b16 %v3948, %v3943
  %v4024 = vpack.c.b16 %v3949, %v3944
  %v4025 = vpack.c.b16 %v3950, %v3945
  %v4026 = vpack.c.b16 %v3956, %v3951
  %v4027 = vpack.c.b16 %v3957, %v3952
  %v4028 = vpack.c.b16 %v3958, %v3953
  %v4029 = vpack.c.b16 %v3959, %v3954
  %v4030 = vpack.c.b16 %v3960, %v3955
  %v4031 = vpack.c.b16 %v3966, %v3961
  %v4032 = vpack.c.b16 %v3967, %v3962
  %v4033 = vpack.c.b16 %v3968, %v3963
  %v4034 = vpack.c.b16 %v3969, %v3964
  %v4035 = vpack.c.b16 %v3970, %v3965
  %v4036 = vpack.c.b16 %v3971, %v3971
  %v4037 = vpack.c.b16 %v3972, %v3972
  %v4038 = vpack.c.b16 %v3973, %v3973
  %v4039 = vpack.c.b16 %v3974, %v3974
  %v4040 = vpack.c.b16 %v3975, %v3975
  %vm4101 = vcmask 588800
  %v4103 = vsel %vm4101, %v3700, 0
  %vm4105 = vcmask 1043456
  %v4107 = vsel %vm4105, %v4036, 0
  %v4110 = vsel %vm4105, %v4037, 0
  %v4113 = vsel %vm4105, %v4038, 0
  %v4116 = vsel %vm4105, %v4039, 0
  %v4119 = vsel %vm4105, %v4040, 0
  %4121 = vmatprep.subr.bf16.mxu0 %v4012
  %4122 = vmatpush1.bf16.msra.mxu0 %v4011
  %4123 = vmatprep.subr.bf16.mxu0 %v4007
  %4124 = vmatpush1.bf16.msra.mxu0 %v4006
  %4125 = vmatprep.subr.bf16.mxu0 %v4002
  %4126 = vmatpush1.bf16.msra.mxu0 %v4001
  %4127 = vmatprep.subr.bf16.mxu0 %v3997
  %4128 = vmatpush1.bf16.msra.mxu0 %v3996
  %4129 = vmatprep.subr.bf16.mxu0 %v3992
  %4130 = vmatpush1.bf16.msra.mxu0 %v3991
  %4131 = vmatprep.subr.bf16.mxu0 %v3987
  %4132 = vmatpush1.bf16.msra.mxu0 %v3986
  %4133 = vmatprep.subr.bf16.mxu0 %v3982
  %4134 = vmatpush1.bf16.msra.mxu0 %v3981
  %4135 = vmatprep.subr.bf16.mxu0 %v3977
  %4136 = vmatpush1.bf16.msra.mxu0 %v3976
  %4137 = vmatprep.subr.bf16.mxu0 0
  %4138 = vmatpush2.bf16.msra.mxu0 0
  %4139 = vmatprep.subr.bf16.mxu0 0
  %4140 = vmatpush2.bf16.msra.mxu0 0
  %4141 = vmatprep.subr.bf16.mxu0 0
  %4142 = vmatpush2.bf16.msra.mxu0 0
  %4143 = vmatprep.subr.bf16.mxu0 %v4110
  %4144 = vmatpush2.bf16.msra.mxu0 %v4107
  %4145 = vmatprep.subr.bf16.mxu0 %v4032
  %4146 = vmatpush2.bf16.msra.mxu0 %v4031
  %4147 = vmatprep.subr.bf16.mxu0 %v4027
  %4148 = vmatpush2.bf16.msra.mxu0 %v4026
  %4149 = vmatprep.subr.bf16.mxu0 %v4022
  %4150 = vmatpush2.bf16.msra.mxu0 %v4021
  %4151 = vmatprep.subr.bf16.mxu0 %v4017
  %4152 = vmatpush2.bf16.msra.mxu0 %v4016
  %4153 = vmatprep.mubr.bf16.mxu0 %v4103
  %4154 = vmatmul.mubr.bf16.gmra.mxu0 %v3699
  %v4155 = vpop.f32.mrf.mxu0
  %v4156 = vadd.f32 0.0, %v4155
  %v4157 = vpop.f32.mrf.mxu0
  %v4158 = vadd.f32 0.0, %v4157
  %v4159 = vpop.f32.mrf.mxu0
  %v4160 = vpop.f32.mrf.mxu0
  %4161 = vdwg.mxu0
  %4162 = vmatprep.subr.bf16.mxu0 %v4014
  %4163 = vmatpush1.bf16.msra.mxu0 %v4013
  %4164 = vmatprep.subr.bf16.mxu0 %v4009
  %4165 = vmatpush1.bf16.msra.mxu0 %v4008
  %4166 = vmatprep.subr.bf16.mxu0 %v4004
  %4167 = vmatpush1.bf16.msra.mxu0 %v4003
  %4168 = vmatprep.subr.bf16.mxu0 %v3999
  %4169 = vmatpush1.bf16.msra.mxu0 %v3998
  %4170 = vmatprep.subr.bf16.mxu0 %v3994
  %4171 = vmatpush1.bf16.msra.mxu0 %v3993
  %4172 = vmatprep.subr.bf16.mxu0 %v3989
  %4173 = vmatpush1.bf16.msra.mxu0 %v3988
  %4174 = vmatprep.subr.bf16.mxu0 %v3984
  %4175 = vmatpush1.bf16.msra.mxu0 %v3983
  %4176 = vmatprep.subr.bf16.mxu0 %v3979
  %4177 = vmatpush1.bf16.msra.mxu0 %v3978
  %4178 = vmatprep.subr.bf16.mxu0 0
  %4179 = vmatpush2.bf16.msra.mxu0 0
  %4180 = vmatprep.subr.bf16.mxu0 0
  %4181 = vmatpush2.bf16.msra.mxu0 0
  %4182 = vmatprep.subr.bf16.mxu0 0
  %4183 = vmatpush2.bf16.msra.mxu0 0
  %4184 = vmatprep.subr.bf16.mxu0 %v4116
  %4185 = vmatpush2.bf16.msra.mxu0 %v4113
  %4186 = vmatprep.subr.bf16.mxu0 %v4034
  %4187 = vmatpush2.bf16.msra.mxu0 %v4033
  %4188 = vmatprep.subr.bf16.mxu0 %v4029
  %4189 = vmatpush2.bf16.msra.mxu0 %v4028
  %4190 = vmatprep.subr.bf16.mxu0 %v4024
  %4191 = vmatpush2.bf16.msra.mxu0 %v4023
  %4192 = vmatprep.subr.bf16.mxu0 %v4019
  %4193 = vmatpush2.bf16.msra.mxu0 %v4018
  %4194 = vmatprep.mubr.bf16.mxu0 %v4103
  %4195 = vmatmul.mubr.bf16.gmra.mxu0 %v3699
  %v4196 = vpop.f32.mrf.mxu0
  %v4197 = vadd.f32 0.0, %v4196
  %v4198 = vpop.f32.mrf.mxu0
  %v4199 = vadd.f32 0.0, %v4198
  %v4200 = vpop.f32.mrf.mxu0
  %v4201 = vpop.f32.mrf.mxu0
  %4202 = vdwg.mxu0
  %4203 = vmatprep.subr.bf16.mxu0 0
  %4204 = vmatpush1.bf16.msra.mxu0 %v4015
  %4205 = vmatprep.subr.bf16.mxu0 0
  %4206 = vmatpush1.bf16.msra.mxu0 %v4010
  %4207 = vmatprep.subr.bf16.mxu0 0
  %4208 = vmatpush1.bf16.msra.mxu0 %v4005
  %4209 = vmatprep.subr.bf16.mxu0 0
  %4210 = vmatpush1.bf16.msra.mxu0 %v4000
  %4211 = vmatprep.subr.bf16.mxu0 0
  %4212 = vmatpush1.bf16.msra.mxu0 %v3995
  %4213 = vmatprep.subr.bf16.mxu0 0
  %4214 = vmatpush1.bf16.msra.mxu0 %v3990
  %4215 = vmatprep.subr.bf16.mxu0 0
  %4216 = vmatpush1.bf16.msra.mxu0 %v3985
  %4217 = vmatprep.subr.bf16.mxu0 0
  %4218 = vmatpush1.bf16.msra.mxu0 %v3980
  %4219 = vmatprep.subr.bf16.mxu0 0
  %4220 = vmatpush2.bf16.msra.mxu0 0
  %4221 = vmatprep.subr.bf16.mxu0 0
  %4222 = vmatpush2.bf16.msra.mxu0 0
  %4223 = vmatprep.subr.bf16.mxu0 0
  %4224 = vmatpush2.bf16.msra.mxu0 0
  %4225 = vmatprep.subr.bf16.mxu0 0
  %4226 = vmatpush2.bf16.msra.mxu0 %v4119
  %4227 = vmatprep.subr.bf16.mxu0 0
  %4228 = vmatpush2.bf16.msra.mxu0 %v4035
  %4229 = vmatprep.subr.bf16.mxu0 0
  %4230 = vmatpush2.bf16.msra.mxu0 %v4030
  %4231 = vmatprep.subr.bf16.mxu0 0
  %4232 = vmatpush2.bf16.msra.mxu0 %v4025
  %4233 = vmatprep.subr.bf16.mxu0 0
  %4234 = vmatpush2.bf16.msra.mxu0 %v4020
  %4235 = vmatprep.mubr.bf16.mxu0 %v4103
  %4236 = vmatmul.mubr.bf16.gmra.mxu0 %v3699
  %v4237 = vpop.f32.mrf.mxu0
  %v4238 = vadd.f32 0.0, %v4237
  %v4239 = vpop.f32.mrf.mxu0
  %v4240 = vpop.f32.mrf.mxu0
  %v4241 = vpop.f32.mrf.mxu0
  %4242 = vdwg.mxu0
  %v4318 = vunpack.c.l.b16 %v3622
  %v4319 = vunpack.c.h.b16 %v3622
  %v4320 = vunpack.c.l.b16 %v3623
  %v4321 = vunpack.c.h.b16 %v3623
  %v4322 = vunpack.c.l.b16 %v3624
  %v4323 = vunpack.c.l.b16 %v3625
  %v4324 = vunpack.c.h.b16 %v3625
  %v4325 = vunpack.c.l.b16 %v3626
  %v4326 = vunpack.c.h.b16 %v3626
  %v4327 = vunpack.c.l.b16 %v3627
  %v4328 = vunpack.c.l.b16 %v3628
  %v4329 = vunpack.c.h.b16 %v3628
  %v4330 = vunpack.c.l.b16 %v3629
  %v4331 = vunpack.c.h.b16 %v3629
  %v4332 = vunpack.c.l.b16 %v3630
  %v4333 = vunpack.c.l.b16 %v3631
  %v4334 = vunpack.c.h.b16 %v3631
  %v4335 = vunpack.c.l.b16 %v3632
  %v4336 = vunpack.c.h.b16 %v3632
  %v4337 = vunpack.c.l.b16 %v3633
  %v4338 = vunpack.c.l.b16 %v3634
  %v4339 = vunpack.c.h.b16 %v3634
  %v4340 = vunpack.c.l.b16 %v3635
  %v4341 = vunpack.c.h.b16 %v3635
  %v4342 = vunpack.c.l.b16 %v3636
  %v4343 = vunpack.c.l.b16 %v3637
  %v4344 = vunpack.c.h.b16 %v3637
  %v4345 = vunpack.c.l.b16 %v3638
  %v4346 = vunpack.c.h.b16 %v3638
  %v4347 = vunpack.c.l.b16 %v3639
  %v4348 = vunpack.c.l.b16 %v3640
  %v4349 = vunpack.c.h.b16 %v3640
  %v4350 = vunpack.c.l.b16 %v3641
  %v4351 = vunpack.c.h.b16 %v3641
  %v4352 = vunpack.c.l.b16 %v3642
  %v4353 = vunpack.c.l.b16 %v3643
  %v4354 = vunpack.c.h.b16 %v3643
  %v4355 = vunpack.c.l.b16 %v3644
  %v4356 = vunpack.c.h.b16 %v3644
  %v4357 = vunpack.c.l.b16 %v3645
  %v4358 = vunpack.c.l.b16 %v3646
  %v4359 = vunpack.c.h.b16 %v3646
  %v4360 = vunpack.c.l.b16 %v3647
  %v4361 = vunpack.c.h.b16 %v3647
  %v4362 = vunpack.c.l.b16 %v3648
  %v4363 = vunpack.c.l.b16 %v3649
  %v4364 = vunpack.c.h.b16 %v3649
  %v4365 = vunpack.c.l.b16 %v3650
  %v4366 = vunpack.c.h.b16 %v3650
  %v4367 = vunpack.c.l.b16 %v3651
  %v4368 = vunpack.c.l.b16 %v3652
  %v4369 = vunpack.c.h.b16 %v3652
  %v4370 = vunpack.c.l.b16 %v3653
  %v4371 = vunpack.c.h.b16 %v3653
  %v4372 = vunpack.c.l.b16 %v3654
  %v4373 = vunpack.c.l.b16 %v3655
  %v4374 = vunpack.c.h.b16 %v3655
  %v4375 = vunpack.c.l.b16 %v3656
  %v4376 = vunpack.c.h.b16 %v3656
  %v4377 = vunpack.c.l.b16 %v3657
  %v4378 = vunpack.c.l.b16 %v3658
  %v4379 = vunpack.c.h.b16 %v3658
  %v4380 = vunpack.c.l.b16 %v3659
  %v4381 = vunpack.c.h.b16 %v3659
  %v4382 = vunpack.c.l.b16 %v3660
  %v4383 = vunpack.c.l.b16 %v3661
  %v4384 = vunpack.c.h.b16 %v3661
  %v4385 = vunpack.c.l.b16 %v3662
  %v4386 = vunpack.c.h.b16 %v3662
  %v4387 = vunpack.c.l.b16 %v3663
  %v4388 = vunpack.c.l.b16 %v3664
  %v4389 = vunpack.c.h.b16 %v3664
  %v4390 = vunpack.c.l.b16 %v3665
  %v4391 = vunpack.c.h.b16 %v3665
  %v4392 = vunpack.c.l.b16 %v3666
  %v4393 = vunpack.c.l.b16 %v3667
  %v4394 = vunpack.c.h.b16 %v3667
  %v4395 = vunpack.c.l.b16 %v3668
  %v4396 = vunpack.c.h.b16 %v3668
  %v4397 = vunpack.c.l.b16 %v3669
  %v4398 = vunpack.c.l.b16 %v3670
  %v4399 = vunpack.c.h.b16 %v3670
  %v4400 = vunpack.c.l.b16 %v3671
  %v4401 = vunpack.c.h.b16 %v3671
  %v4402 = vunpack.c.l.b16 %v3672
  %v4403 = vunpack.c.l.b16 %v3673
  %v4404 = vunpack.c.h.b16 %v3673
  %v4405 = vunpack.c.l.b16 %v3674
  %v4406 = vunpack.c.h.b16 %v3674
  %v4407 = vunpack.c.l.b16 %v3675
  %v4408 = vunpack.c.l.b16 %v3676
  %v4409 = vunpack.c.h.b16 %v3676
  %v4410 = vunpack.c.l.b16 %v3677
  %v4411 = vunpack.c.h.b16 %v3677
  %v4412 = vunpack.c.l.b16 %v3678
  %v4413 = vunpack.c.l.b16 %v3679
  %v4414 = vunpack.c.h.b16 %v3679
  %v4415 = vunpack.c.l.b16 %v3680
  %v4416 = vunpack.c.h.b16 %v3680
  %v4417 = vunpack.c.l.b16 %v3681
  %v4418 = vunpack.c.l.b16 %v3682
  %v4419 = vunpack.c.h.b16 %v3682
  %v4420 = vunpack.c.l.b16 %v3683
  %v4421 = vunpack.c.h.b16 %v3683
  %v4422 = vunpack.c.l.b16 %v3684
  %v4423 = vunpack.c.l.b16 %v3685
  %v4424 = vunpack.c.h.b16 %v3685
  %v4425 = vunpack.c.l.b16 %v3686
  %v4426 = vunpack.c.h.b16 %v3686
  %v4427 = vunpack.c.l.b16 %v3687
  %v4428 = vunpack.c.l.b16 %v3688
  %v4429 = vunpack.c.h.b16 %v3688
  %v4430 = vunpack.c.l.b16 %v3689
  %v4431 = vunpack.c.h.b16 %v3689
  %v4432 = vunpack.c.l.b16 %v3690
  %v4433 = vunpack.c.l.b16 %v3691
  %v4434 = vunpack.c.h.b16 %v3691
  %v4435 = vunpack.c.l.b16 %v3692
  %v4436 = vunpack.c.h.b16 %v3692
  %v4437 = vunpack.c.l.b16 %v3693
  %v4438 = vunpack.c.l.b16 %v3694
  %v4439 = vunpack.c.h.b16 %v3694
  %v4440 = vunpack.c.l.b16 %v3695
  %v4441 = vunpack.c.h.b16 %v3695
  %v4442 = vunpack.c.l.b16 %v3696
  %v4443 = vpack.c.b16 %v4323, %v4318
  %v4444 = vpack.c.b16 %v4324, %v4319
  %v4445 = vpack.c.b16 %v4325, %v4320
  %v4446 = vpack.c.b16 %v4326, %v4321
  %v4447 = vpack.c.b16 %v4327, %v4322
  %v4448 = vpack.c.b16 %v4333, %v4328
  %v4449 = vpack.c.b16 %v4334, %v4329
  %v4450 = vpack.c.b16 %v4335, %v4330
  %v4451 = vpack.c.b16 %v4336, %v4331
  %v4452 = vpack.c.b16 %v4337, %v4332
  %v4453 = vpack.c.b16 %v4343, %v4338
  %v4454 = vpack.c.b16 %v4344, %v4339
  %v4455 = vpack.c.b16 %v4345, %v4340
  %v4456 = vpack.c.b16 %v4346, %v4341
  %v4457 = vpack.c.b16 %v4347, %v4342
  %v4458 = vpack.c.b16 %v4353, %v4348
  %v4459 = vpack.c.b16 %v4354, %v4349
  %v4460 = vpack.c.b16 %v4355, %v4350
  %v4461 = vpack.c.b16 %v4356, %v4351
  %v4462 = vpack.c.b16 %v4357, %v4352
  %v4463 = vpack.c.b16 %v4363, %v4358
  %v4464 = vpack.c.b16 %v4364, %v4359
  %v4465 = vpack.c.b16 %v4365, %v4360
  %v4466 = vpack.c.b16 %v4366, %v4361
  %v4467 = vpack.c.b16 %v4367, %v4362
  %v4468 = vpack.c.b16 %v4373, %v4368
  %v4469 = vpack.c.b16 %v4374, %v4369
  %v4470 = vpack.c.b16 %v4375, %v4370
  %v4471 = vpack.c.b16 %v4376, %v4371
  %v4472 = vpack.c.b16 %v4377, %v4372
  %v4473 = vpack.c.b16 %v4383, %v4378
  %v4474 = vpack.c.b16 %v4384, %v4379
  %v4475 = vpack.c.b16 %v4385, %v4380
  %v4476 = vpack.c.b16 %v4386, %v4381
  %v4477 = vpack.c.b16 %v4387, %v4382
  %v4478 = vpack.c.b16 %v4393, %v4388
  %v4479 = vpack.c.b16 %v4394, %v4389
  %v4480 = vpack.c.b16 %v4395, %v4390
  %v4481 = vpack.c.b16 %v4396, %v4391
  %v4482 = vpack.c.b16 %v4397, %v4392
  %v4483 = vpack.c.b16 %v4403, %v4398
  %v4484 = vpack.c.b16 %v4404, %v4399
  %v4485 = vpack.c.b16 %v4405, %v4400
  %v4486 = vpack.c.b16 %v4406, %v4401
  %v4487 = vpack.c.b16 %v4407, %v4402
  %v4488 = vpack.c.b16 %v4413, %v4408
  %v4489 = vpack.c.b16 %v4414, %v4409
  %v4490 = vpack.c.b16 %v4415, %v4410
  %v4491 = vpack.c.b16 %v4416, %v4411
  %v4492 = vpack.c.b16 %v4417, %v4412
  %v4493 = vpack.c.b16 %v4423, %v4418
  %v4494 = vpack.c.b16 %v4424, %v4419
  %v4495 = vpack.c.b16 %v4425, %v4420
  %v4496 = vpack.c.b16 %v4426, %v4421
  %v4497 = vpack.c.b16 %v4427, %v4422
  %v4498 = vpack.c.b16 %v4433, %v4428
  %v4499 = vpack.c.b16 %v4434, %v4429
  %v4500 = vpack.c.b16 %v4435, %v4430
  %v4501 = vpack.c.b16 %v4436, %v4431
  %v4502 = vpack.c.b16 %v4437, %v4432
  %v4503 = vpack.c.b16 %v4438, %v4438
  %v4504 = vpack.c.b16 %v4439, %v4439
  %v4505 = vpack.c.b16 %v4440, %v4440
  %v4506 = vpack.c.b16 %v4441, %v4441
  %v4507 = vpack.c.b16 %v4442, %v4442
  %v4569 = vsel %vm4101, %v3621, 0
  %v4572 = vsel %vm4105, %v4503, 0
  %v4575 = vsel %vm4105, %v4504, 0
  %v4578 = vsel %vm4105, %v4505, 0
  %v4581 = vsel %vm4105, %v4506, 0
  %v4584 = vsel %vm4105, %v4507, 0
  %4586 = vmatprep.subr.bf16.mxu0 %v4479
  %4587 = vmatpush1.bf16.msra.mxu0 %v4478
  %4588 = vmatprep.subr.bf16.mxu0 %v4474
  %4589 = vmatpush1.bf16.msra.mxu0 %v4473
  %4590 = vmatprep.subr.bf16.mxu0 %v4469
  %4591 = vmatpush1.bf16.msra.mxu0 %v4468
  %4592 = vmatprep.subr.bf16.mxu0 %v4464
  %4593 = vmatpush1.bf16.msra.mxu0 %v4463
  %4594 = vmatprep.subr.bf16.mxu0 %v4459
  %4595 = vmatpush1.bf16.msra.mxu0 %v4458
  %4596 = vmatprep.subr.bf16.mxu0 %v4454
  %4597 = vmatpush1.bf16.msra.mxu0 %v4453
  %4598 = vmatprep.subr.bf16.mxu0 %v4449
  %4599 = vmatpush1.bf16.msra.mxu0 %v4448
  %4600 = vmatprep.subr.bf16.mxu0 %v4444
  %4601 = vmatpush1.bf16.msra.mxu0 %v4443
  %4602 = vmatprep.subr.bf16.mxu0 0
  %4603 = vmatpush2.bf16.msra.mxu0 0
  %4604 = vmatprep.subr.bf16.mxu0 0
  %4605 = vmatpush2.bf16.msra.mxu0 0
  %4606 = vmatprep.subr.bf16.mxu0 0
  %4607 = vmatpush2.bf16.msra.mxu0 0
  %4608 = vmatprep.subr.bf16.mxu0 %v4575
  %4609 = vmatpush2.bf16.msra.mxu0 %v4572
  %4610 = vmatprep.subr.bf16.mxu0 %v4499
  %4611 = vmatpush2.bf16.msra.mxu0 %v4498
  %4612 = vmatprep.subr.bf16.mxu0 %v4494
  %4613 = vmatpush2.bf16.msra.mxu0 %v4493
  %4614 = vmatprep.subr.bf16.mxu0 %v4489
  %4615 = vmatpush2.bf16.msra.mxu0 %v4488
  %4616 = vmatprep.subr.bf16.mxu0 %v4484
  %4617 = vmatpush2.bf16.msra.mxu0 %v4483
  %4618 = vmatprep.mubr.bf16.mxu0 %v4569
  %4619 = vmatmul.mubr.bf16.gmra.mxu0 %v3620
  %v4620 = vpop.f32.mrf.mxu0
  %v4621 = vadd.f32 %v4156, %v4620
  %v4622 = vpop.f32.mrf.mxu0
  %v4623 = vadd.f32 %v4158, %v4622
  %v4624 = vpop.f32.mrf.mxu0
  %v4625 = vpop.f32.mrf.mxu0
  %4626 = vdwg.mxu0
  %4627 = vmatprep.subr.bf16.mxu0 %v4481
  %4628 = vmatpush1.bf16.msra.mxu0 %v4480
  %4629 = vmatprep.subr.bf16.mxu0 %v4476
  %4630 = vmatpush1.bf16.msra.mxu0 %v4475
  %4631 = vmatprep.subr.bf16.mxu0 %v4471
  %4632 = vmatpush1.bf16.msra.mxu0 %v4470
  %4633 = vmatprep.subr.bf16.mxu0 %v4466
  %4634 = vmatpush1.bf16.msra.mxu0 %v4465
  %4635 = vmatprep.subr.bf16.mxu0 %v4461
  %4636 = vmatpush1.bf16.msra.mxu0 %v4460
  %4637 = vmatprep.subr.bf16.mxu0 %v4456
  %4638 = vmatpush1.bf16.msra.mxu0 %v4455
  %4639 = vmatprep.subr.bf16.mxu0 %v4451
  %4640 = vmatpush1.bf16.msra.mxu0 %v4450
  %4641 = vmatprep.subr.bf16.mxu0 %v4446
  %4642 = vmatpush1.bf16.msra.mxu0 %v4445
  %4643 = vmatprep.subr.bf16.mxu0 0
  %4644 = vmatpush2.bf16.msra.mxu0 0
  %4645 = vmatprep.subr.bf16.mxu0 0
  %4646 = vmatpush2.bf16.msra.mxu0 0
  %4647 = vmatprep.subr.bf16.mxu0 0
  %4648 = vmatpush2.bf16.msra.mxu0 0
  %4649 = vmatprep.subr.bf16.mxu0 %v4581
  %4650 = vmatpush2.bf16.msra.mxu0 %v4578
  %4651 = vmatprep.subr.bf16.mxu0 %v4501
  %4652 = vmatpush2.bf16.msra.mxu0 %v4500
  %4653 = vmatprep.subr.bf16.mxu0 %v4496
  %4654 = vmatpush2.bf16.msra.mxu0 %v4495
  %4655 = vmatprep.subr.bf16.mxu0 %v4491
  %4656 = vmatpush2.bf16.msra.mxu0 %v4490
  %4657 = vmatprep.subr.bf16.mxu0 %v4486
  %4658 = vmatpush2.bf16.msra.mxu0 %v4485
  %4659 = vmatprep.mubr.bf16.mxu0 %v4569
  %4660 = vmatmul.mubr.bf16.gmra.mxu0 %v3620
  %v4661 = vpop.f32.mrf.mxu0
  %v4662 = vadd.f32 %v4197, %v4661
  %v4663 = vpop.f32.mrf.mxu0
  %v4664 = vadd.f32 %v4199, %v4663
  %v4665 = vpop.f32.mrf.mxu0
  %v4666 = vpop.f32.mrf.mxu0
  %4667 = vdwg.mxu0
  %4668 = vmatprep.subr.bf16.mxu0 0
  %4669 = vmatpush1.bf16.msra.mxu0 %v4482
  %4670 = vmatprep.subr.bf16.mxu0 0
  %4671 = vmatpush1.bf16.msra.mxu0 %v4477
  %4672 = vmatprep.subr.bf16.mxu0 0
  %4673 = vmatpush1.bf16.msra.mxu0 %v4472
  %4674 = vmatprep.subr.bf16.mxu0 0
  %4675 = vmatpush1.bf16.msra.mxu0 %v4467
  %4676 = vmatprep.subr.bf16.mxu0 0
  %4677 = vmatpush1.bf16.msra.mxu0 %v4462
  %4678 = vmatprep.subr.bf16.mxu0 0
  %4679 = vmatpush1.bf16.msra.mxu0 %v4457
  %4680 = vmatprep.subr.bf16.mxu0 0
  %4681 = vmatpush1.bf16.msra.mxu0 %v4452
  %4682 = vmatprep.subr.bf16.mxu0 0
  %4683 = vmatpush1.bf16.msra.mxu0 %v4447
  %4684 = vmatprep.subr.bf16.mxu0 0
  %4685 = vmatpush2.bf16.msra.mxu0 0
  %4686 = vmatprep.subr.bf16.mxu0 0
  %4687 = vmatpush2.bf16.msra.mxu0 0
  %4688 = vmatprep.subr.bf16.mxu0 0
  %4689 = vmatpush2.bf16.msra.mxu0 0
  %4690 = vmatprep.subr.bf16.mxu0 0
  %4691 = vmatpush2.bf16.msra.mxu0 %v4584
  %4692 = vmatprep.subr.bf16.mxu0 0
  %4693 = vmatpush2.bf16.msra.mxu0 %v4502
  %4694 = vmatprep.subr.bf16.mxu0 0
  %4695 = vmatpush2.bf16.msra.mxu0 %v4497
  %4696 = vmatprep.subr.bf16.mxu0 0
  %4697 = vmatpush2.bf16.msra.mxu0 %v4492
  %4698 = vmatprep.subr.bf16.mxu0 0
  %4699 = vmatpush2.bf16.msra.mxu0 %v4487
  %4700 = vmatprep.mubr.bf16.mxu0 %v4569
  %4701 = vmatmul.mubr.bf16.gmra.mxu0 %v3620
  %v4702 = vpop.f32.mrf.mxu0
  %v4703 = vadd.f32 %v4238, %v4702
  %v4704 = vpop.f32.mrf.mxu0
  %v4705 = vpop.f32.mrf.mxu0
  %v4706 = vpop.f32.mrf.mxu0
  %4707 = vdwg.mxu0
  %v4708 = vmax.f32 %v3606, %v3608
  %v4709 = vmax.f32 %v3607, %v3609
  %v4710 = vpack.c.bf16 %v4708, %v4708
  %v4711 = vpack.c.bf16 %v4709, %v4709
  %v4712 = vld [vmem:[%s5 + $0x3e8] sm:$0xff]
  %v4713 = vld [vmem:[%s5 + $0x3f0] sm:$0xff]
  %v4714 = vld [vmem:[%s5 + $0x3f8] sm:$0xf]
  %v4715 = vld [vmem:[%s5 + $0x3fc] sm:$0xff]
  %v4716 = vld [vmem:[%s5 + $0x404] sm:$0xff]
  %v4717 = vld [vmem:[%s5 + $0x40c] sm:$0xf]
  %v4718 = vld [vmem:[%s5 + $0x410] sm:$0xff]
  %v4719 = vld [vmem:[%s5 + $0x418] sm:$0xff]
  %v4720 = vld [vmem:[%s5 + $0x420] sm:$0xf]
  %v4721 = vld [vmem:[%s5 + $0x424] sm:$0xff]
  %v4722 = vld [vmem:[%s5 + $0x42c] sm:$0xff]
  %v4723 = vld [vmem:[%s5 + $0x434] sm:$0xf]
  %v4724 = vld [vmem:[%s5 + $0x438] sm:$0xff]
  %v4725 = vld [vmem:[%s5 + $0x440] sm:$0xff]
  %v4726 = vld [vmem:[%s5 + $0x448] sm:$0xf]
  %v4727 = vld [vmem:[%s5 + $0x44c] sm:$0xff]
  %v4728 = vld [vmem:[%s5 + $0x454] sm:$0xff]
  %v4729 = vld [vmem:[%s5 + $0x45c] sm:$0xf]
  %v4730 = vld [vmem:[%s5 + $0x460] sm:$0xff]
  %v4731 = vld [vmem:[%s5 + $0x468] sm:$0xff]
  %v4732 = vld [vmem:[%s5 + $0x470] sm:$0xf]
  %v4733 = vld [vmem:[%s5 + $0x474] sm:$0xff]
  %v4734 = vld [vmem:[%s5 + $0x47c] sm:$0xff]
  %v4735 = vld [vmem:[%s5 + $0x484] sm:$0xf]
  %v4736 = vld [vmem:[%s5 + $0x488] sm:$0xff]
  %v4737 = vld [vmem:[%s5 + $0x490] sm:$0xff]
  %v4738 = vld [vmem:[%s5 + $0x498] sm:$0xf]
  %v4739 = vld [vmem:[%s5 + $0x49c] sm:$0xff]
  %v4740 = vld [vmem:[%s5 + $0x4a4] sm:$0xff]
  %v4741 = vld [vmem:[%s5 + $0x4ac] sm:$0xf]
  %v4742 = vld [vmem:[%s5 + $0x4b0] sm:$0xff]
  %v4743 = vld [vmem:[%s5 + $0x4b8] sm:$0xff]
  %v4744 = vld [vmem:[%s5 + $0x4c0] sm:$0xf]
  %v4745 = vld [vmem:[%s5 + $0x4c4] sm:$0xff]
  %v4746 = vld [vmem:[%s5 + $0x4cc] sm:$0xff]
  %v4747 = vld [vmem:[%s5 + $0x4d4] sm:$0xf]
  %v4748 = vld [vmem:[%s5 + $0x4d8] sm:$0xff]
  %v4749 = vld [vmem:[%s5 + $0x4e0] sm:$0xff]
  %v4750 = vld [vmem:[%s5 + $0x4e8] sm:$0xf]
  %v4751 = vld [vmem:[%s5 + $0x4ec] sm:$0xff]
  %v4752 = vld [vmem:[%s5 + $0x4f4] sm:$0xff]
  %v4753 = vld [vmem:[%s5 + $0x4fc] sm:$0xf]
  %v4754 = vld [vmem:[%s5 + $0x500] sm:$0xff]
  %v4755 = vld [vmem:[%s5 + $0x508] sm:$0xff]
  %v4756 = vld [vmem:[%s5 + $0x510] sm:$0xf]
  %v4757 = vld [vmem:[%s5 + $0x514] sm:$0xff]
  %v4758 = vld [vmem:[%s5 + $0x51c] sm:$0xff]
  %v4759 = vld [vmem:[%s5 + $0x524] sm:$0xf]
  %v4760 = vld [vmem:[%s5 + $0x528] sm:$0xff]
  %v4761 = vld [vmem:[%s5 + $0x530] sm:$0xff]
  %v4762 = vld [vmem:[%s5 + $0x538] sm:$0xf]
  %v4763 = vld [vmem:[%s5 + $0x53c] sm:$0xff]
  %v4764 = vld [vmem:[%s5 + $0x544] sm:$0xff]
  %v4765 = vld [vmem:[%s5 + $0x54c] sm:$0xf]
  %v4766 = vld [vmem:[%s5 + $0x550] sm:$0xff]
  %v4767 = vld [vmem:[%s5 + $0x558] sm:$0xff]
  %v4768 = vld [vmem:[%s5 + $0x560] sm:$0xf]
  %v4769 = vld [vmem:[%s5 + $0x564] sm:$0xff]
  %v4770 = vld [vmem:[%s5 + $0x56c] sm:$0xff]
  %v4771 = vld [vmem:[%s5 + $0x574] sm:$0xf]
  %v4772 = vld [vmem:[%s5 + $0x578] sm:$0xff]
  %v4773 = vld [vmem:[%s5 + $0x580] sm:$0xff]
  %v4774 = vld [vmem:[%s5 + $0x588] sm:$0xf]
  %v4775 = vld [vmem:[%s5 + $0x58c] sm:$0xff]
  %v4776 = vld [vmem:[%s5 + $0x594] sm:$0xff]
  %v4777 = vld [vmem:[%s5 + $0x59c] sm:$0xf]
  %v4778 = vld [vmem:[%s5 + $0x5a0] sm:$0xff]
  %v4779 = vld [vmem:[%s5 + $0x5a8] sm:$0xff]
  %v4780 = vld [vmem:[%s5 + $0x5b0] sm:$0xf]
  %v4781 = vld [vmem:[%s5 + $0x5b4] sm:$0xff]
  %v4782 = vld [vmem:[%s5 + $0x5bc] sm:$0xff]
  %v4783 = vld [vmem:[%s5 + $0x5c4] sm:$0xf]
  %v4784 = vld [vmem:[%s5 + $0x5c8] sm:$0xff]
  %v4785 = vld [vmem:[%s5 + $0x5d0] sm:$0xff]
  %v4786 = vld [vmem:[%s5 + $0x5d8] sm:$0xf]
  %v4862 = vunpack.c.l.b16 %v4712
  %v4863 = vunpack.c.h.b16 %v4712
  %v4864 = vunpack.c.l.b16 %v4713
  %v4865 = vunpack.c.h.b16 %v4713
  %v4866 = vunpack.c.l.b16 %v4714
  %v4867 = vunpack.c.l.b16 %v4715
  %v4868 = vunpack.c.h.b16 %v4715
  %v4869 = vunpack.c.l.b16 %v4716
  %v4870 = vunpack.c.h.b16 %v4716
  %v4871 = vunpack.c.l.b16 %v4717
  %v4872 = vunpack.c.l.b16 %v4718
  %v4873 = vunpack.c.h.b16 %v4718
  %v4874 = vunpack.c.l.b16 %v4719
  %v4875 = vunpack.c.h.b16 %v4719
  %v4876 = vunpack.c.l.b16 %v4720
  %v4877 = vunpack.c.l.b16 %v4721
  %v4878 = vunpack.c.h.b16 %v4721
  %v4879 = vunpack.c.l.b16 %v4722
  %v4880 = vunpack.c.h.b16 %v4722
  %v4881 = vunpack.c.l.b16 %v4723
  %v4882 = vunpack.c.l.b16 %v4724
  %v4883 = vunpack.c.h.b16 %v4724
  %v4884 = vunpack.c.l.b16 %v4725
  %v4885 = vunpack.c.h.b16 %v4725
  %v4886 = vunpack.c.l.b16 %v4726
  %v4887 = vunpack.c.l.b16 %v4727
  %v4888 = vunpack.c.h.b16 %v4727
  %v4889 = vunpack.c.l.b16 %v4728
  %v4890 = vunpack.c.h.b16 %v4728
  %v4891 = vunpack.c.l.b16 %v4729
  %v4892 = vunpack.c.l.b16 %v4730
  %v4893 = vunpack.c.h.b16 %v4730
  %v4894 = vunpack.c.l.b16 %v4731
  %v4895 = vunpack.c.h.b16 %v4731
  %v4896 = vunpack.c.l.b16 %v4732
  %v4897 = vunpack.c.l.b16 %v4733
  %v4898 = vunpack.c.h.b16 %v4733
  %v4899 = vunpack.c.l.b16 %v4734
  %v4900 = vunpack.c.h.b16 %v4734
  %v4901 = vunpack.c.l.b16 %v4735
  %v4902 = vunpack.c.l.b16 %v4736
  %v4903 = vunpack.c.h.b16 %v4736
  %v4904 = vunpack.c.l.b16 %v4737
  %v4905 = vunpack.c.h.b16 %v4737
  %v4906 = vunpack.c.l.b16 %v4738
  %v4907 = vunpack.c.l.b16 %v4739
  %v4908 = vunpack.c.h.b16 %v4739
  %v4909 = vunpack.c.l.b16 %v4740
  %v4910 = vunpack.c.h.b16 %v4740
  %v4911 = vunpack.c.l.b16 %v4741
  %v4912 = vunpack.c.l.b16 %v4742
  %v4913 = vunpack.c.h.b16 %v4742
  %v4914 = vunpack.c.l.b16 %v4743
  %v4915 = vunpack.c.h.b16 %v4743
  %v4916 = vunpack.c.l.b16 %v4744
  %v4917 = vunpack.c.l.b16 %v4745
  %v4918 = vunpack.c.h.b16 %v4745
  %v4919 = vunpack.c.l.b16 %v4746
  %v4920 = vunpack.c.h.b16 %v4746
  %v4921 = vunpack.c.l.b16 %v4747
  %v4922 = vunpack.c.l.b16 %v4748
  %v4923 = vunpack.c.h.b16 %v4748
  %v4924 = vunpack.c.l.b16 %v4749
  %v4925 = vunpack.c.h.b16 %v4749
  %v4926 = vunpack.c.l.b16 %v4750
  %v4927 = vunpack.c.l.b16 %v4751
  %v4928 = vunpack.c.h.b16 %v4751
  %v4929 = vunpack.c.l.b16 %v4752
  %v4930 = vunpack.c.h.b16 %v4752
  %v4931 = vunpack.c.l.b16 %v4753
  %v4932 = vunpack.c.l.b16 %v4754
  %v4933 = vunpack.c.h.b16 %v4754
  %v4934 = vunpack.c.l.b16 %v4755
  %v4935 = vunpack.c.h.b16 %v4755
  %v4936 = vunpack.c.l.b16 %v4756
  %v4937 = vunpack.c.l.b16 %v4757
  %v4938 = vunpack.c.h.b16 %v4757
  %v4939 = vunpack.c.l.b16 %v4758
  %v4940 = vunpack.c.h.b16 %v4758
  %v4941 = vunpack.c.l.b16 %v4759
  %v4942 = vunpack.c.l.b16 %v4760
  %v4943 = vunpack.c.h.b16 %v4760
  %v4944 = vunpack.c.l.b16 %v4761
  %v4945 = vunpack.c.h.b16 %v4761
  %v4946 = vunpack.c.l.b16 %v4762
  %v4947 = vunpack.c.l.b16 %v4763
  %v4948 = vunpack.c.h.b16 %v4763
  %v4949 = vunpack.c.l.b16 %v4764
  %v4950 = vunpack.c.h.b16 %v4764
  %v4951 = vunpack.c.l.b16 %v4765
  %v4952 = vunpack.c.l.b16 %v4766
  %v4953 = vunpack.c.h.b16 %v4766
  %v4954 = vunpack.c.l.b16 %v4767
  %v4955 = vunpack.c.h.b16 %v4767
  %v4956 = vunpack.c.l.b16 %v4768
  %v4957 = vunpack.c.l.b16 %v4769
  %v4958 = vunpack.c.h.b16 %v4769
  %v4959 = vunpack.c.l.b16 %v4770
  %v4960 = vunpack.c.h.b16 %v4770
  %v4961 = vunpack.c.l.b16 %v4771
  %v4962 = vunpack.c.l.b16 %v4772
  %v4963 = vunpack.c.h.b16 %v4772
  %v4964 = vunpack.c.l.b16 %v4773
  %v4965 = vunpack.c.h.b16 %v4773
  %v4966 = vunpack.c.l.b16 %v4774
  %v4967 = vunpack.c.l.b16 %v4775
  %v4968 = vunpack.c.h.b16 %v4775
  %v4969 = vunpack.c.l.b16 %v4776
  %v4970 = vunpack.c.h.b16 %v4776
  %v4971 = vunpack.c.l.b16 %v4777
  %v4972 = vunpack.c.l.b16 %v4778
  %v4973 = vunpack.c.h.b16 %v4778
  %v4974 = vunpack.c.l.b16 %v4779
  %v4975 = vunpack.c.h.b16 %v4779
  %v4976 = vunpack.c.l.b16 %v4780
  %v4977 = vunpack.c.l.b16 %v4781
  %v4978 = vunpack.c.h.b16 %v4781
  %v4979 = vunpack.c.l.b16 %v4782
  %v4980 = vunpack.c.h.b16 %v4782
  %v4981 = vunpack.c.l.b16 %v4783
  %v4982 = vunpack.c.l.b16 %v4784
  %v4983 = vunpack.c.h.b16 %v4784
  %v4984 = vunpack.c.l.b16 %v4785
  %v4985 = vunpack.c.h.b16 %v4785
  %v4986 = vunpack.c.l.b16 %v4786
  %v4987 = vpack.c.b16 %v4867, %v4862
  %v4988 = vpack.c.b16 %v4868, %v4863
  %v4989 = vpack.c.b16 %v4869, %v4864
  %v4990 = vpack.c.b16 %v4870, %v4865
  %v4991 = vpack.c.b16 %v4871, %v4866
  %v4992 = vpack.c.b16 %v4877, %v4872
  %v4993 = vpack.c.b16 %v4878, %v4873
  %v4994 = vpack.c.b16 %v4879, %v4874
  %v4995 = vpack.c.b16 %v4880, %v4875
  %v4996 = vpack.c.b16 %v4881, %v4876
  %v4997 = vpack.c.b16 %v4887, %v4882
  %v4998 = vpack.c.b16 %v4888, %v4883
  %v4999 = vpack.c.b16 %v4889, %v4884
  %v5000 = vpack.c.b16 %v4890, %v4885
  %v5001 = vpack.c.b16 %v4891, %v4886
  %v5002 = vpack.c.b16 %v4897, %v4892
  %v5003 = vpack.c.b16 %v4898, %v4893
  %v5004 = vpack.c.b16 %v4899, %v4894
  %v5005 = vpack.c.b16 %v4900, %v4895
  %v5006 = vpack.c.b16 %v4901, %v4896
  %v5007 = vpack.c.b16 %v4907, %v4902
  %v5008 = vpack.c.b16 %v4908, %v4903
  %v5009 = vpack.c.b16 %v4909, %v4904
  %v5010 = vpack.c.b16 %v4910, %v4905
  %v5011 = vpack.c.b16 %v4911, %v4906
  %v5012 = vpack.c.b16 %v4917, %v4912
  %v5013 = vpack.c.b16 %v4918, %v4913
  %v5014 = vpack.c.b16 %v4919, %v4914
  %v5015 = vpack.c.b16 %v4920, %v4915
  %v5016 = vpack.c.b16 %v4921, %v4916
  %v5017 = vpack.c.b16 %v4927, %v4922
  %v5018 = vpack.c.b16 %v4928, %v4923
  %v5019 = vpack.c.b16 %v4929, %v4924
  %v5020 = vpack.c.b16 %v4930, %v4925
  %v5021 = vpack.c.b16 %v4931, %v4926
  %v5022 = vpack.c.b16 %v4937, %v4932
  %v5023 = vpack.c.b16 %v4938, %v4933
  %v5024 = vpack.c.b16 %v4939, %v4934
  %v5025 = vpack.c.b16 %v4940, %v4935
  %v5026 = vpack.c.b16 %v4941, %v4936
  %v5027 = vpack.c.b16 %v4947, %v4942
  %v5028 = vpack.c.b16 %v4948, %v4943
  %v5029 = vpack.c.b16 %v4949, %v4944
  %v5030 = vpack.c.b16 %v4950, %v4945
  %v5031 = vpack.c.b16 %v4951, %v4946
  %v5032 = vpack.c.b16 %v4957, %v4952
  %v5033 = vpack.c.b16 %v4958, %v4953
  %v5034 = vpack.c.b16 %v4959, %v4954
  %v5035 = vpack.c.b16 %v4960, %v4955
  %v5036 = vpack.c.b16 %v4961, %v4956
  %v5037 = vpack.c.b16 %v4967, %v4962
  %v5038 = vpack.c.b16 %v4968, %v4963
  %v5039 = vpack.c.b16 %v4969, %v4964
  %v5040 = vpack.c.b16 %v4970, %v4965
  %v5041 = vpack.c.b16 %v4971, %v4966
  %v5042 = vpack.c.b16 %v4977, %v4972
  %v5043 = vpack.c.b16 %v4978, %v4973
  %v5044 = vpack.c.b16 %v4979, %v4974
  %v5045 = vpack.c.b16 %v4980, %v4975
  %v5046 = vpack.c.b16 %v4981, %v4976
  %v5047 = vpack.c.b16 %v4982, %v4982
  %v5048 = vpack.c.b16 %v4983, %v4983
  %v5049 = vpack.c.b16 %v4984, %v4984
  %v5050 = vpack.c.b16 %v4985, %v4985
  %v5051 = vpack.c.b16 %v4986, %v4986
  %v5113 = vsel %vm4101, %v4711, 0
  %v5116 = vsel %vm4105, %v5047, 0
  %v5119 = vsel %vm4105, %v5048, 0
  %v5122 = vsel %vm4105, %v5049, 0
  %v5125 = vsel %vm4105, %v5050, 0
  %v5128 = vsel %vm4105, %v5051, 0
  %5130 = vmatprep.subr.bf16.mxu0 %v5023
  %5131 = vmatpush1.bf16.msra.mxu0 %v5022
  %5132 = vmatprep.subr.bf16.mxu0 %v5018
  %5133 = vmatpush1.bf16.msra.mxu0 %v5017
  %5134 = vmatprep.subr.bf16.mxu0 %v5013
  %5135 = vmatpush1.bf16.msra.mxu0 %v5012
  %5136 = vmatprep.subr.bf16.mxu0 %v5008
  %5137 = vmatpush1.bf16.msra.mxu0 %v5007
  %5138 = vmatprep.subr.bf16.mxu0 %v5003
  %5139 = vmatpush1.bf16.msra.mxu0 %v5002
  %5140 = vmatprep.subr.bf16.mxu0 %v4998
  %5141 = vmatpush1.bf16.msra.mxu0 %v4997
  %5142 = vmatprep.subr.bf16.mxu0 %v4993
  %5143 = vmatpush1.bf16.msra.mxu0 %v4992
  %5144 = vmatprep.subr.bf16.mxu0 %v4988
  %5145 = vmatpush1.bf16.msra.mxu0 %v4987
  %5146 = vmatprep.subr.bf16.mxu0 0
  %5147 = vmatpush2.bf16.msra.mxu0 0
  %5148 = vmatprep.subr.bf16.mxu0 0
  %5149 = vmatpush2.bf16.msra.mxu0 0
  %5150 = vmatprep.subr.bf16.mxu0 0
  %5151 = vmatpush2.bf16.msra.mxu0 0
  %5152 = vmatprep.subr.bf16.mxu0 %v5119
  %5153 = vmatpush2.bf16.msra.mxu0 %v5116
  %5154 = vmatprep.subr.bf16.mxu0 %v5043
  %5155 = vmatpush2.bf16.msra.mxu0 %v5042
  %5156 = vmatprep.subr.bf16.mxu0 %v5038
  %5157 = vmatpush2.bf16.msra.mxu0 %v5037
  %5158 = vmatprep.subr.bf16.mxu0 %v5033
  %5159 = vmatpush2.bf16.msra.mxu0 %v5032
  %5160 = vmatprep.subr.bf16.mxu0 %v5028
  %5161 = vmatpush2.bf16.msra.mxu0 %v5027
  %5162 = vmatprep.mubr.bf16.mxu0 %v5113
  %5163 = vmatmul.mubr.bf16.gmra.mxu0 %v4710
  %v5164 = vpop.f32.mrf.mxu0
  %v5165 = vadd.f32 0.0, %v5164
  %v5166 = vpop.f32.mrf.mxu0
  %v5167 = vadd.f32 0.0, %v5166
  %v5168 = vpop.f32.mrf.mxu0
  %v5169 = vpop.f32.mrf.mxu0
  %5170 = vdwg.mxu0
  %5171 = vmatprep.subr.bf16.mxu0 %v5025
  %5172 = vmatpush1.bf16.msra.mxu0 %v5024
  %5173 = vmatprep.subr.bf16.mxu0 %v5020
  %5174 = vmatpush1.bf16.msra.mxu0 %v5019
  %5175 = vmatprep.subr.bf16.mxu0 %v5015
  %5176 = vmatpush1.bf16.msra.mxu0 %v5014
  %5177 = vmatprep.subr.bf16.mxu0 %v5010
  %5178 = vmatpush1.bf16.msra.mxu0 %v5009
  %5179 = vmatprep.subr.bf16.mxu0 %v5005
  %5180 = vmatpush1.bf16.msra.mxu0 %v5004
  %5181 = vmatprep.subr.bf16.mxu0 %v5000
  %5182 = vmatpush1.bf16.msra.mxu0 %v4999
  %5183 = vmatprep.subr.bf16.mxu0 %v4995
  %5184 = vmatpush1.bf16.msra.mxu0 %v4994
  %5185 = vmatprep.subr.bf16.mxu0 %v4990
  %5186 = vmatpush1.bf16.msra.mxu0 %v4989
  %5187 = vmatprep.subr.bf16.mxu0 0
  %5188 = vmatpush2.bf16.msra.mxu0 0
  %5189 = vmatprep.subr.bf16.mxu0 0
  %5190 = vmatpush2.bf16.msra.mxu0 0
  %5191 = vmatprep.subr.bf16.mxu0 0
  %5192 = vmatpush2.bf16.msra.mxu0 0
  %5193 = vmatprep.subr.bf16.mxu0 %v5125
  %5194 = vmatpush2.bf16.msra.mxu0 %v5122
  %5195 = vmatprep.subr.bf16.mxu0 %v5045
  %5196 = vmatpush2.bf16.msra.mxu0 %v5044
  %5197 = vmatprep.subr.bf16.mxu0 %v5040
  %5198 = vmatpush2.bf16.msra.mxu0 %v5039
  %5199 = vmatprep.subr.bf16.mxu0 %v5035
  %5200 = vmatpush2.bf16.msra.mxu0 %v5034
  %5201 = vmatprep.subr.bf16.mxu0 %v5030
  %5202 = vmatpush2.bf16.msra.mxu0 %v5029
  %5203 = vmatprep.mubr.bf16.mxu0 %v5113
  %5204 = vmatmul.mubr.bf16.gmra.mxu0 %v4710
  %v5205 = vpop.f32.mrf.mxu0
  %v5206 = vadd.f32 0.0, %v5205
  %v5207 = vpop.f32.mrf.mxu0
  %v5208 = vadd.f32 0.0, %v5207
  %v5209 = vpop.f32.mrf.mxu0
  %v5210 = vpop.f32.mrf.mxu0
  %5211 = vdwg.mxu0
  %5212 = vmatprep.subr.bf16.mxu0 0
  %5213 = vmatpush1.bf16.msra.mxu0 %v5026
  %5214 = vmatprep.subr.bf16.mxu0 0
  %5215 = vmatpush1.bf16.msra.mxu0 %v5021
  %5216 = vmatprep.subr.bf16.mxu0 0
  %5217 = vmatpush1.bf16.msra.mxu0 %v5016
  %5218 = vmatprep.subr.bf16.mxu0 0
  %5219 = vmatpush1.bf16.msra.mxu0 %v5011
  %5220 = vmatprep.subr.bf16.mxu0 0
  %5221 = vmatpush1.bf16.msra.mxu0 %v5006
  %5222 = vmatprep.subr.bf16.mxu0 0
  %5223 = vmatpush1.bf16.msra.mxu0 %v5001
  %5224 = vmatprep.subr.bf16.mxu0 0
  %5225 = vmatpush1.bf16.msra.mxu0 %v4996
  %5226 = vmatprep.subr.bf16.mxu0 0
  %5227 = vmatpush1.bf16.msra.mxu0 %v4991
  %5228 = vmatprep.subr.bf16.mxu0 0
  %5229 = vmatpush2.bf16.msra.mxu0 0
  %5230 = vmatprep.subr.bf16.mxu0 0
  %5231 = vmatpush2.bf16.msra.mxu0 0
  %5232 = vmatprep.subr.bf16.mxu0 0
  %5233 = vmatpush2.bf16.msra.mxu0 0
  %5234 = vmatprep.subr.bf16.mxu0 0
  %5235 = vmatpush2.bf16.msra.mxu0 %v5128
  %5236 = vmatprep.subr.bf16.mxu0 0
  %5237 = vmatpush2.bf16.msra.mxu0 %v5046
  %5238 = vmatprep.subr.bf16.mxu0 0
  %5239 = vmatpush2.bf16.msra.mxu0 %v5041
  %5240 = vmatprep.subr.bf16.mxu0 0
  %5241 = vmatpush2.bf16.msra.mxu0 %v5036
  %5242 = vmatprep.subr.bf16.mxu0 0
  %5243 = vmatpush2.bf16.msra.mxu0 %v5031
  %5244 = vmatprep.mubr.bf16.mxu0 %v5113
  %5245 = vmatmul.mubr.bf16.gmra.mxu0 %v4710
  %v5246 = vpop.f32.mrf.mxu0
  %v5247 = vadd.f32 0.0, %v5246
  %v5248 = vpop.f32.mrf.mxu0
  %v5249 = vpop.f32.mrf.mxu0
  %v5250 = vpop.f32.mrf.mxu0
  %5251 = vdwg.mxu0
  %v5252 = vadd.f32 %v4621, %v5165
  %v5253 = vadd.f32 %v4623, %v5167
  %v5254 = vadd.f32 %v4662, %v5206
  %v5255 = vadd.f32 %v4664, %v5208
  %v5256 = vadd.f32 %v4703, %v5247
  %v5257 = vmax.f32 %v3610, %v3612
  %v5258 = vmax.f32 %v3611, %v3613
  %v5259 = vpack.c.bf16 %v5257, %v5257
  %v5260 = vpack.c.bf16 %v5258, %v5258
  %v5261 = vld [vmem:[%s5 + $0x5dc] sm:$0xff]
  %v5262 = vld [vmem:[%s5 + $0x5e4] sm:$0xff]
  %v5263 = vld [vmem:[%s5 + $0x5ec] sm:$0xf]
  %v5264 = vld [vmem:[%s5 + $0x5f0] sm:$0xff]
  %v5265 = vld [vmem:[%s5 + $0x5f8] sm:$0xff]
  %v5266 = vld [vmem:[%s5 + $0x600] sm:$0xf]
  %v5267 = vld [vmem:[%s5 + $0x604] sm:$0xff]
  %v5268 = vld [vmem:[%s5 + $0x60c] sm:$0xff]
  %v5269 = vld [vmem:[%s5 + $0x614] sm:$0xf]
  %v5270 = vld [vmem:[%s5 + $0x618] sm:$0xff]
  %v5271 = vld [vmem:[%s5 + $0x620] sm:$0xff]
  %v5272 = vld [vmem:[%s5 + $0x628] sm:$0xf]
  %v5273 = vld [vmem:[%s5 + $0x62c] sm:$0xff]
  %v5274 = vld [vmem:[%s5 + $0x634] sm:$0xff]
  %v5275 = vld [vmem:[%s5 + $0x63c] sm:$0xf]
  %v5276 = vld [vmem:[%s5 + $0x640] sm:$0xff]
  %v5277 = vld [vmem:[%s5 + $0x648] sm:$0xff]
  %v5278 = vld [vmem:[%s5 + $0x650] sm:$0xf]
  %v5279 = vld [vmem:[%s5 + $0x654] sm:$0xff]
  %v5280 = vld [vmem:[%s5 + $0x65c] sm:$0xff]
  %v5281 = vld [vmem:[%s5 + $0x664] sm:$0xf]
  %v5282 = vld [vmem:[%s5 + $0x668] sm:$0xff]
  %v5283 = vld [vmem:[%s5 + $0x670] sm:$0xff]
  %v5284 = vld [vmem:[%s5 + $0x678] sm:$0xf]
  %v5285 = vld [vmem:[%s5 + $0x67c] sm:$0xff]
  %v5286 = vld [vmem:[%s5 + $0x684] sm:$0xff]
  %v5287 = vld [vmem:[%s5 + $0x68c] sm:$0xf]
  %v5288 = vld [vmem:[%s5 + $0x690] sm:$0xff]
  %v5289 = vld [vmem:[%s5 + $0x698] sm:$0xff]
  %v5290 = vld [vmem:[%s5 + $0x6a0] sm:$0xf]
  %v5291 = vld [vmem:[%s5 + $0x6a4] sm:$0xff]
  %v5292 = vld [vmem:[%s5 + $0x6ac] sm:$0xff]
  %v5293 = vld [vmem:[%s5 + $0x6b4] sm:$0xf]
  %v5294 = vld [vmem:[%s5 + $0x6b8] sm:$0xff]
  %v5295 = vld [vmem:[%s5 + $0x6c0] sm:$0xff]
  %v5296 = vld [vmem:[%s5 + $0x6c8] sm:$0xf]
  %v5297 = vld [vmem:[%s5 + $0x6cc] sm:$0xff]
  %v5298 = vld [vmem:[%s5 + $0x6d4] sm:$0xff]
  %v5299 = vld [vmem:[%s5 + $0x6dc] sm:$0xf]
  %v5300 = vld [vmem:[%s5 + $0x6e0] sm:$0xff]
  %v5301 = vld [vmem:[%s5 + $0x6e8] sm:$0xff]
  %v5302 = vld [vmem:[%s5 + $0x6f0] sm:$0xf]
  %v5303 = vld [vmem:[%s5 + $0x6f4] sm:$0xff]
  %v5304 = vld [vmem:[%s5 + $0x6fc] sm:$0xff]
  %v5305 = vld [vmem:[%s5 + $0x704] sm:$0xf]
  %v5306 = vld [vmem:[%s5 + $0x708] sm:$0xff]
  %v5307 = vld [vmem:[%s5 + $0x710] sm:$0xff]
  %v5308 = vld [vmem:[%s5 + $0x718] sm:$0xf]
  %v5309 = vld [vmem:[%s5 + $0x71c] sm:$0xff]
  %v5310 = vld [vmem:[%s5 + $0x724] sm:$0xff]
  %v5311 = vld [vmem:[%s5 + $0x72c] sm:$0xf]
  %v5312 = vld [vmem:[%s5 + $0x730] sm:$0xff]
  %v5313 = vld [vmem:[%s5 + $0x738] sm:$0xff]
  %v5314 = vld [vmem:[%s5 + $0x740] sm:$0xf]
  %v5315 = vld [vmem:[%s5 + $0x744] sm:$0xff]
  %v5316 = vld [vmem:[%s5 + $0x74c] sm:$0xff]
  %v5317 = vld [vmem:[%s5 + $0x754] sm:$0xf]
  %v5318 = vld [vmem:[%s5 + $0x758] sm:$0xff]
  %v5319 = vld [vmem:[%s5 + $0x760] sm:$0xff]
  %v5320 = vld [vmem:[%s5 + $0x768] sm:$0xf]
  %v5321 = vld [vmem:[%s5 + $0x76c] sm:$0xff]
  %v5322 = vld [vmem:[%s5 + $0x774] sm:$0xff]
  %v5323 = vld [vmem:[%s5 + $0x77c] sm:$0xf]
  %v5324 = vld [vmem:[%s5 + $0x780] sm:$0xff]
  %v5325 = vld [vmem:[%s5 + $0x788] sm:$0xff]
  %v5326 = vld [vmem:[%s5 + $0x790] sm:$0xf]
  %v5327 = vld [vmem:[%s5 + $0x794] sm:$0xff]
  %v5328 = vld [vmem:[%s5 + $0x79c] sm:$0xff]
  %v5329 = vld [vmem:[%s5 + $0x7a4] sm:$0xf]
  %v5330 = vld [vmem:[%s5 + $0x7a8] sm:$0xff]
  %v5331 = vld [vmem:[%s5 + $0x7b0] sm:$0xff]
  %v5332 = vld [vmem:[%s5 + $0x7b8] sm:$0xf]
  %v5333 = vld [vmem:[%s5 + $0x7bc] sm:$0xff]
  %v5334 = vld [vmem:[%s5 + $0x7c4] sm:$0xff]
  %v5335 = vld [vmem:[%s5 + $0x7cc] sm:$0xf]
  %v5411 = vunpack.c.l.b16 %v5261
  %v5412 = vunpack.c.h.b16 %v5261
  %v5413 = vunpack.c.l.b16 %v5262
  %v5414 = vunpack.c.h.b16 %v5262
  %v5415 = vunpack.c.l.b16 %v5263
  %v5416 = vunpack.c.l.b16 %v5264
  %v5417 = vunpack.c.h.b16 %v5264
  %v5418 = vunpack.c.l.b16 %v5265
  %v5419 = vunpack.c.h.b16 %v5265
  %v5420 = vunpack.c.l.b16 %v5266
  %v5421 = vunpack.c.l.b16 %v5267
  %v5422 = vunpack.c.h.b16 %v5267
  %v5423 = vunpack.c.l.b16 %v5268
  %v5424 = vunpack.c.h.b16 %v5268
  %v5425 = vunpack.c.l.b16 %v5269
  %v5426 = vunpack.c.l.b16 %v5270
  %v5427 = vunpack.c.h.b16 %v5270
  %v5428 = vunpack.c.l.b16 %v5271
  %v5429 = vunpack.c.h.b16 %v5271
  %v5430 = vunpack.c.l.b16 %v5272
  %v5431 = vunpack.c.l.b16 %v5273
  %v5432 = vunpack.c.h.b16 %v5273
  %v5433 = vunpack.c.l.b16 %v5274
  %v5434 = vunpack.c.h.b16 %v5274
  %v5435 = vunpack.c.l.b16 %v5275
  %v5436 = vunpack.c.l.b16 %v5276
  %v5437 = vunpack.c.h.b16 %v5276
  %v5438 = vunpack.c.l.b16 %v5277
  %v5439 = vunpack.c.h.b16 %v5277
  %v5440 = vunpack.c.l.b16 %v5278
  %v5441 = vunpack.c.l.b16 %v5279
  %v5442 = vunpack.c.h.b16 %v5279
  %v5443 = vunpack.c.l.b16 %v5280
  %v5444 = vunpack.c.h.b16 %v5280
  %v5445 = vunpack.c.l.b16 %v5281
  %v5446 = vunpack.c.l.b16 %v5282
  %v5447 = vunpack.c.h.b16 %v5282
  %v5448 = vunpack.c.l.b16 %v5283
  %v5449 = vunpack.c.h.b16 %v5283
  %v5450 = vunpack.c.l.b16 %v5284
  %v5451 = vunpack.c.l.b16 %v5285
  %v5452 = vunpack.c.h.b16 %v5285
  %v5453 = vunpack.c.l.b16 %v5286
  %v5454 = vunpack.c.h.b16 %v5286
  %v5455 = vunpack.c.l.b16 %v5287
  %v5456 = vunpack.c.l.b16 %v5288
  %v5457 = vunpack.c.h.b16 %v5288
  %v5458 = vunpack.c.l.b16 %v5289
  %v5459 = vunpack.c.h.b16 %v5289
  %v5460 = vunpack.c.l.b16 %v5290
  %v5461 = vunpack.c.l.b16 %v5291
  %v5462 = vunpack.c.h.b16 %v5291
  %v5463 = vunpack.c.l.b16 %v5292
  %v5464 = vunpack.c.h.b16 %v5292
  %v5465 = vunpack.c.l.b16 %v5293
  %v5466 = vunpack.c.l.b16 %v5294
  %v5467 = vunpack.c.h.b16 %v5294
  %v5468 = vunpack.c.l.b16 %v5295
  %v5469 = vunpack.c.h.b16 %v5295
  %v5470 = vunpack.c.l.b16 %v5296
  %v5471 = vunpack.c.l.b16 %v5297
  %v5472 = vunpack.c.h.b16 %v5297
  %v5473 = vunpack.c.l.b16 %v5298
  %v5474 = vunpack.c.h.b16 %v5298
  %v5475 = vunpack.c.l.b16 %v5299
  %v5476 = vunpack.c.l.b16 %v5300
  %v5477 = vunpack.c.h.b16 %v5300
  %v5478 = vunpack.c.l.b16 %v5301
  %v5479 = vunpack.c.h.b16 %v5301
  %v5480 = vunpack.c.l.b16 %v5302
  %v5481 = vunpack.c.l.b16 %v5303
  %v5482 = vunpack.c.h.b16 %v5303
  %v5483 = vunpack.c.l.b16 %v5304
  %v5484 = vunpack.c.h.b16 %v5304
  %v5485 = vunpack.c.l.b16 %v5305
  %v5486 = vunpack.c.l.b16 %v5306
  %v5487 = vunpack.c.h.b16 %v5306
  %v5488 = vunpack.c.l.b16 %v5307
  %v5489 = vunpack.c.h.b16 %v5307
  %v5490 = vunpack.c.l.b16 %v5308
  %v5491 = vunpack.c.l.b16 %v5309
  %v5492 = vunpack.c.h.b16 %v5309
  %v5493 = vunpack.c.l.b16 %v5310
  %v5494 = vunpack.c.h.b16 %v5310
  %v5495 = vunpack.c.l.b16 %v5311
  %v5496 = vunpack.c.l.b16 %v5312
  %v5497 = vunpack.c.h.b16 %v5312
  %v5498 = vunpack.c.l.b16 %v5313
  %v5499 = vunpack.c.h.b16 %v5313
  %v5500 = vunpack.c.l.b16 %v5314
  %v5501 = vunpack.c.l.b16 %v5315
  %v5502 = vunpack.c.h.b16 %v5315
  %v5503 = vunpack.c.l.b16 %v5316
  %v5504 = vunpack.c.h.b16 %v5316
  %v5505 = vunpack.c.l.b16 %v5317
  %v5506 = vunpack.c.l.b16 %v5318
  %v5507 = vunpack.c.h.b16 %v5318
  %v5508 = vunpack.c.l.b16 %v5319
  %v5509 = vunpack.c.h.b16 %v5319
  %v5510 = vunpack.c.l.b16 %v5320
  %v5511 = vunpack.c.l.b16 %v5321
  %v5512 = vunpack.c.h.b16 %v5321
  %v5513 = vunpack.c.l.b16 %v5322
  %v5514 = vunpack.c.h.b16 %v5322
  %v5515 = vunpack.c.l.b16 %v5323
  %v5516 = vunpack.c.l.b16 %v5324
  %v5517 = vunpack.c.h.b16 %v5324
  %v5518 = vunpack.c.l.b16 %v5325
  %v5519 = vunpack.c.h.b16 %v5325
  %v5520 = vunpack.c.l.b16 %v5326
  %v5521 = vunpack.c.l.b16 %v5327
  %v5522 = vunpack.c.h.b16 %v5327
  %v5523 = vunpack.c.l.b16 %v5328
  %v5524 = vunpack.c.h.b16 %v5328
  %v5525 = vunpack.c.l.b16 %v5329
  %v5526 = vunpack.c.l.b16 %v5330
  %v5527 = vunpack.c.h.b16 %v5330
  %v5528 = vunpack.c.l.b16 %v5331
  %v5529 = vunpack.c.h.b16 %v5331
  %v5530 = vunpack.c.l.b16 %v5332
  %v5531 = vunpack.c.l.b16 %v5333
  %v5532 = vunpack.c.h.b16 %v5333
  %v5533 = vunpack.c.l.b16 %v5334
  %v5534 = vunpack.c.h.b16 %v5334
  %v5535 = vunpack.c.l.b16 %v5335
  %v5536 = vpack.c.b16 %v5416, %v5411
  %v5537 = vpack.c.b16 %v5417, %v5412
  %v5538 = vpack.c.b16 %v5418, %v5413
  %v5539 = vpack.c.b16 %v5419, %v5414
  %v5540 = vpack.c.b16 %v5420, %v5415
  %v5541 = vpack.c.b16 %v5426, %v5421
  %v5542 = vpack.c.b16 %v5427, %v5422
  %v5543 = vpack.c.b16 %v5428, %v5423
  %v5544 = vpack.c.b16 %v5429, %v5424
  %v5545 = vpack.c.b16 %v5430, %v5425
  %v5546 = vpack.c.b16 %v5436, %v5431
  %v5547 = vpack.c.b16 %v5437, %v5432
  %v5548 = vpack.c.b16 %v5438, %v5433
  %v5549 = vpack.c.b16 %v5439, %v5434
  %v5550 = vpack.c.b16 %v5440, %v5435
  %v5551 = vpack.c.b16 %v5446, %v5441
  %v5552 = vpack.c.b16 %v5447, %v5442
  %v5553 = vpack.c.b16 %v5448, %v5443
  %v5554 = vpack.c.b16 %v5449, %v5444
  %v5555 = vpack.c.b16 %v5450, %v5445
  %v5556 = vpack.c.b16 %v5456, %v5451
  %v5557 = vpack.c.b16 %v5457, %v5452
  %v5558 = vpack.c.b16 %v5458, %v5453
  %v5559 = vpack.c.b16 %v5459, %v5454
  %v5560 = vpack.c.b16 %v5460, %v5455
  %v5561 = vpack.c.b16 %v5466, %v5461
  %v5562 = vpack.c.b16 %v5467, %v5462
  %v5563 = vpack.c.b16 %v5468, %v5463
  %v5564 = vpack.c.b16 %v5469, %v5464
  %v5565 = vpack.c.b16 %v5470, %v5465
  %v5566 = vpack.c.b16 %v5476, %v5471
  %v5567 = vpack.c.b16 %v5477, %v5472
  %v5568 = vpack.c.b16 %v5478, %v5473
  %v5569 = vpack.c.b16 %v5479, %v5474
  %v5570 = vpack.c.b16 %v5480, %v5475
  %v5571 = vpack.c.b16 %v5486, %v5481
  %v5572 = vpack.c.b16 %v5487, %v5482
  %v5573 = vpack.c.b16 %v5488, %v5483
  %v5574 = vpack.c.b16 %v5489, %v5484
  %v5575 = vpack.c.b16 %v5490, %v5485
  %v5576 = vpack.c.b16 %v5496, %v5491
  %v5577 = vpack.c.b16 %v5497, %v5492
  %v5578 = vpack.c.b16 %v5498, %v5493
  %v5579 = vpack.c.b16 %v5499, %v5494
  %v5580 = vpack.c.b16 %v5500, %v5495
  %v5581 = vpack.c.b16 %v5506, %v5501
  %v5582 = vpack.c.b16 %v5507, %v5502
  %v5583 = vpack.c.b16 %v5508, %v5503
  %v5584 = vpack.c.b16 %v5509, %v5504
  %v5585 = vpack.c.b16 %v5510, %v5505
  %v5586 = vpack.c.b16 %v5516, %v5511
  %v5587 = vpack.c.b16 %v5517, %v5512
  %v5588 = vpack.c.b16 %v5518, %v5513
  %v5589 = vpack.c.b16 %v5519, %v5514
  %v5590 = vpack.c.b16 %v5520, %v5515
  %v5591 = vpack.c.b16 %v5526, %v5521
  %v5592 = vpack.c.b16 %v5527, %v5522
  %v5593 = vpack.c.b16 %v5528, %v5523
  %v5594 = vpack.c.b16 %v5529, %v5524
  %v5595 = vpack.c.b16 %v5530, %v5525
  %v5596 = vpack.c.b16 %v5531, %v5531
  %v5597 = vpack.c.b16 %v5532, %v5532
  %v5598 = vpack.c.b16 %v5533, %v5533
  %v5599 = vpack.c.b16 %v5534, %v5534
  %v5600 = vpack.c.b16 %v5535, %v5535
  %v5662 = vsel %vm4101, %v5260, 0
  %v5665 = vsel %vm4105, %v5596, 0
  %v5668 = vsel %vm4105, %v5597, 0
  %v5671 = vsel %vm4105, %v5598, 0
  %v5674 = vsel %vm4105, %v5599, 0
  %v5677 = vsel %vm4105, %v5600, 0
  %5679 = vmatprep.subr.bf16.mxu0 %v5572
  %5680 = vmatpush1.bf16.msra.mxu0 %v5571
  %5681 = vmatprep.subr.bf16.mxu0 %v5567
  %5682 = vmatpush1.bf16.msra.mxu0 %v5566
  %5683 = vmatprep.subr.bf16.mxu0 %v5562
  %5684 = vmatpush1.bf16.msra.mxu0 %v5561
  %5685 = vmatprep.subr.bf16.mxu0 %v5557
  %5686 = vmatpush1.bf16.msra.mxu0 %v5556
  %5687 = vmatprep.subr.bf16.mxu0 %v5552
  %5688 = vmatpush1.bf16.msra.mxu0 %v5551
  %5689 = vmatprep.subr.bf16.mxu0 %v5547
  %5690 = vmatpush1.bf16.msra.mxu0 %v5546
  %5691 = vmatprep.subr.bf16.mxu0 %v5542
  %5692 = vmatpush1.bf16.msra.mxu0 %v5541
  %5693 = vmatprep.subr.bf16.mxu0 %v5537
  %5694 = vmatpush1.bf16.msra.mxu0 %v5536
  %5695 = vmatprep.subr.bf16.mxu0 0
  %5696 = vmatpush2.bf16.msra.mxu0 0
  %5697 = vmatprep.subr.bf16.mxu0 0
  %5698 = vmatpush2.bf16.msra.mxu0 0
  %5699 = vmatprep.subr.bf16.mxu0 0
  %5700 = vmatpush2.bf16.msra.mxu0 0
  %5701 = vmatprep.subr.bf16.mxu0 %v5668
  %5702 = vmatpush2.bf16.msra.mxu0 %v5665
  %5703 = vmatprep.subr.bf16.mxu0 %v5592
  %5704 = vmatpush2.bf16.msra.mxu0 %v5591
  %5705 = vmatprep.subr.bf16.mxu0 %v5587
  %5706 = vmatpush2.bf16.msra.mxu0 %v5586
  %5707 = vmatprep.subr.bf16.mxu0 %v5582
  %5708 = vmatpush2.bf16.msra.mxu0 %v5581
  %5709 = vmatprep.subr.bf16.mxu0 %v5577
  %5710 = vmatpush2.bf16.msra.mxu0 %v5576
  %5711 = vmatprep.mubr.bf16.mxu0 %v5662
  %5712 = vmatmul.mubr.bf16.gmra.mxu0 %v5259
  %v5713 = vpop.f32.mrf.mxu0
  %v5714 = vadd.f32 0.0, %v5713
  %v5715 = vpop.f32.mrf.mxu0
  %v5716 = vadd.f32 0.0, %v5715
  %v5717 = vpop.f32.mrf.mxu0
  %v5718 = vpop.f32.mrf.mxu0
  %5719 = vdwg.mxu0
  %5720 = vmatprep.subr.bf16.mxu0 %v5574
  %5721 = vmatpush1.bf16.msra.mxu0 %v5573
  %5722 = vmatprep.subr.bf16.mxu0 %v5569
  %5723 = vmatpush1.bf16.msra.mxu0 %v5568
  %5724 = vmatprep.subr.bf16.mxu0 %v5564
  %5725 = vmatpush1.bf16.msra.mxu0 %v5563
  %5726 = vmatprep.subr.bf16.mxu0 %v5559
  %5727 = vmatpush1.bf16.msra.mxu0 %v5558
  %5728 = vmatprep.subr.bf16.mxu0 %v5554
  %5729 = vmatpush1.bf16.msra.mxu0 %v5553
  %5730 = vmatprep.subr.bf16.mxu0 %v5549
  %5731 = vmatpush1.bf16.msra.mxu0 %v5548
  %5732 = vmatprep.subr.bf16.mxu0 %v5544
  %5733 = vmatpush1.bf16.msra.mxu0 %v5543
  %5734 = vmatprep.subr.bf16.mxu0 %v5539
  %5735 = vmatpush1.bf16.msra.mxu0 %v5538
  %5736 = vmatprep.subr.bf16.mxu0 0
  %5737 = vmatpush2.bf16.msra.mxu0 0
  %5738 = vmatprep.subr.bf16.mxu0 0
  %5739 = vmatpush2.bf16.msra.mxu0 0
  %5740 = vmatprep.subr.bf16.mxu0 0
  %5741 = vmatpush2.bf16.msra.mxu0 0
  %5742 = vmatprep.subr.bf16.mxu0 %v5674
  %5743 = vmatpush2.bf16.msra.mxu0 %v5671
  %5744 = vmatprep.subr.bf16.mxu0 %v5594
  %5745 = vmatpush2.bf16.msra.mxu0 %v5593
  %5746 = vmatprep.subr.bf16.mxu0 %v5589
  %5747 = vmatpush2.bf16.msra.mxu0 %v5588
  %5748 = vmatprep.subr.bf16.mxu0 %v5584
  %5749 = vmatpush2.bf16.msra.mxu0 %v5583
  %5750 = vmatprep.subr.bf16.mxu0 %v5579
  %5751 = vmatpush2.bf16.msra.mxu0 %v5578
  %5752 = vmatprep.mubr.bf16.mxu0 %v5662
  %5753 = vmatmul.mubr.bf16.gmra.mxu0 %v5259
  %v5754 = vpop.f32.mrf.mxu0
  %v5755 = vadd.f32 0.0, %v5754
  %v5756 = vpop.f32.mrf.mxu0
  %v5757 = vadd.f32 0.0, %v5756
  %v5758 = vpop.f32.mrf.mxu0
  %v5759 = vpop.f32.mrf.mxu0
  %5760 = vdwg.mxu0
  %5761 = vmatprep.subr.bf16.mxu0 0
  %5762 = vmatpush1.bf16.msra.mxu0 %v5575
  %5763 = vmatprep.subr.bf16.mxu0 0
  %5764 = vmatpush1.bf16.msra.mxu0 %v5570
  %5765 = vmatprep.subr.bf16.mxu0 0
  %5766 = vmatpush1.bf16.msra.mxu0 %v5565
  %5767 = vmatprep.subr.bf16.mxu0 0
  %5768 = vmatpush1.bf16.msra.mxu0 %v5560
  %5769 = vmatprep.subr.bf16.mxu0 0
  %5770 = vmatpush1.bf16.msra.mxu0 %v5555
  %5771 = vmatprep.subr.bf16.mxu0 0
  %5772 = vmatpush1.bf16.msra.mxu0 %v5550
  %5773 = vmatprep.subr.bf16.mxu0 0
  %5774 = vmatpush1.bf16.msra.mxu0 %v5545
  %5775 = vmatprep.subr.bf16.mxu0 0
  %5776 = vmatpush1.bf16.msra.mxu0 %v5540
  %5777 = vmatprep.subr.bf16.mxu0 0
  %5778 = vmatpush2.bf16.msra.mxu0 0
  %5779 = vmatprep.subr.bf16.mxu0 0
  %5780 = vmatpush2.bf16.msra.mxu0 0
  %5781 = vmatprep.subr.bf16.mxu0 0
  %5782 = vmatpush2.bf16.msra.mxu0 0
  %5783 = vmatprep.subr.bf16.mxu0 0
  %5784 = vmatpush2.bf16.msra.mxu0 %v5677
  %5785 = vmatprep.subr.bf16.mxu0 0
  %5786 = vmatpush2.bf16.msra.mxu0 %v5595
  %5787 = vmatprep.subr.bf16.mxu0 0
  %5788 = vmatpush2.bf16.msra.mxu0 %v5590
  %5789 = vmatprep.subr.bf16.mxu0 0
  %5790 = vmatpush2.bf16.msra.mxu0 %v5585
  %5791 = vmatprep.subr.bf16.mxu0 0
  %5792 = vmatpush2.bf16.msra.mxu0 %v5580
  %5793 = vmatprep.mubr.bf16.mxu0 %v5662
  %5794 = vmatmul.mubr.bf16.gmra.mxu0 %v5259
  %v5795 = vpop.f32.mrf.mxu0
  %v5796 = vadd.f32 0.0, %v5795
  %v5797 = vpop.f32.mrf.mxu0
  %v5798 = vpop.f32.mrf.mxu0
  %v5799 = vpop.f32.mrf.mxu0
  %5800 = vdwg.mxu0
  %v5801 = vadd.f32 %v5252, %v5714
  %v5802 = vadd.f32 %v5253, %v5716
  %v5803 = vadd.f32 %v5254, %v5755
  %v5804 = vadd.f32 %v5255, %v5757
  %v5805 = vadd.f32 %v5256, %v5796
  %v5806 = vmax.f32 %v3614, %v3616
  %v5807 = vmax.f32 %v3615, %v3617
  %v5808 = vpack.c.bf16 %v5806, %v5806
  %v5809 = vpack.c.bf16 %v5807, %v5807
  %v5810 = vld [vmem:[%s5 + $0x7d0] sm:$0xff]
  %v5811 = vld [vmem:[%s5 + $0x7d8] sm:$0xff]
  %v5812 = vld [vmem:[%s5 + $0x7e0] sm:$0xf]
  %v5813 = vld [vmem:[%s5 + $0x7e4] sm:$0xff]
  %v5814 = vld [vmem:[%s5 + $0x7ec] sm:$0xff]
  %v5815 = vld [vmem:[%s5 + $0x7f4] sm:$0xf]
  %v5816 = vld [vmem:[%s5 + $0x7f8] sm:$0xff]
  %v5817 = vld [vmem:[%s5 + $0x800] sm:$0xff]
  %v5818 = vld [vmem:[%s5 + $0x808] sm:$0xf]
  %v5819 = vld [vmem:[%s5 + $0x80c] sm:$0xff]
  %v5820 = vld [vmem:[%s5 + $0x814] sm:$0xff]
  %v5821 = vld [vmem:[%s5 + $0x81c] sm:$0xf]
  %v5822 = vld [vmem:[%s5 + $0x820] sm:$0xff]
  %v5823 = vld [vmem:[%s5 + $0x828] sm:$0xff]
  %v5824 = vld [vmem:[%s5 + $0x830] sm:$0xf]
  %v5825 = vld [vmem:[%s5 + $0x834] sm:$0xff]
  %v5826 = vld [vmem:[%s5 + $0x83c] sm:$0xff]
  %v5827 = vld [vmem:[%s5 + $0x844] sm:$0xf]
  %v5828 = vld [vmem:[%s5 + $0x848] sm:$0xff]
  %v5829 = vld [vmem:[%s5 + $0x850] sm:$0xff]
  %v5830 = vld [vmem:[%s5 + $0x858] sm:$0xf]
  %v5831 = vld [vmem:[%s5 + $0x85c] sm:$0xff]
  %v5832 = vld [vmem:[%s5 + $0x864] sm:$0xff]
  %v5833 = vld [vmem:[%s5 + $0x86c] sm:$0xf]
  %v5834 = vld [vmem:[%s5 + $0x870] sm:$0xff]
  %v5835 = vld [vmem:[%s5 + $0x878] sm:$0xff]
  %v5836 = vld [vmem:[%s5 + $0x880] sm:$0xf]
  %v5837 = vld [vmem:[%s5 + $0x884] sm:$0xff]
  %v5838 = vld [vmem:[%s5 + $0x88c] sm:$0xff]
  %v5839 = vld [vmem:[%s5 + $0x894] sm:$0xf]
  %v5840 = vld [vmem:[%s5 + $0x898] sm:$0xff]
  %v5841 = vld [vmem:[%s5 + $0x8a0] sm:$0xff]
  %v5842 = vld [vmem:[%s5 + $0x8a8] sm:$0xf]
  %v5843 = vld [vmem:[%s5 + $0x8ac] sm:$0xff]
  %v5844 = vld [vmem:[%s5 + $0x8b4] sm:$0xff]
  %v5845 = vld [vmem:[%s5 + $0x8bc] sm:$0xf]
  %v5846 = vld [vmem:[%s5 + $0x8c0] sm:$0xff]
  %v5847 = vld [vmem:[%s5 + $0x8c8] sm:$0xff]
  %v5848 = vld [vmem:[%s5 + $0x8d0] sm:$0xf]
  %v5849 = vld [vmem:[%s5 + $0x8d4] sm:$0xff]
  %v5850 = vld [vmem:[%s5 + $0x8dc] sm:$0xff]
  %v5851 = vld [vmem:[%s5 + $0x8e4] sm:$0xf]
  %v5852 = vld [vmem:[%s5 + $0x8e8] sm:$0xff]
  %v5853 = vld [vmem:[%s5 + $0x8f0] sm:$0xff]
  %v5854 = vld [vmem:[%s5 + $0x8f8] sm:$0xf]
  %v5855 = vld [vmem:[%s5 + $0x8fc] sm:$0xff]
  %v5856 = vld [vmem:[%s5 + $0x904] sm:$0xff]
  %v5857 = vld [vmem:[%s5 + $0x90c] sm:$0xf]
  %v5858 = vld [vmem:[%s5 + $0x910] sm:$0xff]
  %v5859 = vld [vmem:[%s5 + $0x918] sm:$0xff]
  %v5860 = vld [vmem:[%s5 + $0x920] sm:$0xf]
  %v5861 = vld [vmem:[%s5 + $0x924] sm:$0xff]
  %v5862 = vld [vmem:[%s5 + $0x92c] sm:$0xff]
  %v5863 = vld [vmem:[%s5 + $0x934] sm:$0xf]
  %v5864 = vld [vmem:[%s5 + $0x938] sm:$0xff]
  %v5865 = vld [vmem:[%s5 + $0x940] sm:$0xff]
  %v5866 = vld [vmem:[%s5 + $0x948] sm:$0xf]
  %v5867 = vld [vmem:[%s5 + $0x94c] sm:$0xff]
  %v5868 = vld [vmem:[%s5 + $0x954] sm:$0xff]
  %v5869 = vld [vmem:[%s5 + $0x95c] sm:$0xf]
  %v5870 = vld [vmem:[%s5 + $0x960] sm:$0xff]
  %v5871 = vld [vmem:[%s5 + $0x968] sm:$0xff]
  %v5872 = vld [vmem:[%s5 + $0x970] sm:$0xf]
  %v5873 = vld [vmem:[%s5 + $0x974] sm:$0xff]
  %v5874 = vld [vmem:[%s5 + $0x97c] sm:$0xff]
  %v5875 = vld [vmem:[%s5 + $0x984] sm:$0xf]
  %v5876 = vld [vmem:[%s5 + $0x988] sm:$0xff]
  %v5877 = vld [vmem:[%s5 + $0x990] sm:$0xff]
  %v5878 = vld [vmem:[%s5 + $0x998] sm:$0xf]
  %v5879 = vld [vmem:[%s5 + $0x99c] sm:$0xff]
  %v5880 = vld [vmem:[%s5 + $0x9a4] sm:$0xff]
  %v5881 = vld [vmem:[%s5 + $0x9ac] sm:$0xf]
  %v5882 = vld [vmem:[%s5 + $0x9b0] sm:$0xff]
  %v5883 = vld [vmem:[%s5 + $0x9b8] sm:$0xff]
  %v5884 = vld [vmem:[%s5 + $0x9c0] sm:$0xf]
  %v5960 = vunpack.c.l.b16 %v5810
  %v5961 = vunpack.c.h.b16 %v5810
  %v5962 = vunpack.c.l.b16 %v5811
  %v5963 = vunpack.c.h.b16 %v5811
  %v5964 = vunpack.c.l.b16 %v5812
  %v5965 = vunpack.c.l.b16 %v5813
  %v5966 = vunpack.c.h.b16 %v5813
  %v5967 = vunpack.c.l.b16 %v5814
  %v5968 = vunpack.c.h.b16 %v5814
  %v5969 = vunpack.c.l.b16 %v5815
  %v5970 = vunpack.c.l.b16 %v5816
  %v5971 = vunpack.c.h.b16 %v5816
  %v5972 = vunpack.c.l.b16 %v5817
  %v5973 = vunpack.c.h.b16 %v5817
  %v5974 = vunpack.c.l.b16 %v5818
  %v5975 = vunpack.c.l.b16 %v5819
  %v5976 = vunpack.c.h.b16 %v5819
  %v5977 = vunpack.c.l.b16 %v5820
  %v5978 = vunpack.c.h.b16 %v5820
  %v5979 = vunpack.c.l.b16 %v5821
  %v5980 = vunpack.c.l.b16 %v5822
  %v5981 = vunpack.c.h.b16 %v5822
  %v5982 = vunpack.c.l.b16 %v5823
  %v5983 = vunpack.c.h.b16 %v5823
  %v5984 = vunpack.c.l.b16 %v5824
  %v5985 = vunpack.c.l.b16 %v5825
  %v5986 = vunpack.c.h.b16 %v5825
  %v5987 = vunpack.c.l.b16 %v5826
  %v5988 = vunpack.c.h.b16 %v5826
  %v5989 = vunpack.c.l.b16 %v5827
  %v5990 = vunpack.c.l.b16 %v5828
  %v5991 = vunpack.c.h.b16 %v5828
  %v5992 = vunpack.c.l.b16 %v5829
  %v5993 = vunpack.c.h.b16 %v5829
  %v5994 = vunpack.c.l.b16 %v5830
  %v5995 = vunpack.c.l.b16 %v5831
  %v5996 = vunpack.c.h.b16 %v5831
  %v5997 = vunpack.c.l.b16 %v5832
  %v5998 = vunpack.c.h.b16 %v5832
  %v5999 = vunpack.c.l.b16 %v5833
  %v6000 = vunpack.c.l.b16 %v5834
  %v6001 = vunpack.c.h.b16 %v5834
  %v6002 = vunpack.c.l.b16 %v5835
  %v6003 = vunpack.c.h.b16 %v5835
  %v6004 = vunpack.c.l.b16 %v5836
  %v6005 = vunpack.c.l.b16 %v5837
  %v6006 = vunpack.c.h.b16 %v5837
  %v6007 = vunpack.c.l.b16 %v5838
  %v6008 = vunpack.c.h.b16 %v5838
  %v6009 = vunpack.c.l.b16 %v5839
  %v6010 = vunpack.c.l.b16 %v5840
  %v6011 = vunpack.c.h.b16 %v5840
  %v6012 = vunpack.c.l.b16 %v5841
  %v6013 = vunpack.c.h.b16 %v5841
  %v6014 = vunpack.c.l.b16 %v5842
  %v6015 = vunpack.c.l.b16 %v5843
  %v6016 = vunpack.c.h.b16 %v5843
  %v6017 = vunpack.c.l.b16 %v5844
  %v6018 = vunpack.c.h.b16 %v5844
  %v6019 = vunpack.c.l.b16 %v5845
  %v6020 = vunpack.c.l.b16 %v5846
  %v6021 = vunpack.c.h.b16 %v5846
  %v6022 = vunpack.c.l.b16 %v5847
  %v6023 = vunpack.c.h.b16 %v5847
  %v6024 = vunpack.c.l.b16 %v5848
  %v6025 = vunpack.c.l.b16 %v5849
  %v6026 = vunpack.c.h.b16 %v5849
  %v6027 = vunpack.c.l.b16 %v5850
  %v6028 = vunpack.c.h.b16 %v5850
  %v6029 = vunpack.c.l.b16 %v5851
  %v6030 = vunpack.c.l.b16 %v5852
  %v6031 = vunpack.c.h.b16 %v5852
  %v6032 = vunpack.c.l.b16 %v5853
  %v6033 = vunpack.c.h.b16 %v5853
  %v6034 = vunpack.c.l.b16 %v5854
  %v6035 = vunpack.c.l.b16 %v5855
  %v6036 = vunpack.c.h.b16 %v5855
  %v6037 = vunpack.c.l.b16 %v5856
  %v6038 = vunpack.c.h.b16 %v5856
  %v6039 = vunpack.c.l.b16 %v5857
  %v6040 = vunpack.c.l.b16 %v5858
  %v6041 = vunpack.c.h.b16 %v5858
  %v6042 = vunpack.c.l.b16 %v5859
  %v6043 = vunpack.c.h.b16 %v5859
  %v6044 = vunpack.c.l.b16 %v5860
  %v6045 = vunpack.c.l.b16 %v5861
  %v6046 = vunpack.c.h.b16 %v5861
  %v6047 = vunpack.c.l.b16 %v5862
  %v6048 = vunpack.c.h.b16 %v5862
  %v6049 = vunpack.c.l.b16 %v5863
  %v6050 = vunpack.c.l.b16 %v5864
  %v6051 = vunpack.c.h.b16 %v5864
  %v6052 = vunpack.c.l.b16 %v5865
  %v6053 = vunpack.c.h.b16 %v5865
  %v6054 = vunpack.c.l.b16 %v5866
  %v6055 = vunpack.c.l.b16 %v5867
  %v6056 = vunpack.c.h.b16 %v5867
  %v6057 = vunpack.c.l.b16 %v5868
  %v6058 = vunpack.c.h.b16 %v5868
  %v6059 = vunpack.c.l.b16 %v5869
  %v6060 = vunpack.c.l.b16 %v5870
  %v6061 = vunpack.c.h.b16 %v5870
  %v6062 = vunpack.c.l.b16 %v5871
  %v6063 = vunpack.c.h.b16 %v5871
  %v6064 = vunpack.c.l.b16 %v5872
  %v6065 = vunpack.c.l.b16 %v5873
  %v6066 = vunpack.c.h.b16 %v5873
  %v6067 = vunpack.c.l.b16 %v5874
  %v6068 = vunpack.c.h.b16 %v5874
  %v6069 = vunpack.c.l.b16 %v5875
  %v6070 = vunpack.c.l.b16 %v5876
  %v6071 = vunpack.c.h.b16 %v5876
  %v6072 = vunpack.c.l.b16 %v5877
  %v6073 = vunpack.c.h.b16 %v5877
  %v6074 = vunpack.c.l.b16 %v5878
  %v6075 = vunpack.c.l.b16 %v5879
  %v6076 = vunpack.c.h.b16 %v5879
  %v6077 = vunpack.c.l.b16 %v5880
  %v6078 = vunpack.c.h.b16 %v5880
  %v6079 = vunpack.c.l.b16 %v5881
  %v6080 = vunpack.c.l.b16 %v5882
  %v6081 = vunpack.c.h.b16 %v5882
  %v6082 = vunpack.c.l.b16 %v5883
  %v6083 = vunpack.c.h.b16 %v5883
  %v6084 = vunpack.c.l.b16 %v5884
  %v6085 = vpack.c.b16 %v5965, %v5960
  %v6086 = vpack.c.b16 %v5966, %v5961
  %v6087 = vpack.c.b16 %v5967, %v5962
  %v6088 = vpack.c.b16 %v5968, %v5963
  %v6089 = vpack.c.b16 %v5969, %v5964
  %v6090 = vpack.c.b16 %v5975, %v5970
  %v6091 = vpack.c.b16 %v5976, %v5971
  %v6092 = vpack.c.b16 %v5977, %v5972
  %v6093 = vpack.c.b16 %v5978, %v5973
  %v6094 = vpack.c.b16 %v5979, %v5974
  %v6095 = vpack.c.b16 %v5985, %v5980
  %v6096 = vpack.c.b16 %v5986, %v5981
  %v6097 = vpack.c.b16 %v5987, %v5982
  %v6098 = vpack.c.b16 %v5988, %v5983
  %v6099 = vpack.c.b16 %v5989, %v5984
  %v6100 = vpack.c.b16 %v5995, %v5990
  %v6101 = vpack.c.b16 %v5996, %v5991
  %v6102 = vpack.c.b16 %v5997, %v5992
  %v6103 = vpack.c.b16 %v5998, %v5993
  %v6104 = vpack.c.b16 %v5999, %v5994
  %v6105 = vpack.c.b16 %v6005, %v6000
  %v6106 = vpack.c.b16 %v6006, %v6001
  %v6107 = vpack.c.b16 %v6007, %v6002
  %v6108 = vpack.c.b16 %v6008, %v6003
  %v6109 = vpack.c.b16 %v6009, %v6004
  %v6110 = vpack.c.b16 %v6015, %v6010
  %v6111 = vpack.c.b16 %v6016, %v6011
  %v6112 = vpack.c.b16 %v6017, %v6012
  %v6113 = vpack.c.b16 %v6018, %v6013
  %v6114 = vpack.c.b16 %v6019, %v6014
  %v6115 = vpack.c.b16 %v6025, %v6020
  %v6116 = vpack.c.b16 %v6026, %v6021
  %v6117 = vpack.c.b16 %v6027, %v6022
  %v6118 = vpack.c.b16 %v6028, %v6023
  %v6119 = vpack.c.b16 %v6029, %v6024
  %v6120 = vpack.c.b16 %v6035, %v6030
  %v6121 = vpack.c.b16 %v6036, %v6031
  %v6122 = vpack.c.b16 %v6037, %v6032
  %v6123 = vpack.c.b16 %v6038, %v6033
  %v6124 = vpack.c.b16 %v6039, %v6034
  %v6125 = vpack.c.b16 %v6045, %v6040
  %v6126 = vpack.c.b16 %v6046, %v6041
  %v6127 = vpack.c.b16 %v6047, %v6042
  %v6128 = vpack.c.b16 %v6048, %v6043
  %v6129 = vpack.c.b16 %v6049, %v6044
  %v6130 = vpack.c.b16 %v6055, %v6050
  %v6131 = vpack.c.b16 %v6056, %v6051
  %v6132 = vpack.c.b16 %v6057, %v6052
  %v6133 = vpack.c.b16 %v6058, %v6053
  %v6134 = vpack.c.b16 %v6059, %v6054
  %v6135 = vpack.c.b16 %v6065, %v6060
  %v6136 = vpack.c.b16 %v6066, %v6061
  %v6137 = vpack.c.b16 %v6067, %v6062
  %v6138 = vpack.c.b16 %v6068, %v6063
  %v6139 = vpack.c.b16 %v6069, %v6064
  %v6140 = vpack.c.b16 %v6075, %v6070
  %v6141 = vpack.c.b16 %v6076, %v6071
  %v6142 = vpack.c.b16 %v6077, %v6072
  %v6143 = vpack.c.b16 %v6078, %v6073
  %v6144 = vpack.c.b16 %v6079, %v6074
  %v6145 = vpack.c.b16 %v6080, %v6080
  %v6146 = vpack.c.b16 %v6081, %v6081
  %v6147 = vpack.c.b16 %v6082, %v6082
  %v6148 = vpack.c.b16 %v6083, %v6083
  %v6149 = vpack.c.b16 %v6084, %v6084
  %v6211 = vsel %vm4101, %v5809, 0
  %v6214 = vsel %vm4105, %v6145, 0
  %v6217 = vsel %vm4105, %v6146, 0
  %v6220 = vsel %vm4105, %v6147, 0
  %v6223 = vsel %vm4105, %v6148, 0
  %v6226 = vsel %vm4105, %v6149, 0
  %6228 = vmatprep.subr.bf16.mxu0 %v6121
  %6229 = vmatpush1.bf16.msra.mxu0 %v6120
  %6230 = vmatprep.subr.bf16.mxu0 %v6116
  %6231 = vmatpush1.bf16.msra.mxu0 %v6115
  %6232 = vmatprep.subr.bf16.mxu0 %v6111
  %6233 = vmatpush1.bf16.msra.mxu0 %v6110
  %6234 = vmatprep.subr.bf16.mxu0 %v6106
  %6235 = vmatpush1.bf16.msra.mxu0 %v6105
  %6236 = vmatprep.subr.bf16.mxu0 %v6101
  %6237 = vmatpush1.bf16.msra.mxu0 %v6100
  %6238 = vmatprep.subr.bf16.mxu0 %v6096
  %6239 = vmatpush1.bf16.msra.mxu0 %v6095
  %6240 = vmatprep.subr.bf16.mxu0 %v6091
  %6241 = vmatpush1.bf16.msra.mxu0 %v6090
  %6242 = vmatprep.subr.bf16.mxu0 %v6086
  %6243 = vmatpush1.bf16.msra.mxu0 %v6085
  %6244 = vmatprep.subr.bf16.mxu0 0
  %6245 = vmatpush2.bf16.msra.mxu0 0
  %6246 = vmatprep.subr.bf16.mxu0 0
  %6247 = vmatpush2.bf16.msra.mxu0 0
  %6248 = vmatprep.subr.bf16.mxu0 0
  %6249 = vmatpush2.bf16.msra.mxu0 0
  %6250 = vmatprep.subr.bf16.mxu0 %v6217
  %6251 = vmatpush2.bf16.msra.mxu0 %v6214
  %6252 = vmatprep.subr.bf16.mxu0 %v6141
  %6253 = vmatpush2.bf16.msra.mxu0 %v6140
  %6254 = vmatprep.subr.bf16.mxu0 %v6136
  %6255 = vmatpush2.bf16.msra.mxu0 %v6135
  %6256 = vmatprep.subr.bf16.mxu0 %v6131
  %6257 = vmatpush2.bf16.msra.mxu0 %v6130
  %6258 = vmatprep.subr.bf16.mxu0 %v6126
  %6259 = vmatpush2.bf16.msra.mxu0 %v6125
  %6260 = vmatprep.mubr.bf16.mxu0 %v6211
  %6261 = vmatmul.mubr.bf16.gmra.mxu0 %v5808
  %v6262 = vpop.f32.mrf.mxu0
  %v6263 = vadd.f32 0.0, %v6262
  %v6264 = vpop.f32.mrf.mxu0
  %v6265 = vadd.f32 0.0, %v6264
  %v6266 = vpop.f32.mrf.mxu0
  %v6267 = vpop.f32.mrf.mxu0
  %6268 = vdwg.mxu0
  %6269 = vmatprep.subr.bf16.mxu0 %v6123
  %6270 = vmatpush1.bf16.msra.mxu0 %v6122
  %6271 = vmatprep.subr.bf16.mxu0 %v6118
  %6272 = vmatpush1.bf16.msra.mxu0 %v6117
  %6273 = vmatprep.subr.bf16.mxu0 %v6113
  %6274 = vmatpush1.bf16.msra.mxu0 %v6112
  %6275 = vmatprep.subr.bf16.mxu0 %v6108
  %6276 = vmatpush1.bf16.msra.mxu0 %v6107
  %6277 = vmatprep.subr.bf16.mxu0 %v6103
  %6278 = vmatpush1.bf16.msra.mxu0 %v6102
  %6279 = vmatprep.subr.bf16.mxu0 %v6098
  %6280 = vmatpush1.bf16.msra.mxu0 %v6097
  %6281 = vmatprep.subr.bf16.mxu0 %v6093
  %6282 = vmatpush1.bf16.msra.mxu0 %v6092
  %6283 = vmatprep.subr.bf16.mxu0 %v6088
  %6284 = vmatpush1.bf16.msra.mxu0 %v6087
  %6285 = vmatprep.subr.bf16.mxu0 0
  %6286 = vmatpush2.bf16.msra.mxu0 0
  %6287 = vmatprep.subr.bf16.mxu0 0
  %6288 = vmatpush2.bf16.msra.mxu0 0
  %6289 = vmatprep.subr.bf16.mxu0 0
  %6290 = vmatpush2.bf16.msra.mxu0 0
  %6291 = vmatprep.subr.bf16.mxu0 %v6223
  %6292 = vmatpush2.bf16.msra.mxu0 %v6220
  %6293 = vmatprep.subr.bf16.mxu0 %v6143
  %6294 = vmatpush2.bf16.msra.mxu0 %v6142
  %6295 = vmatprep.subr.bf16.mxu0 %v6138
  %6296 = vmatpush2.bf16.msra.mxu0 %v6137
  %6297 = vmatprep.subr.bf16.mxu0 %v6133
  %6298 = vmatpush2.bf16.msra.mxu0 %v6132
  %6299 = vmatprep.subr.bf16.mxu0 %v6128
  %6300 = vmatpush2.bf16.msra.mxu0 %v6127
  %6301 = vmatprep.mubr.bf16.mxu0 %v6211
  %6302 = vmatmul.mubr.bf16.gmra.mxu0 %v5808
  %v6303 = vpop.f32.mrf.mxu0
  %v6304 = vadd.f32 0.0, %v6303
  %v6305 = vpop.f32.mrf.mxu0
  %v6306 = vadd.f32 0.0, %v6305
  %v6307 = vpop.f32.mrf.mxu0
  %v6308 = vpop.f32.mrf.mxu0
  %6309 = vdwg.mxu0
  %6310 = vmatprep.subr.bf16.mxu0 0
  %6311 = vmatpush1.bf16.msra.mxu0 %v6124
  %6312 = vmatprep.subr.bf16.mxu0 0
  %6313 = vmatpush1.bf16.msra.mxu0 %v6119
  %6314 = vmatprep.subr.bf16.mxu0 0
  %6315 = vmatpush1.bf16.msra.mxu0 %v6114
  %6316 = vmatprep.subr.bf16.mxu0 0
  %6317 = vmatpush1.bf16.msra.mxu0 %v6109
  %6318 = vmatprep.subr.bf16.mxu0 0
  %6319 = vmatpush1.bf16.msra.mxu0 %v6104
  %6320 = vmatprep.subr.bf16.mxu0 0
  %6321 = vmatpush1.bf16.msra.mxu0 %v6099
  %6322 = vmatprep.subr.bf16.mxu0 0
  %6323 = vmatpush1.bf16.msra.mxu0 %v6094
  %6324 = vmatprep.subr.bf16.mxu0 0
  %6325 = vmatpush1.bf16.msra.mxu0 %v6089
  %6326 = vmatprep.subr.bf16.mxu0 0
  %6327 = vmatpush2.bf16.msra.mxu0 0
  %6328 = vmatprep.subr.bf16.mxu0 0
  %6329 = vmatpush2.bf16.msra.mxu0 0
  %6330 = vmatprep.subr.bf16.mxu0 0
  %6331 = vmatpush2.bf16.msra.mxu0 0
  %6332 = vmatprep.subr.bf16.mxu0 0
  %6333 = vmatpush2.bf16.msra.mxu0 %v6226
  %6334 = vmatprep.subr.bf16.mxu0 0
  %6335 = vmatpush2.bf16.msra.mxu0 %v6144
  %6336 = vmatprep.subr.bf16.mxu0 0
  %6337 = vmatpush2.bf16.msra.mxu0 %v6139
  %6338 = vmatprep.subr.bf16.mxu0 0
  %6339 = vmatpush2.bf16.msra.mxu0 %v6134
  %6340 = vmatprep.subr.bf16.mxu0 0
  %6341 = vmatpush2.bf16.msra.mxu0 %v6129
  %6342 = vmatprep.mubr.bf16.mxu0 %v6211
  %6343 = vmatmul.mubr.bf16.gmra.mxu0 %v5808
  %v6344 = vpop.f32.mrf.mxu0
  %v6345 = vadd.f32 0.0, %v6344
  %v6346 = vpop.f32.mrf.mxu0
  %v6347 = vpop.f32.mrf.mxu0
  %v6348 = vpop.f32.mrf.mxu0
  %6349 = vdwg.mxu0
  %v6350 = vadd.f32 %v5801, %v6263
  %v6351 = vadd.f32 %v5802, %v6265
  %v6352 = vadd.f32 %v5803, %v6304
  %v6353 = vadd.f32 %v5804, %v6306
  %v6354 = vadd.f32 %v5805, %v6345
  %v6355 = vld [vmem:[%s6] sm:$0x1f]
  %v6357 = vlaneseq
  %v6358 = vshrl.u32 %v6357, 7
  %v6359 = vsub.s32 0, %v6358
  %v6360 = vrot.slane %v6355, %v6359
  %v6361 = vlaneseq
  %v6362 = vshrl.u32 %v6361, 7
  %v6363 = vsub.s32 1, %v6362
  %v6364 = vrot.slane %v6355, %v6363
  %v6365 = vlaneseq
  %v6366 = vshrl.u32 %v6365, 7
  %v6367 = vsub.s32 2, %v6366
  %v6368 = vrot.slane %v6355, %v6367
  %v6369 = vlaneseq
  %v6370 = vshrl.u32 %v6369, 7
  %v6371 = vsub.s32 3, %v6370
  %v6372 = vrot.slane %v6355, %v6371
  %v6373 = vlaneseq
  %v6374 = vshrl.u32 %v6373, 7
  %v6375 = vsub.s32 4, %v6374
  %v6376 = vrot.slane %v6355, %v6375
  %v6382 = vadd.f32 %v6350, %v6360
  %v6383 = vadd.f32 %v6351, %v6364
  %v6384 = vadd.f32 %v6352, %v6368
  %v6385 = vadd.f32 %v6353, %v6372
  %v6386 = vadd.f32 %v6354, %v6376
  %v6387 = vmax.f32 %v6382, 0.0
  %v6388 = vmax.f32 %v6383, 0.0
  %v6389 = vmax.f32 %v6384, 0.0
  %v6390 = vmax.f32 %v6385, 0.0
  %v6391 = vmax.f32 %v6386, 0.0
  %v6392 = vpack.c.bf16 %v6387, %v6387
  %v6393 = vpack.c.bf16 %v6388, %v6388
  %v6394 = vpack.c.bf16 %v6389, %v6389
  %v6395 = vpack.c.bf16 %v6390, %v6390
  %v6396 = vpack.c.bf16 %v6391, %v6391
  %v6397 = vld [vmem:[%s7] sm:$0xf]
  %v6398 = vld [vmem:[%s7 + $0x4] sm:$0xf]
  %v6399 = vld [vmem:[%s7 + $0x8] sm:$0xf]
  %v6400 = vld [vmem:[%s7 + $0xc] sm:$0xf]
  %v6401 = vld [vmem:[%s7 + $0x10] sm:$0xf]
  %v6402 = vld [vmem:[%s7 + $0x14] sm:$0xf]
  %v6403 = vld [vmem:[%s7 + $0x18] sm:$0xf]
  %v6404 = vld [vmem:[%s7 + $0x1c] sm:$0xf]
  %v6405 = vld [vmem:[%s7 + $0x20] sm:$0xf]
  %v6406 = vld [vmem:[%s7 + $0x24] sm:$0xf]
  %v6407 = vld [vmem:[%s7 + $0x28] sm:$0xf]
  %v6408 = vld [vmem:[%s7 + $0x2c] sm:$0xf]
  %v6409 = vld [vmem:[%s7 + $0x30] sm:$0xf]
  %v6410 = vld [vmem:[%s7 + $0x34] sm:$0xf]
  %v6411 = vld [vmem:[%s7 + $0x38] sm:$0xf]
  %v6412 = vld [vmem:[%s7 + $0x3c] sm:$0xf]
  %v6413 = vld [vmem:[%s7 + $0x40] sm:$0xf]
  %v6414 = vld [vmem:[%s7 + $0x44] sm:$0xf]
  %v6415 = vld [vmem:[%s7 + $0x48] sm:$0xf]
  %v6416 = vld [vmem:[%s7 + $0x4c] sm:$0xf]
  %v6417 = vld [vmem:[%s7 + $0x50] sm:$0xf]
  %v6418 = vld [vmem:[%s7 + $0x54] sm:$0xf]
  %v6419 = vld [vmem:[%s7 + $0x58] sm:$0xf]
  %v6420 = vld [vmem:[%s7 + $0x5c] sm:$0xf]
  %v6421 = vld [vmem:[%s7 + $0x60] sm:$0xf]
  %v6422 = vld [vmem:[%s7 + $0x64] sm:$0xf]
  %v6423 = vld [vmem:[%s7 + $0x68] sm:$0xf]
  %v6424 = vld [vmem:[%s7 + $0x6c] sm:$0xf]
  %v6425 = vld [vmem:[%s7 + $0x70] sm:$0xf]
  %v6426 = vld [vmem:[%s7 + $0x74] sm:$0xf]
  %v6427 = vld [vmem:[%s7 + $0x78] sm:$0xf]
  %v6428 = vld [vmem:[%s7 + $0x7c] sm:$0xf]
  %v6429 = vld [vmem:[%s7 + $0x80] sm:$0xf]
  %v6430 = vld [vmem:[%s7 + $0x84] sm:$0xf]
  %v6431 = vld [vmem:[%s7 + $0x88] sm:$0xf]
  %v6432 = vld [vmem:[%s7 + $0x8c] sm:$0xf]
  %v6433 = vld [vmem:[%s7 + $0x90] sm:$0xf]
  %v6434 = vld [vmem:[%s7 + $0x94] sm:$0xf]
  %v6435 = vld [vmem:[%s7 + $0x98] sm:$0xf]
  %v6436 = vld [vmem:[%s7 + $0x9c] sm:$0xf]
  %v6437 = vld [vmem:[%s7 + $0xa0] sm:$0xf]
  %v6438 = vld [vmem:[%s7 + $0xa4] sm:$0xf]
  %v6439 = vld [vmem:[%s7 + $0xa8] sm:$0xf]
  %v6440 = vld [vmem:[%s7 + $0xac] sm:$0xf]
  %v6441 = vld [vmem:[%s7 + $0xb0] sm:$0xf]
  %v6442 = vld [vmem:[%s7 + $0xb4] sm:$0xf]
  %v6443 = vld [vmem:[%s7 + $0xb8] sm:$0xf]
  %v6444 = vld [vmem:[%s7 + $0xbc] sm:$0xf]
  %v6445 = vld [vmem:[%s7 + $0xc0] sm:$0xf]
  %v6446 = vld [vmem:[%s7 + $0xc4] sm:$0xf]
  %v6447 = vld [vmem:[%s7 + $0xc8] sm:$0xf]
  %v6448 = vld [vmem:[%s7 + $0xcc] sm:$0xf]
  %v6449 = vld [vmem:[%s7 + $0xd0] sm:$0xf]
  %v6450 = vld [vmem:[%s7 + $0xd4] sm:$0xf]
  %v6451 = vld [vmem:[%s7 + $0xd8] sm:$0xf]
  %v6452 = vld [vmem:[%s7 + $0xdc] sm:$0xf]
  %v6453 = vld [vmem:[%s7 + $0xe0] sm:$0xf]
  %v6454 = vld [vmem:[%s7 + $0xe4] sm:$0xf]
  %v6455 = vld [vmem:[%s7 + $0xe8] sm:$0xf]
  %v6456 = vld [vmem:[%s7 + $0xec] sm:$0xf]
  %v6457 = vld [vmem:[%s7 + $0xf0] sm:$0xf]
  %v6458 = vld [vmem:[%s7 + $0xf4] sm:$0xf]
  %v6459 = vld [vmem:[%s7 + $0xf8] sm:$0xf]
  %v6460 = vld [vmem:[%s7 + $0xfc] sm:$0xf]
  %v6461 = vld [vmem:[%s7 + $0x100] sm:$0xf]
  %v6462 = vld [vmem:[%s7 + $0x104] sm:$0xf]
  %v6463 = vld [vmem:[%s7 + $0x108] sm:$0xf]
  %v6464 = vld [vmem:[%s7 + $0x10c] sm:$0xf]
  %v6465 = vld [vmem:[%s7 + $0x110] sm:$0xf]
  %v6466 = vld [vmem:[%s7 + $0x114] sm:$0xf]
  %v6467 = vld [vmem:[%s7 + $0x118] sm:$0xf]
  %v6468 = vld [vmem:[%s7 + $0x11c] sm:$0xf]
  %v6469 = vld [vmem:[%s7 + $0x120] sm:$0xf]
  %v6470 = vld [vmem:[%s7 + $0x124] sm:$0xf]
  %v6471 = vld [vmem:[%s7 + $0x128] sm:$0xf]
  %v6472 = vld [vmem:[%s8] sm:$0x1]
  %v6474 = vlaneseq
  %v6475 = vshrl.u32 %v6474, 7
  %v6476 = vsub.s32 0, %v6475
  %v6477 = vrot.slane %v6472, %v6476
  %v6554 = vunpack.c.l.b16 %v6397
  %v6555 = vunpack.c.l.b16 %v6398
  %v6556 = vunpack.c.l.b16 %v6399
  %v6557 = vunpack.c.l.b16 %v6400
  %v6558 = vunpack.c.l.b16 %v6401
  %v6559 = vunpack.c.l.b16 %v6402
  %v6560 = vunpack.c.l.b16 %v6403
  %v6561 = vunpack.c.l.b16 %v6404
  %v6562 = vunpack.c.l.b16 %v6405
  %v6563 = vunpack.c.l.b16 %v6406
  %v6564 = vunpack.c.l.b16 %v6407
  %v6565 = vunpack.c.l.b16 %v6408
  %v6566 = vunpack.c.l.b16 %v6409
  %v6567 = vunpack.c.l.b16 %v6410
  %v6568 = vunpack.c.l.b16 %v6411
  %v6569 = vunpack.c.l.b16 %v6412
  %v6570 = vunpack.c.l.b16 %v6413
  %v6571 = vunpack.c.l.b16 %v6414
  %v6572 = vunpack.c.l.b16 %v6415
  %v6573 = vunpack.c.l.b16 %v6416
  %v6574 = vunpack.c.l.b16 %v6417
  %v6575 = vunpack.c.l.b16 %v6418
  %v6576 = vunpack.c.l.b16 %v6419
  %v6577 = vunpack.c.l.b16 %v6420
  %v6578 = vunpack.c.l.b16 %v6421
  %v6579 = vunpack.c.l.b16 %v6422
  %v6580 = vunpack.c.l.b16 %v6423
  %v6581 = vunpack.c.l.b16 %v6424
  %v6582 = vunpack.c.l.b16 %v6425
  %v6583 = vunpack.c.l.b16 %v6426
  %v6584 = vunpack.c.l.b16 %v6427
  %v6585 = vunpack.c.l.b16 %v6428
  %v6586 = vunpack.c.l.b16 %v6429
  %v6587 = vunpack.c.l.b16 %v6430
  %v6588 = vunpack.c.l.b16 %v6431
  %v6589 = vunpack.c.l.b16 %v6432
  %v6590 = vunpack.c.l.b16 %v6433
  %v6591 = vunpack.c.l.b16 %v6434
  %v6592 = vunpack.c.l.b16 %v6435
  %v6593 = vunpack.c.l.b16 %v6436
  %v6594 = vunpack.c.l.b16 %v6437
  %v6595 = vunpack.c.l.b16 %v6438
  %v6596 = vunpack.c.l.b16 %v6439
  %v6597 = vunpack.c.l.b16 %v6440
  %v6598 = vunpack.c.l.b16 %v6441
  %v6599 = vunpack.c.l.b16 %v6442
  %v6600 = vunpack.c.l.b16 %v6443
  %v6601 = vunpack.c.l.b16 %v6444
  %v6602 = vunpack.c.l.b16 %v6445
  %v6603 = vunpack.c.l.b16 %v6446
  %v6604 = vunpack.c.l.b16 %v6447
  %v6605 = vunpack.c.l.b16 %v6448
  %v6606 = vunpack.c.l.b16 %v6449
  %v6607 = vunpack.c.l.b16 %v6450
  %v6608 = vunpack.c.l.b16 %v6451
  %v6609 = vunpack.c.l.b16 %v6452
  %v6610 = vunpack.c.l.b16 %v6453
  %v6611 = vunpack.c.l.b16 %v6454
  %v6612 = vunpack.c.l.b16 %v6455
  %v6613 = vunpack.c.l.b16 %v6456
  %v6614 = vunpack.c.l.b16 %v6457
  %v6615 = vunpack.c.l.b16 %v6458
  %v6616 = vunpack.c.l.b16 %v6459
  %v6617 = vunpack.c.l.b16 %v6460
  %v6618 = vunpack.c.l.b16 %v6461
  %v6619 = vunpack.c.l.b16 %v6462
  %v6620 = vunpack.c.l.b16 %v6463
  %v6621 = vunpack.c.l.b16 %v6464
  %v6622 = vunpack.c.l.b16 %v6465
  %v6623 = vunpack.c.l.b16 %v6466
  %v6624 = vunpack.c.l.b16 %v6467
  %v6625 = vunpack.c.l.b16 %v6468
  %v6626 = vunpack.c.l.b16 %v6469
  %v6627 = vunpack.c.l.b16 %v6470
  %v6628 = vunpack.c.l.b16 %v6471
  %v6629 = vpack.c.b16 %v6555, %v6554
  %v6630 = vpack.c.b16 %v6557, %v6556
  %v6631 = vpack.c.b16 %v6559, %v6558
  %v6632 = vpack.c.b16 %v6561, %v6560
  %v6633 = vpack.c.b16 %v6563, %v6562
  %v6634 = vpack.c.b16 %v6565, %v6564
  %v6635 = vpack.c.b16 %v6567, %v6566
  %v6636 = vpack.c.b16 %v6569, %v6568
  %v6637 = vpack.c.b16 %v6571, %v6570
  %v6638 = vpack.c.b16 %v6573, %v6572
  %v6639 = vpack.c.b16 %v6575, %v6574
  %v6640 = vpack.c.b16 %v6577, %v6576
  %v6641 = vpack.c.b16 %v6579, %v6578
  %v6642 = vpack.c.b16 %v6581, %v6580
  %v6643 = vpack.c.b16 %v6583, %v6582
  %v6644 = vpack.c.b16 %v6585, %v6584
  %v6645 = vpack.c.b16 %v6587, %v6586
  %v6646 = vpack.c.b16 %v6589, %v6588
  %v6647 = vpack.c.b16 %v6591, %v6590
  %v6648 = vpack.c.b16 %v6593, %v6592
  %v6649 = vpack.c.b16 %v6595, %v6594
  %v6650 = vpack.c.b16 %v6597, %v6596
  %v6651 = vpack.c.b16 %v6599, %v6598
  %v6652 = vpack.c.b16 %v6601, %v6600
  %v6653 = vpack.c.b16 %v6603, %v6602
  %v6654 = vpack.c.b16 %v6605, %v6604
  %v6655 = vpack.c.b16 %v6607, %v6606
  %v6656 = vpack.c.b16 %v6609, %v6608
  %v6657 = vpack.c.b16 %v6611, %v6610
  %v6658 = vpack.c.b16 %v6613, %v6612
  %v6659 = vpack.c.b16 %v6615, %v6614
  %v6660 = vpack.c.b16 %v6617, %v6616
  %v6661 = vpack.c.b16 %v6619, %v6618
  %v6662 = vpack.c.b16 %v6621, %v6620
  %v6663 = vpack.c.b16 %v6623, %v6622
  %v6664 = vpack.c.b16 %v6625, %v6624
  %v6665 = vpack.c.b16 %v6627, %v6626
  %v6666 = vpack.c.b16 %v6628, %v6628
  %vm6704 = vcmask 719872
  %v6706 = vsel %vm6704, %v6396, 0
  %v6709 = vsel %vm4105, %v6666, 0
  %6711 = vmatprep.subr.bf16.mxu0 0
  %6712 = vmatpush1.bf16.msra.mxu0 %v6636
  %6713 = vmatprep.subr.bf16.mxu0 0
  %6714 = vmatpush1.bf16.msra.mxu0 %v6635
  %6715 = vmatprep.subr.bf16.mxu0 0
  %6716 = vmatpush1.bf16.msra.mxu0 %v6634
  %6717 = vmatprep.subr.bf16.mxu0 0
  %6718 = vmatpush1.bf16.msra.mxu0 %v6633
  %6719 = vmatprep.subr.bf16.mxu0 0
  %6720 = vmatpush1.bf16.msra.mxu0 %v6632
  %6721 = vmatprep.subr.bf16.mxu0 0
  %6722 = vmatpush1.bf16.msra.mxu0 %v6631
  %6723 = vmatprep.subr.bf16.mxu0 0
  %6724 = vmatpush1.bf16.msra.mxu0 %v6630
  %6725 = vmatprep.subr.bf16.mxu0 0
  %6726 = vmatpush1.bf16.msra.mxu0 %v6629
  %6727 = vmatprep.subr.bf16.mxu0 0
  %6728 = vmatpush2.bf16.msra.mxu0 %v6644
  %6729 = vmatprep.subr.bf16.mxu0 0
  %6730 = vmatpush2.bf16.msra.mxu0 %v6643
  %6731 = vmatprep.subr.bf16.mxu0 0
  %6732 = vmatpush2.bf16.msra.mxu0 %v6642
  %6733 = vmatprep.subr.bf16.mxu0 0
  %6734 = vmatpush2.bf16.msra.mxu0 %v6641
  %6735 = vmatprep.subr.bf16.mxu0 0
  %6736 = vmatpush2.bf16.msra.mxu0 %v6640
  %6737 = vmatprep.subr.bf16.mxu0 0
  %6738 = vmatpush2.bf16.msra.mxu0 %v6639
  %6739 = vmatprep.subr.bf16.mxu0 0
  %6740 = vmatpush2.bf16.msra.mxu0 %v6638
  %6741 = vmatprep.subr.bf16.mxu0 0
  %6742 = vmatpush2.bf16.msra.mxu0 %v6637
  %6743 = vmatprep.mubr.bf16.mxu0 %v6393
  %6744 = vmatmul.mubr.bf16.gmra.mxu0 %v6392
  %v6745 = vpop.f32.mrf.mxu0
  %v6746 = vadd.f32 %v6477, %v6745
  %v6747 = vpop.f32.mrf.mxu0
  %v6748 = vpop.f32.mrf.mxu0
  %v6749 = vpop.f32.mrf.mxu0
  %6750 = vdwg.mxu0
  %6751 = vmatprep.subr.bf16.mxu0 0
  %6752 = vmatpush1.bf16.msra.mxu0 %v6652
  %6753 = vmatprep.subr.bf16.mxu0 0
  %6754 = vmatpush1.bf16.msra.mxu0 %v6651
  %6755 = vmatprep.subr.bf16.mxu0 0
  %6756 = vmatpush1.bf16.msra.mxu0 %v6650
  %6757 = vmatprep.subr.bf16.mxu0 0
  %6758 = vmatpush1.bf16.msra.mxu0 %v6649
  %6759 = vmatprep.subr.bf16.mxu0 0
  %6760 = vmatpush1.bf16.msra.mxu0 %v6648
  %6761 = vmatprep.subr.bf16.mxu0 0
  %6762 = vmatpush1.bf16.msra.mxu0 %v6647
  %6763 = vmatprep.subr.bf16.mxu0 0
  %6764 = vmatpush1.bf16.msra.mxu0 %v6646
  %6765 = vmatprep.subr.bf16.mxu0 0
  %6766 = vmatpush1.bf16.msra.mxu0 %v6645
  %6767 = vmatprep.subr.bf16.mxu0 0
  %6768 = vmatpush2.bf16.msra.mxu0 %v6660
  %6769 = vmatprep.subr.bf16.mxu0 0
  %6770 = vmatpush2.bf16.msra.mxu0 %v6659
  %6771 = vmatprep.subr.bf16.mxu0 0
  %6772 = vmatpush2.bf16.msra.mxu0 %v6658
  %6773 = vmatprep.subr.bf16.mxu0 0
  %6774 = vmatpush2.bf16.msra.mxu0 %v6657
  %6775 = vmatprep.subr.bf16.mxu0 0
  %6776 = vmatpush2.bf16.msra.mxu0 %v6656
  %6777 = vmatprep.subr.bf16.mxu0 0
  %6778 = vmatpush2.bf16.msra.mxu0 %v6655
  %6779 = vmatprep.subr.bf16.mxu0 0
  %6780 = vmatpush2.bf16.msra.mxu0 %v6654
  %6781 = vmatprep.subr.bf16.mxu0 0
  %6782 = vmatpush2.bf16.msra.mxu0 %v6653
  %6783 = vmatprep.mubr.bf16.mxu0 %v6395
  %6784 = vmatmul.mubr.bf16.gmra.mxu0 %v6394
  %v6785 = vpop.f32.mrf.mxu0
  %v6786 = vadd.f32 %v6746, %v6785
  %v6787 = vpop.f32.mrf.mxu0
  %v6788 = vpop.f32.mrf.mxu0
  %v6789 = vpop.f32.mrf.mxu0
  %6790 = vdwg.mxu0
  %6791 = vmatprep.subr.bf16.mxu0 0
  %6792 = vmatpush1.bf16.msra.mxu0 0
  %6793 = vmatprep.subr.bf16.mxu0 0
  %6794 = vmatpush1.bf16.msra.mxu0 0
  %6795 = vmatprep.subr.bf16.mxu0 0
  %6796 = vmatpush1.bf16.msra.mxu0 %v6709
  %6797 = vmatprep.subr.bf16.mxu0 0
  %6798 = vmatpush1.bf16.msra.mxu0 %v6665
  %6799 = vmatprep.subr.bf16.mxu0 0
  %6800 = vmatpush1.bf16.msra.mxu0 %v6664
  %6801 = vmatprep.subr.bf16.mxu0 0
  %6802 = vmatpush1.bf16.msra.mxu0 %v6663
  %6803 = vmatprep.subr.bf16.mxu0 0
  %6804 = vmatpush1.bf16.msra.mxu0 %v6662
  %6805 = vmatprep.subr.bf16.mxu0 0
  %6806 = vmatpush1.bf16.msra.mxu0 %v6661
  %6807 = vmatprep.subr.bf16.mxu0 0
  %6808 = vmatpush2.bf16.msra.mxu0 0
  %6809 = vmatprep.subr.bf16.mxu0 0
  %6810 = vmatpush2.bf16.msra.mxu0 0
  %6811 = vmatprep.subr.bf16.mxu0 0
  %6812 = vmatpush2.bf16.msra.mxu0 0
  %6813 = vmatprep.subr.bf16.mxu0 0
  %6814 = vmatpush2.bf16.msra.mxu0 0
  %6815 = vmatprep.subr.bf16.mxu0 0
  %6816 = vmatpush2.bf16.msra.mxu0 0
  %6817 = vmatprep.subr.bf16.mxu0 0
  %6818 = vmatpush2.bf16.msra.mxu0 0
  %6819 = vmatprep.subr.bf16.mxu0 0
  %6820 = vmatpush2.bf16.msra.mxu0 0
  %6821 = vmatprep.subr.bf16.mxu0 0
  %6822 = vmatpush2.bf16.msra.mxu0 0
  %6823 = vmatprep.mubr.bf16.mxu0 0
  %6824 = vmatmul.mubr.bf16.gmra.mxu0 %v6706
  %v6825 = vpop.f32.mrf.mxu0
  %v6826 = vadd.f32 %v6786, %v6825
  %v6827 = vpop.f32.mrf.mxu0
  %v6828 = vpop.f32.mrf.mxu0
  %v6829 = vpop.f32.mrf.mxu0
  %6830 = vdwg.mxu0
  %v6831 = vmax.f32 %v6826, 0.0
  %vm6832 = vcmask 408576
  %6833 = vst.msk [vmem:[%s11] sm:$0xff] %vm6832, %v6831
  %v6834 = vpack.c.bf16 %v6831, %v6831
  %v6835 = vld [vmem:[%s9] sm:$0xf]
  %v6836 = vld [vmem:[%s9 + $0x4] sm:$0xf]
  %v6837 = vld [vmem:[%s9 + $0x8] sm:$0xf]
  %v6838 = vld [vmem:[%s9 + $0xc] sm:$0xf]
  %v6839 = vld [vmem:[%s9 + $0x10] sm:$0xf]
  %v6840 = vld [vmem:[%s9 + $0x14] sm:$0xf]
  %v6841 = vld [vmem:[%s9 + $0x18] sm:$0x1]
  %v6842 = vld [vmem:[%s10] sm:$0x1]
  %v6844 = vlaneseq
  %v6845 = vshrl.u32 %v6844, 7
  %v6846 = vsub.s32 0, %v6845
  %v6847 = vrot.slane %v6842, %v6846
  %v6856 = vunpack.c.l.b16 %v6835
  %v6857 = vunpack.c.l.b16 %v6836
  %v6858 = vunpack.c.l.b16 %v6837
  %v6859 = vunpack.c.l.b16 %v6838
  %v6860 = vunpack.c.l.b16 %v6839
  %v6861 = vunpack.c.l.b16 %v6840
  %v6862 = vunpack.c.l.b16 %v6841
  %v6863 = vpack.c.b16 %v6857, %v6856
  %v6864 = vpack.c.b16 %v6859, %v6858
  %v6865 = vpack.c.b16 %v6861, %v6860
  %v6866 = vpack.c.b16 %v6862, %v6862
  %v6871 = vsel %vm6832, %v6834, 0
  %vm6873 = vcmask 1040384
  %v6875 = vsel %vm6873, %v6866, 0
  %6877 = vmatprep.subr.bf16.mxu0 0
  %6878 = vmatpush1.bf16.msra.mxu0 0
  %6879 = vmatprep.subr.bf16.mxu0 0
  %6880 = vmatpush1.bf16.msra.mxu0 0
  %6881 = vmatprep.subr.bf16.mxu0 0
  %6882 = vmatpush1.bf16.msra.mxu0 0
  %6883 = vmatprep.subr.bf16.mxu0 0
  %6884 = vmatpush1.bf16.msra.mxu0 0
  %6885 = vmatprep.subr.bf16.mxu0 0
  %6886 = vmatpush1.bf16.msra.mxu0 %v6875
  %6887 = vmatprep.subr.bf16.mxu0 0
  %6888 = vmatpush1.bf16.msra.mxu0 %v6865
  %6889 = vmatprep.subr.bf16.mxu0 0
  %6890 = vmatpush1.bf16.msra.mxu0 %v6864
  %6891 = vmatprep.subr.bf16.mxu0 0
  %6892 = vmatpush1.bf16.msra.mxu0 %v6863
  %6893 = vmatprep.subr.bf16.mxu0 0
  %6894 = vmatpush2.bf16.msra.mxu0 0
  %6895 = vmatprep.subr.bf16.mxu0 0
  %6896 = vmatpush2.bf16.msra.mxu0 0
  %6897 = vmatprep.subr.bf16.mxu0 0
  %6898 = vmatpush2.bf16.msra.mxu0 0
  %6899 = vmatprep.subr.bf16.mxu0 0
  %6900 = vmatpush2.bf16.msra.mxu0 0
  %6901 = vmatprep.subr.bf16.mxu0 0
  %6902 = vmatpush2.bf16.msra.mxu0 0
  %6903 = vmatprep.subr.bf16.mxu0 0
  %6904 = vmatpush2.bf16.msra.mxu0 0
  %6905 = vmatprep.subr.bf16.mxu0 0
  %6906 = vmatpush2.bf16.msra.mxu0 0
  %6907 = vmatprep.subr.bf16.mxu0 0
  %6908 = vmatpush2.bf16.msra.mxu0 0
  %6909 = vmatprep.mubr.bf16.mxu0 0
  %6910 = vmatmul.mubr.bf16.gmra.mxu0 %v6871
  %v6911 = vpop.f32.mrf.mxu0
  %v6912 = vadd.f32 %v6847, %v6911
  %v6913 = vpop.f32.mrf.mxu0
  %v6914 = vpop.f32.mrf.mxu0
  %v6915 = vpop.f32.mrf.mxu0
  %6916 = vdwg.mxu0
  %vm6917 = vcmask 89088
  %6918 = vst.msk [vmem:[%s12] sm:$0xff] %vm6917, %v6912
  // Predicated region
  $region46: #{cnn_net_forward.1} parent=0 // pred_check
    _
  $region47: #{cnn_net_forward.1} parent=0 // pred_check_branch
    %6920 = sbr.rel (0) target = $region49
  $region48: #{cnn_net_forward.1} parent=0 // pred_region
    _
  $region49: #{cnn_net_forward.1} parent=0 // pred_fallthru
    _
  // Predicated region
  $region50: #{cnn_net_forward.1} parent=0 // pred_check
    _
  $region51: #{cnn_net_forward.1} parent=0 // pred_check_branch
    %6922 = sbr.rel (0) target = $region53
  $region52: #{cnn_net_forward.1} parent=0 // pred_region
    _
  $region53: #{cnn_net_forward.1} parent=0 // pred_fallthru
    _
  // Predicated region
  $region54: #{cnn_net_forward.1} parent=0 // pred_check
    _
  $region55: #{cnn_net_forward.1} parent=0 // pred_check_branch
    %6924 = sbr.rel (0) target = $region57
  $region56: #{cnn_net_forward.1} parent=0 // pred_region
    _
  $region57: #{cnn_net_forward.1} parent=0 // pred_fallthru
    _
  // Predicated region
  $region58: #{cnn_net_forward.1} parent=0 // pred_check
    _
  $region59: #{cnn_net_forward.1} parent=0 // pred_check_branch
    %6926 = sbr.rel (0) target = $region61
  $region60: #{cnn_net_forward.1} parent=0 // pred_region
    _
  $region61: #{cnn_net_forward.1} parent=0 // pred_fallthru
    _

</llo_original>
